<compile_context>
chip_gen: v5e
topology: v5e:2x2
jax: 0.10.0
libtpu: 0.0.40
codegen_flags: <defaults>
</compile_context>

<pallas_src>
import math

import jax
import jax.numpy as jnp
from jax.experimental import pallas as pl
from jax.experimental.pallas import tpu as pltpu

NHEAD = 8          # nn.TransformerDecoderLayer(nhead=8)
FFN_DIM = 2048     # nn.TransformerDecoderLayer default dim_feedforward
LN_EPS = 1e-5      # default layer_norm_eps


def _layer_norm(x, gamma, beta):
    mu = jnp.mean(x, axis=-1, keepdims=True)
    var = jnp.mean((x - mu) ** 2, axis=-1, keepdims=True)
    return (x - mu) * jax.lax.rsqrt(var + LN_EPS) * gamma + beta


def _softmax_last(s):
    # approx reciprocal: largest single deviation vs. torch f32 (~1e-3 rel); flip to
    # approx=False if bit-closeness matters.
    s = s - jnp.max(s, axis=-1, keepdims=True)
    p = jnp.exp(s)
    return p * pl.reciprocal(jnp.sum(p, axis=-1, keepdims=True), approx=True)


def _make_kernel(tile, seq, d):
    hd = d // NHEAD
    m = tile * seq
    bf16, f32 = jnp.bfloat16, jnp.float32

    def kernel(x_ref, w_qkv_s_ref, b_qkv_s_ref, wo_s_ref, bo_s_ref,
               wq_c_ref, bq_c_ref, kmemT_ref, vmem_ref, wo_c_ref, bo_c_ref,
               ln_g_ref, ln_b_ref, w1_ref, b1_ref, w2_ref, b2_ref,
               out_ref):
        x_bf = x_ref[...].astype(bf16)                        # (m, d): tile slabs of seq tokens

        # --- self-attention: fused QKV projection (1/sqrt(hd) folded into Q weights) ---
        qkv = jnp.dot(x_bf, w_qkv_s_ref[...],
                      preferred_element_type=f32) + b_qkv_s_ref[0]            # (m, 3d)
        q3 = qkv[:, 0 * d:1 * d].reshape(tile, seq, d).astype(bf16)
        k3 = qkv[:, 1 * d:2 * d].reshape(tile, seq, d).astype(bf16)
        v3 = qkv[:, 2 * d:3 * d].reshape(tile, seq, d).astype(bf16)
        ctx_heads = []
        for hh in range(NHEAD):                                # static; K=hd is inherent to MHA
            sl = slice(hh * hd, (hh + 1) * hd)
            s = jnp.einsum('tqe,tke->tqk', q3[:, :, sl], k3[:, :, sl],
                           preferred_element_type=f32)                        # (tile, seq, seq)
            p = _softmax_last(s)
            ctx_heads.append(jnp.einsum('tqk,tke->tqe', p.astype(bf16), v3[:, :, sl],
                                        preferred_element_type=f32))          # (tile, seq, hd)
        ctx = jnp.concatenate(ctx_heads, axis=-1).reshape(m, d)               # head concat
        sa = jnp.dot(ctx.astype(bf16), wo_s_ref[...],
                     preferred_element_type=f32) + bo_s_ref[0]                # ONE K=d out-proj
        h1 = _layer_norm(x_ref[...].astype(f32) + sa, ln_g_ref[0], ln_b_ref[0])

        # --- cross-attention: K/V of `memory` precomputed in the wrapper -------------
        qc = jnp.dot(h1.astype(bf16), wq_c_ref[...],
                     preferred_element_type=f32) + bq_c_ref[0]                # (m, d), scaled
        ctx_heads = []
        for hh in range(NHEAD):
            sl = slice(hh * hd, (hh + 1) * hd)
            s = jnp.dot(qc[:, sl].astype(bf16), kmemT_ref[sl, :],
                        preferred_element_type=f32)                           # (m, d mem tokens)
            p = _softmax_last(s)
            ctx_heads.append(jnp.dot(p.astype(bf16), vmem_ref[:, sl],
                                     preferred_element_type=f32))             # (m, hd)
        ctx = jnp.concatenate(ctx_heads, axis=-1)                             # (m, d)
        ca = jnp.dot(ctx.astype(bf16), wo_c_ref[...],
                     preferred_element_type=f32) + bo_c_ref[0]                # ONE K=d out-proj
        h2 = _layer_norm(h1 + ca, ln_g_ref[1], ln_b_ref[1])

        # --- feed-forward (ReLU activation, default) ---------------------------------
        ff = jnp.dot(h2.astype(bf16), w1_ref[...], preferred_element_type=f32) + b1_ref[0]
        ff = jnp.maximum(ff, 0.0)
        ff = jnp.dot(ff.astype(bf16), w2_ref[...], preferred_element_type=f32) + b2_ref[0]
        h3 = _layer_norm(h2 + ff, ln_g_ref[2], ln_b_ref[2])

        # module forward: c = a + decoder(a, memory)
        out_ref[...] = (x_ref[...].astype(f32) + h3).astype(out_ref.dtype)

    return kernel


def _vmem_capacity_bytes():
    try:
        return int(pltpu.get_tpu_info().vmem_capacity_bytes)
    except Exception:
        return 64 << 20          # conservative (v7x per-TensorCore VMEM)


def _pick_tile(n_slabs, seq, row_cap):
    """Largest divisor of n_slabs with tile*seq <= row_cap rows, preferring >= 4 total
    grid steps (>= 2 per v7x TensorCore) so DMA/compute double-buffering overlaps,
    then >= 2, then whatever fits."""
    divisors = [t for t in range(1, n_slabs + 1) if n_slabs % t == 0]
    fitting = [t for t in divisors if t * seq <= row_cap] or [1]
    for min_steps in (4, 2, 1):
        ok = [t for t in fitting if n_slabs // t >= min_steps]
        if ok:
            return max(ok)
    return max(fitting)


def channel_attention(x, p, tile=None):
    B, C, H, D = x.shape
    assert D % NHEAD == 0, "d_model must be divisible by nhead"
    hd = D // NHEAD
    scale = 1.0 / math.sqrt(hd)
    n_slabs = B * C

    vmem_cap = _vmem_capacity_bytes()
    # Rows-per-step cap scales with VMEM (the FFN intermediate (rows, 2048) dominates):
    # ~1024 rows on 128 MiB parts (v5e/v6e), 512 on 64 MiB (v7x).
    row_cap = 1024 if vmem_cap >= (100 << 20) else 512
    if tile is None:
        tile = _pick_tile(n_slabs, H, row_cap)
    assert n_slabs % tile == 0
    m = tile * H
    assert m % 8 == 0, "rows per grid step must be a multiple of 8"

    f32, bf16 = jnp.float32, jnp.bfloat16

    # Fold 1/sqrt(head_dim) into the Q projection weights/biases (free in the wrapper).
    q_scale = jnp.concatenate([jnp.full((D,), scale, f32), jnp.ones((2 * D,), f32)])
    w_in_s = p["w_in_self"].astype(f32) * q_scale[None, :]
    b_in_s = p["b_in_self"].astype(f32) * q_scale[None, :]

    # Grid-invariant cross-attention K/V of `memory` -> hoisted out of the kernel.
    mem = p["memory"].astype(f32)
    w_in_c = p["w_in_cross"].astype(f32)
    b_in_c = p["b_in_cross"].astype(f32)
    wq_c = w_in_c[:, 0 * D:1 * D] * scale
    bq_c = b_in_c[:, 0 * D:1 * D] * scale
    k_memT = (mem @ w_in_c[:, 1 * D:2 * D] + b_in_c[0, 1 * D:2 * D]).T   # (D feat, D mem tokens)
    v_mem = mem @ w_in_c[:, 2 * D:3 * D] + b_in_c[0, 2 * D:3 * D]        # (D mem tokens, D feat)

    # Matmul weights in bf16 (MXU-native, f32 accumulation); biases / LN params in f32.
    operands = [
        x.reshape(n_slabs * H, D),
        w_in_s.astype(bf16), b_in_s.astype(f32),
        p["wo_self"].astype(bf16), p["bo_self"].astype(f32),
        wq_c.astype(bf16), bq_c.astype(f32),
        k_memT.astype(bf16), v_mem.astype(bf16),
        p["wo_cross"].astype(bf16), p["bo_cross"].astype(f32),
        p["ln_gamma"].astype(f32), p["ln_beta"].astype(f32),
        p["w1"].astype(bf16), p["b1"].astype(f32),
        p["w2"].astype(bf16), p["b2"].astype(f32),
    ]

    # Weights/biases are grid-invariant (index_map always 0): DMA'd once and
    # single-buffered so they do not claim 2x VMEM (matters most on v7x's 64 MiB).
    def rep(a):
        idx = lambda i, _nd=a.ndim: (0,) * _nd
        if hasattr(pl, "Buffered"):
            try:
                return pl.BlockSpec(a.shape, idx, pipeline_mode=pl.Buffered(1))
            except TypeError:
                pass
        return pl.BlockSpec(a.shape, idx)

    in_specs = [pl.BlockSpec((m, D), lambda i: (i, 0))] + [rep(a) for a in operands[1:]]
    out_spec = pl.BlockSpec((m, D), lambda i: (i, 0))

    n_steps = n_slabs // tile
    weight_bytes = sum(int(a.size) * a.dtype.itemsize for a in operands[1:])

    # Explicit scoped-VMEM budget from the per-step working set (v5e's 16 MiB default
    # is the tightest); clamped below physical capacity.
    working_set = (
        4 * m * D * 4                       # x/out blocks, double-buffered, f32
        + weight_bytes                      # single-buffered weights
        + m * 3 * D * 6                     # fused QKV f32 + bf16 copies
        + tile * NHEAD * H * H * 6          # self-attn scores/probs
        + m * D * 6                         # cross-attn scores (one head live)
        + 6 * m * D * 4                     # residual / LN temporaries
        + m * FFN_DIM * 6                   # FFN intermediate f32 + bf16
    )
    vmem_limit = int(min(max(2 * working_set + (8 << 20), 32 << 20),
                         int(0.9 * vmem_cap)))

    flops_step = (
        2 * m * D * 3 * D                       # fused self QKV projection
        + NHEAD * 2 * 2 * tile * H * H * hd     # self-attn scores + context
        + 2 * m * D * D                         # self out-projection
        + 2 * m * D * D                         # cross Q projection
        + NHEAD * 2 * 2 * m * D * hd            # cross scores + context
        + 2 * m * D * D                         # cross out-projection
        + 2 * 2 * m * D * FFN_DIM               # FFN
    )
    transc_step = NHEAD * tile * H * H + NHEAD * m * D   # exp() elements
    cost = pl.CostEstimate(
        flops=int(n_steps * flops_step),
        transcendentals=int(n_steps * transc_step),
        bytes_accessed=int(n_steps * 2 * m * D * x.dtype.itemsize + weight_bytes),
    )

    out2 = pl.pallas_call(
        _make_kernel(tile, H, D),
        out_shape=jax.ShapeDtypeStruct((n_slabs * H, D), x.dtype),
        grid=(n_steps,),
        in_specs=in_specs,
        out_specs=out_spec,
        compiler_params=pltpu.CompilerParams(
            dimension_semantics=("parallel",),
            vmem_limit_bytes=vmem_limit),
        cost_estimate=cost,
    )(*operands)
    return out2.reshape(B, C, H, D)


def init_params(key, dim):
    """Deterministic synthetic init matching nn.TransformerDecoderLayer shapes.
    All matmul weights are stored transposed to (in, out) layout with q/k/v chunk
    order matching torch's in_proj; verify that transpose when loading real ckpts."""
    ks = jax.random.split(key, 8)
    s = 0.05
    p = {}
    p["memory"] = jax.random.normal(ks[0], (dim, dim), jnp.float32)       # torch.randn(dim, dim)
    p["w_in_self"] = s * jax.random.normal(ks[1], (dim, 3 * dim), jnp.float32)
    p["b_in_self"] = jnp.zeros((1, 3 * dim), jnp.float32)
    p["wo_self"] = s * jax.random.normal(ks[2], (dim, dim), jnp.float32)
    p["bo_self"] = jnp.zeros((1, dim), jnp.float32)
    p["w_in_cross"] = s * jax.random.normal(ks[3], (dim, 3 * dim), jnp.float32)
    p["b_in_cross"] = jnp.zeros((1, 3 * dim), jnp.float32)
    p["wo_cross"] = s * jax.random.normal(ks[4], (dim, dim), jnp.float32)
    p["bo_cross"] = jnp.zeros((1, dim), jnp.float32)
    p["ln_gamma"] = jnp.ones((3, dim), jnp.float32)    # norm1/norm2/norm3 weights
    p["ln_beta"] = jnp.zeros((3, dim), jnp.float32)    # norm1/norm2/norm3 biases
    p["w1"] = s * jax.random.normal(ks[5], (dim, FFN_DIM), jnp.float32)
    p["b1"] = jnp.zeros((1, FFN_DIM), jnp.float32)
    p["w2"] = s * jax.random.normal(ks[6], (FFN_DIM, dim), jnp.float32)
    p["b2"] = jnp.zeros((1, dim), jnp.float32)
    # TODO(synk): dropout layers are implemented in eval mode (identity); train-mode
    # stochastic dropout is not reproduced.
    return p


if __name__ == "__main__":
    key = jax.random.PRNGKey(0)
    kx, kp = jax.random.split(key)
    B, C, H, D = 2, 4, 16, 32     # x layout (B, C, H, W) with W == dim == d_model
    x = jax.random.normal(kx, (B, C, H, D), jnp.float32)
    params = init_params(kp, D)

    out = channel_attention(x, params)
    out = jax.block_until_ready(out)

    assert out.shape == (B, C, H, D)
    assert bool(jnp.all(jnp.isfinite(out)))
    print("KERNEL_OK")
</pallas_src>

<mosaic_0001>
module attributes {stable_mosaic.version = 11 : i64} {
  func.func @kernel(%arg0: i32, %arg1: memref<32x32xf32, #tpu.memory_space<vmem>>, %arg2: memref<32x96xbf16, #tpu.memory_space<vmem>>, %arg3: memref<1x96xf32, #tpu.memory_space<vmem>>, %arg4: memref<32x32xbf16, #tpu.memory_space<vmem>>, %arg5: memref<1x32xf32, #tpu.memory_space<vmem>>, %arg6: memref<32x32xbf16, #tpu.memory_space<vmem>>, %arg7: memref<1x32xf32, #tpu.memory_space<vmem>>, %arg8: memref<32x32xbf16, #tpu.memory_space<vmem>>, %arg9: memref<32x32xbf16, #tpu.memory_space<vmem>>, %arg10: memref<32x32xbf16, #tpu.memory_space<vmem>>, %arg11: memref<1x32xf32, #tpu.memory_space<vmem>>, %arg12: memref<3x32xf32, #tpu.memory_space<vmem>>, %arg13: memref<3x32xf32, #tpu.memory_space<vmem>>, %arg14: memref<32x2048xbf16, #tpu.memory_space<vmem>>, %arg15: memref<1x2048xf32, #tpu.memory_space<vmem>>, %arg16: memref<2048x32xbf16, #tpu.memory_space<vmem>>, %arg17: memref<1x32xf32, #tpu.memory_space<vmem>>, %arg18: memref<32x32xf32, #tpu.memory_space<vmem>>) attributes {dimension_semantics = [#tpu.dimension_semantics<parallel>], iteration_bounds = array<i64: 4>, scalar_prefetch = 0 : i64, scratch_operands = 0 : i64, tpu.core_type = #tpu.core_type<tc>, window_params = [{transform_indices = @transform_0, window_bounds = array<i64: 32, 32>}, {pipeline_mode = #tpu.pipeline_mode<synchronous>, transform_indices = @transform_1, window_bounds = array<i64: 32, 96>}, {pipeline_mode = #tpu.pipeline_mode<synchronous>, transform_indices = @transform_2, window_bounds = array<i64: 1, 96>}, {pipeline_mode = #tpu.pipeline_mode<synchronous>, transform_indices = @transform_3, window_bounds = array<i64: 32, 32>}, {pipeline_mode = #tpu.pipeline_mode<synchronous>, transform_indices = @transform_4, window_bounds = array<i64: 1, 32>}, {pipeline_mode = #tpu.pipeline_mode<synchronous>, transform_indices = @transform_5, window_bounds = array<i64: 32, 32>}, {pipeline_mode = #tpu.pipeline_mode<synchronous>, transform_indices = @transform_6, window_bounds = array<i64: 1, 32>}, {pipeline_mode = #tpu.pipeline_mode<synchronous>, transform_indices = @transform_7, window_bounds = array<i64: 32, 32>}, {pipeline_mode = #tpu.pipeline_mode<synchronous>, transform_indices = @transform_8, window_bounds = array<i64: 32, 32>}, {pipeline_mode = #tpu.pipeline_mode<synchronous>, transform_indices = @transform_9, window_bounds = array<i64: 32, 32>}, {pipeline_mode = #tpu.pipeline_mode<synchronous>, transform_indices = @transform_10, window_bounds = array<i64: 1, 32>}, {pipeline_mode = #tpu.pipeline_mode<synchronous>, transform_indices = @transform_11, window_bounds = array<i64: 3, 32>}, {pipeline_mode = #tpu.pipeline_mode<synchronous>, transform_indices = @transform_12, window_bounds = array<i64: 3, 32>}, {pipeline_mode = #tpu.pipeline_mode<synchronous>, transform_indices = @transform_13, window_bounds = array<i64: 32, 2048>}, {pipeline_mode = #tpu.pipeline_mode<synchronous>, transform_indices = @transform_14, window_bounds = array<i64: 1, 2048>}, {pipeline_mode = #tpu.pipeline_mode<synchronous>, transform_indices = @transform_15, window_bounds = array<i64: 2048, 32>}, {pipeline_mode = #tpu.pipeline_mode<synchronous>, transform_indices = @transform_16, window_bounds = array<i64: 1, 32>}, {transform_indices = @transform_17, window_bounds = array<i64: 32, 32>}]} {
    %c0 = arith.constant 0 : index
    %c0_0 = arith.constant 0 : index
    %0 = vector.load %arg1[%c0, %c0_0] : memref<32x32xf32, #tpu.memory_space<vmem>>, vector<32x32xf32>
    %1 = arith.truncf %0 : vector<32x32xf32> to vector<32x32xbf16>
    %c0_1 = arith.constant 0 : index
    %c0_2 = arith.constant 0 : index
    %2 = vector.load %arg2[%c0_1, %c0_2] : memref<32x96xbf16, #tpu.memory_space<vmem>>, vector<32x96xbf16>
    %cst = arith.constant dense<0.000000e+00> : vector<32x96xf32>
    %3 = tpu.matmul %1, %2, %cst {dimension_numbers = #tpu.dot_dimension_numbers<[1], [0], [0], [1], [0, 0, 1, 1], [], []>} : vector<32x32xbf16>, vector<32x96xbf16>, vector<32x96xf32> -> vector<32x96xf32>
    %c0_3 = arith.constant 0 : index
    %c0_4 = arith.constant 0 : index
    %4 = vector.load %arg3[%c0_3, %c0_4] : memref<1x96xf32, #tpu.memory_space<vmem>>, vector<1x96xf32>
    %5 = vector.shape_cast %4 : vector<1x96xf32> to vector<96xf32>
    %6 = vector.shape_cast %5 : vector<96xf32> to vector<1x96xf32>
    %7 = vector.broadcast %6 : vector<1x96xf32> to vector<32x96xf32>
    %8 = arith.addf %3, %7 : vector<32x96xf32>
    %9 = vector.extract_strided_slice %8 {offsets = [0, 0], sizes = [32, 32], strides = [1, 1]} : vector<32x96xf32> to vector<32x32xf32>
    %10 = vector.shape_cast %9 : vector<32x32xf32> to vector<2x16x32xf32>
    %11 = arith.truncf %10 : vector<2x16x32xf32> to vector<2x16x32xbf16>
    %12 = vector.extract_strided_slice %8 {offsets = [0, 32], sizes = [32, 32], strides = [1, 1]} : vector<32x96xf32> to vector<32x32xf32>
    %13 = vector.shape_cast %12 : vector<32x32xf32> to vector<2x16x32xf32>
    %14 = arith.truncf %13 : vector<2x16x32xf32> to vector<2x16x32xbf16>
    %15 = vector.extract_strided_slice %8 {offsets = [0, 64], sizes = [32, 32], strides = [1, 1]} : vector<32x96xf32> to vector<32x32xf32>
    %16 = vector.shape_cast %15 : vector<32x32xf32> to vector<2x16x32xf32>
    %17 = arith.truncf %16 : vector<2x16x32xf32> to vector<2x16x32xbf16>
    %18 = vector.extract_strided_slice %11 {offsets = [0, 0, 0], sizes = [2, 16, 4], strides = [1, 1, 1]} : vector<2x16x32xbf16> to vector<2x16x4xbf16>
    %19 = vector.extract_strided_slice %14 {offsets = [0, 0, 0], sizes = [2, 16, 4], strides = [1, 1, 1]} : vector<2x16x32xbf16> to vector<2x16x4xbf16>
    "tpu.trace_start"() <{level = 10 : i32, message = "tqe,tke->tqk"}> : () -> ()
    %cst_5 = arith.constant dense<0.000000e+00> : vector<2x16x16xf32>
    %20 = tpu.matmul %18, %19, %cst_5 {dimension_numbers = #tpu.dot_dimension_numbers<[2], [2], [1], [1], [0, 0, 0, 1, 1, 1], [0], [0]>} : vector<2x16x4xbf16>, vector<2x16x4xbf16>, vector<2x16x16xf32> -> vector<2x16x16xf32>
    "tpu.trace_stop"() : () -> ()
    %cst_6 = arith.constant dense<0xFF800000> : vector<2x16xf32>
    %21 = vector.multi_reduction <maximumf>, %20, %cst_6 [2] : vector<2x16x16xf32> to vector<2x16xf32>
    %22 = vector.shape_cast %21 : vector<2x16xf32> to vector<2x16x1xf32>
    %23 = vector.broadcast %22 : vector<2x16x1xf32> to vector<2x16x16xf32>
    %24 = arith.subf %20, %23 : vector<2x16x16xf32>
    %25 = math.exp %24 : vector<2x16x16xf32>
    %cst_7 = arith.constant dense<0.000000e+00> : vector<2x16xf32>
    %26 = vector.multi_reduction <add>, %25, %cst_7 [2] : vector<2x16x16xf32> to vector<2x16xf32>
    %27 = vector.shape_cast %26 : vector<2x16xf32> to vector<2x16x1xf32>
    %28 = tpu.reciprocal %27 {approx = true} : vector<2x16x1xf32> -> vector<2x16x1xf32>
    %29 = vector.broadcast %28 : vector<2x16x1xf32> to vector<2x16x16xf32>
    %30 = arith.mulf %25, %29 : vector<2x16x16xf32>
    %31 = arith.truncf %30 : vector<2x16x16xf32> to vector<2x16x16xbf16>
    %32 = vector.extract_strided_slice %17 {offsets = [0, 0, 0], sizes = [2, 16, 4], strides = [1, 1, 1]} : vector<2x16x32xbf16> to vector<2x16x4xbf16>
    "tpu.trace_start"() <{level = 10 : i32, message = "tqk,tke->tqe"}> : () -> ()
    %cst_8 = arith.constant dense<0.000000e+00> : vector<2x16x4xf32>
    %33 = tpu.matmul %31, %32, %cst_8 {dimension_numbers = #tpu.dot_dimension_numbers<[2], [1], [1], [2], [0, 0, 0, 1, 1, 2], [0], [0]>} : vector<2x16x16xbf16>, vector<2x16x4xbf16>, vector<2x16x4xf32> -> vector<2x16x4xf32>
    "tpu.trace_stop"() : () -> ()
    %34 = vector.extract_strided_slice %11 {offsets = [0, 0, 4], sizes = [2, 16, 4], strides = [1, 1, 1]} : vector<2x16x32xbf16> to vector<2x16x4xbf16>
    %35 = vector.extract_strided_slice %14 {offsets = [0, 0, 4], sizes = [2, 16, 4], strides = [1, 1, 1]} : vector<2x16x32xbf16> to vector<2x16x4xbf16>
    "tpu.trace_start"() <{level = 10 : i32, message = "tqe,tke->tqk"}> : () -> ()
    %cst_9 = arith.constant dense<0.000000e+00> : vector<2x16x16xf32>
    %36 = tpu.matmul %34, %35, %cst_9 {dimension_numbers = #tpu.dot_dimension_numbers<[2], [2], [1], [1], [0, 0, 0, 1, 1, 1], [0], [0]>} : vector<2x16x4xbf16>, vector<2x16x4xbf16>, vector<2x16x16xf32> -> vector<2x16x16xf32>
    "tpu.trace_stop"() : () -> ()
    %cst_10 = arith.constant dense<0xFF800000> : vector<2x16xf32>
    %37 = vector.multi_reduction <maximumf>, %36, %cst_10 [2] : vector<2x16x16xf32> to vector<2x16xf32>
    %38 = vector.shape_cast %37 : vector<2x16xf32> to vector<2x16x1xf32>
    %39 = vector.broadcast %38 : vector<2x16x1xf32> to vector<2x16x16xf32>
    %40 = arith.subf %36, %39 : vector<2x16x16xf32>
    %41 = math.exp %40 : vector<2x16x16xf32>
    %cst_11 = arith.constant dense<0.000000e+00> : vector<2x16xf32>
    %42 = vector.multi_reduction <add>, %41, %cst_11 [2] : vector<2x16x16xf32> to vector<2x16xf32>
    %43 = vector.shape_cast %42 : vector<2x16xf32> to vector<2x16x1xf32>
    %44 = tpu.reciprocal %43 {approx = true} : vector<2x16x1xf32> -> vector<2x16x1xf32>
    %45 = vector.broadcast %44 : vector<2x16x1xf32> to vector<2x16x16xf32>
    %46 = arith.mulf %41, %45 : vector<2x16x16xf32>
    %47 = arith.truncf %46 : vector<2x16x16xf32> to vector<2x16x16xbf16>
    %48 = vector.extract_strided_slice %17 {offsets = [0, 0, 4], sizes = [2, 16, 4], strides = [1, 1, 1]} : vector<2x16x32xbf16> to vector<2x16x4xbf16>
    "tpu.trace_start"() <{level = 10 : i32, message = "tqk,tke->tqe"}> : () -> ()
    %cst_12 = arith.constant dense<0.000000e+00> : vector<2x16x4xf32>
    %49 = tpu.matmul %47, %48, %cst_12 {dimension_numbers = #tpu.dot_dimension_numbers<[2], [1], [1], [2], [0, 0, 0, 1, 1, 2], [0], [0]>} : vector<2x16x16xbf16>, vector<2x16x4xbf16>, vector<2x16x4xf32> -> vector<2x16x4xf32>
    "tpu.trace_stop"() : () -> ()
    %50 = vector.extract_strided_slice %11 {offsets = [0, 0, 8], sizes = [2, 16, 4], strides = [1, 1, 1]} : vector<2x16x32xbf16> to vector<2x16x4xbf16>
    %51 = vector.extract_strided_slice %14 {offsets = [0, 0, 8], sizes = [2, 16, 4], strides = [1, 1, 1]} : vector<2x16x32xbf16> to vector<2x16x4xbf16>
    "tpu.trace_start"() <{level = 10 : i32, message = "tqe,tke->tqk"}> : () -> ()
    %cst_13 = arith.constant dense<0.000000e+00> : vector<2x16x16xf32>
    %52 = tpu.matmul %50, %51, %cst_13 {dimension_numbers = #tpu.dot_dimension_numbers<[2], [2], [1], [1], [0, 0, 0, 1, 1, 1], [0], [0]>} : vector<2x16x4xbf16>, vector<2x16x4xbf16>, vector<2x16x16xf32> -> vector<2x16x16xf32>
    "tpu.trace_stop"() : () -> ()
    %cst_14 = arith.constant dense<0xFF800000> : vector<2x16xf32>
    %53 = vector.multi_reduction <maximumf>, %52, %cst_14 [2] : vector<2x16x16xf32> to vector<2x16xf32>
    %54 = vector.shape_cast %53 : vector<2x16xf32> to vector<2x16x1xf32>
    %55 = vector.broadcast %54 : vector<2x16x1xf32> to vector<2x16x16xf32>
    %56 = arith.subf %52, %55 : vector<2x16x16xf32>
    %57 = math.exp %56 : vector<2x16x16xf32>
    %cst_15 = arith.constant dense<0.000000e+00> : vector<2x16xf32>
    %58 = vector.multi_reduction <add>, %57, %cst_15 [2] : vector<2x16x16xf32> to vector<2x16xf32>
    %59 = vector.shape_cast %58 : vector<2x16xf32> to vector<2x16x1xf32>
    %60 = tpu.reciprocal %59 {approx = true} : vector<2x16x1xf32> -> vector<2x16x1xf32>
    %61 = vector.broadcast %60 : vector<2x16x1xf32> to vector<2x16x16xf32>
    %62 = arith.mulf %57, %61 : vector<2x16x16xf32>
    %63 = arith.truncf %62 : vector<2x16x16xf32> to vector<2x16x16xbf16>
    %64 = vector.extract_strided_slice %17 {offsets = [0, 0, 8], sizes = [2, 16, 4], strides = [1, 1, 1]} : vector<2x16x32xbf16> to vector<2x16x4xbf16>
    "tpu.trace_start"() <{level = 10 : i32, message = "tqk,tke->tqe"}> : () -> ()
    %cst_16 = arith.constant dense<0.000000e+00> : vector<2x16x4xf32>
    %65 = tpu.matmul %63, %64, %cst_16 {dimension_numbers = #tpu.dot_dimension_numbers<[2], [1], [1], [2], [0, 0, 0, 1, 1, 2], [0], [0]>} : vector<2x16x16xbf16>, vector<2x16x4xbf16>, vector<2x16x4xf32> -> vector<2x16x4xf32>
    "tpu.trace_stop"() : () -> ()
    %66 = vector.extract_strided_slice %11 {offsets = [0, 0, 12], sizes = [2, 16, 4], strides = [1, 1, 1]} : vector<2x16x32xbf16> to vector<2x16x4xbf16>
    %67 = vector.extract_strided_slice %14 {offsets = [0, 0, 12], sizes = [2, 16, 4], strides = [1, 1, 1]} : vector<2x16x32xbf16> to vector<2x16x4xbf16>
    "tpu.trace_start"() <{level = 10 : i32, message = "tqe,tke->tqk"}> : () -> ()
    %cst_17 = arith.constant dense<0.000000e+00> : vector<2x16x16xf32>
    %68 = tpu.matmul %66, %67, %cst_17 {dimension_numbers = #tpu.dot_dimension_numbers<[2], [2], [1], [1], [0, 0, 0, 1, 1, 1], [0], [0]>} : vector<2x16x4xbf16>, vector<2x16x4xbf16>, vector<2x16x16xf32> -> vector<2x16x16xf32>
    "tpu.trace_stop"() : () -> ()
    %cst_18 = arith.constant dense<0xFF800000> : vector<2x16xf32>
    %69 = vector.multi_reduction <maximumf>, %68, %cst_18 [2] : vector<2x16x16xf32> to vector<2x16xf32>
    %70 = vector.shape_cast %69 : vector<2x16xf32> to vector<2x16x1xf32>
    %71 = vector.broadcast %70 : vector<2x16x1xf32> to vector<2x16x16xf32>
    %72 = arith.subf %68, %71 : vector<2x16x16xf32>
    %73 = math.exp %72 : vector<2x16x16xf32>
    %cst_19 = arith.constant dense<0.000000e+00> : vector<2x16xf32>
    %74 = vector.multi_reduction <add>, %73, %cst_19 [2] : vector<2x16x16xf32> to vector<2x16xf32>
    %75 = vector.shape_cast %74 : vector<2x16xf32> to vector<2x16x1xf32>
    %76 = tpu.reciprocal %75 {approx = true} : vector<2x16x1xf32> -> vector<2x16x1xf32>
    %77 = vector.broadcast %76 : vector<2x16x1xf32> to vector<2x16x16xf32>
    %78 = arith.mulf %73, %77 : vector<2x16x16xf32>
    %79 = arith.truncf %78 : vector<2x16x16xf32> to vector<2x16x16xbf16>
    %80 = vector.extract_strided_slice %17 {offsets = [0, 0, 12], sizes = [2, 16, 4], strides = [1, 1, 1]} : vector<2x16x32xbf16> to vector<2x16x4xbf16>
    "tpu.trace_start"() <{level = 10 : i32, message = "tqk,tke->tqe"}> : () -> ()
    %cst_20 = arith.constant dense<0.000000e+00> : vector<2x16x4xf32>
    %81 = tpu.matmul %79, %80, %cst_20 {dimension_numbers = #tpu.dot_dimension_numbers<[2], [1], [1], [2], [0, 0, 0, 1, 1, 2], [0], [0]>} : vector<2x16x16xbf16>, vector<2x16x4xbf16>, vector<2x16x4xf32> -> vector<2x16x4xf32>
    "tpu.trace_stop"() : () -> ()
    %82 = vector.extract_strided_slice %11 {offsets = [0, 0, 16], sizes = [2, 16, 4], strides = [1, 1, 1]} : vector<2x16x32xbf16> to vector<2x16x4xbf16>
    %83 = vector.extract_strided_slice %14 {offsets = [0, 0, 16], sizes = [2, 16, 4], strides = [1, 1, 1]} : vector<2x16x32xbf16> to vector<2x16x4xbf16>
    "tpu.trace_start"() <{level = 10 : i32, message = "tqe,tke->tqk"}> : () -> ()
    %cst_21 = arith.constant dense<0.000000e+00> : vector<2x16x16xf32>
    %84 = tpu.matmul %82, %83, %cst_21 {dimension_numbers = #tpu.dot_dimension_numbers<[2], [2], [1], [1], [0, 0, 0, 1, 1, 1], [0], [0]>} : vector<2x16x4xbf16>, vector<2x16x4xbf16>, vector<2x16x16xf32> -> vector<2x16x16xf32>
    "tpu.trace_stop"() : () -> ()
    %cst_22 = arith.constant dense<0xFF800000> : vector<2x16xf32>
    %85 = vector.multi_reduction <maximumf>, %84, %cst_22 [2] : vector<2x16x16xf32> to vector<2x16xf32>
    %86 = vector.shape_cast %85 : vector<2x16xf32> to vector<2x16x1xf32>
    %87 = vector.broadcast %86 : vector<2x16x1xf32> to vector<2x16x16xf32>
    %88 = arith.subf %84, %87 : vector<2x16x16xf32>
    %89 = math.exp %88 : vector<2x16x16xf32>
    %cst_23 = arith.constant dense<0.000000e+00> : vector<2x16xf32>
    %90 = vector.multi_reduction <add>, %89, %cst_23 [2] : vector<2x16x16xf32> to vector<2x16xf32>
    %91 = vector.shape_cast %90 : vector<2x16xf32> to vector<2x16x1xf32>
    %92 = tpu.reciprocal %91 {approx = true} : vector<2x16x1xf32> -> vector<2x16x1xf32>
    %93 = vector.broadcast %92 : vector<2x16x1xf32> to vector<2x16x16xf32>
    %94 = arith.mulf %89, %93 : vector<2x16x16xf32>
    %95 = arith.truncf %94 : vector<2x16x16xf32> to vector<2x16x16xbf16>
    %96 = vector.extract_strided_slice %17 {offsets = [0, 0, 16], sizes = [2, 16, 4], strides = [1, 1, 1]} : vector<2x16x32xbf16> to vector<2x16x4xbf16>
    "tpu.trace_start"() <{level = 10 : i32, message = "tqk,tke->tqe"}> : () -> ()
    %cst_24 = arith.constant dense<0.000000e+00> : vector<2x16x4xf32>
    %97 = tpu.matmul %95, %96, %cst_24 {dimension_numbers = #tpu.dot_dimension_numbers<[2], [1], [1], [2], [0, 0, 0, 1, 1, 2], [0], [0]>} : vector<2x16x16xbf16>, vector<2x16x4xbf16>, vector<2x16x4xf32> -> vector<2x16x4xf32>
    "tpu.trace_stop"() : () -> ()
    %98 = vector.extract_strided_slice %11 {offsets = [0, 0, 20], sizes = [2, 16, 4], strides = [1, 1, 1]} : vector<2x16x32xbf16> to vector<2x16x4xbf16>
    %99 = vector.extract_strided_slice %14 {offsets = [0, 0, 20], sizes = [2, 16, 4], strides = [1, 1, 1]} : vector<2x16x32xbf16> to vector<2x16x4xbf16>
    "tpu.trace_start"() <{level = 10 : i32, message = "tqe,tke->tqk"}> : () -> ()
    %cst_25 = arith.constant dense<0.000000e+00> : vector<2x16x16xf32>
    %100 = tpu.matmul %98, %99, %cst_25 {dimension_numbers = #tpu.dot_dimension_numbers<[2], [2], [1], [1], [0, 0, 0, 1, 1, 1], [0], [0]>} : vector<2x16x4xbf16>, vector<2x16x4xbf16>, vector<2x16x16xf32> -> vector<2x16x16xf32>
    "tpu.trace_stop"() : () -> ()
    %cst_26 = arith.constant dense<0xFF800000> : vector<2x16xf32>
    %101 = vector.multi_reduction <maximumf>, %100, %cst_26 [2] : vector<2x16x16xf32> to vector<2x16xf32>
    %102 = vector.shape_cast %101 : vector<2x16xf32> to vector<2x16x1xf32>
    %103 = vector.broadcast %102 : vector<2x16x1xf32> to vector<2x16x16xf32>
    %104 = arith.subf %100, %103 : vector<2x16x16xf32>
    %105 = math.exp %104 : vector<2x16x16xf32>
    %cst_27 = arith.constant dense<0.000000e+00> : vector<2x16xf32>
    %106 = vector.multi_reduction <add>, %105, %cst_27 [2] : vector<2x16x16xf32> to vector<2x16xf32>
    %107 = vector.shape_cast %106 : vector<2x16xf32> to vector<2x16x1xf32>
    %108 = tpu.reciprocal %107 {approx = true} : vector<2x16x1xf32> -> vector<2x16x1xf32>
    %109 = vector.broadcast %108 : vector<2x16x1xf32> to vector<2x16x16xf32>
    %110 = arith.mulf %105, %109 : vector<2x16x16xf32>
    %111 = arith.truncf %110 : vector<2x16x16xf32> to vector<2x16x16xbf16>
    %112 = vector.extract_strided_slice %17 {offsets = [0, 0, 20], sizes = [2, 16, 4], strides = [1, 1, 1]} : vector<2x16x32xbf16> to vector<2x16x4xbf16>
    "tpu.trace_start"() <{level = 10 : i32, message = "tqk,tke->tqe"}> : () -> ()
    %cst_28 = arith.constant dense<0.000000e+00> : vector<2x16x4xf32>
    %113 = tpu.matmul %111, %112, %cst_28 {dimension_numbers = #tpu.dot_dimension_numbers<[2], [1], [1], [2], [0, 0, 0, 1, 1, 2], [0], [0]>} : vector<2x16x16xbf16>, vector<2x16x4xbf16>, vector<2x16x4xf32> -> vector<2x16x4xf32>
    "tpu.trace_stop"() : () -> ()
    %114 = vector.extract_strided_slice %11 {offsets = [0, 0, 24], sizes = [2, 16, 4], strides = [1, 1, 1]} : vector<2x16x32xbf16> to vector<2x16x4xbf16>
    %115 = vector.extract_strided_slice %14 {offsets = [0, 0, 24], sizes = [2, 16, 4], strides = [1, 1, 1]} : vector<2x16x32xbf16> to vector<2x16x4xbf16>
    "tpu.trace_start"() <{level = 10 : i32, message = "tqe,tke->tqk"}> : () -> ()
    %cst_29 = arith.constant dense<0.000000e+00> : vector<2x16x16xf32>
    %116 = tpu.matmul %114, %115, %cst_29 {dimension_numbers = #tpu.dot_dimension_numbers<[2], [2], [1], [1], [0, 0, 0, 1, 1, 1], [0], [0]>} : vector<2x16x4xbf16>, vector<2x16x4xbf16>, vector<2x16x16xf32> -> vector<2x16x16xf32>
    "tpu.trace_stop"() : () -> ()
    %cst_30 = arith.constant dense<0xFF800000> : vector<2x16xf32>
    %117 = vector.multi_reduction <maximumf>, %116, %cst_30 [2] : vector<2x16x16xf32> to vector<2x16xf32>
    %118 = vector.shape_cast %117 : vector<2x16xf32> to vector<2x16x1xf32>
    %119 = vector.broadcast %118 : vector<2x16x1xf32> to vector<2x16x16xf32>
    %120 = arith.subf %116, %119 : vector<2x16x16xf32>
    %121 = math.exp %120 : vector<2x16x16xf32>
    %cst_31 = arith.constant dense<0.000000e+00> : vector<2x16xf32>
    %122 = vector.multi_reduction <add>, %121, %cst_31 [2] : vector<2x16x16xf32> to vector<2x16xf32>
    %123 = vector.shape_cast %122 : vector<2x16xf32> to vector<2x16x1xf32>
    %124 = tpu.reciprocal %123 {approx = true} : vector<2x16x1xf32> -> vector<2x16x1xf32>
    %125 = vector.broadcast %124 : vector<2x16x1xf32> to vector<2x16x16xf32>
    %126 = arith.mulf %121, %125 : vector<2x16x16xf32>
    %127 = arith.truncf %126 : vector<2x16x16xf32> to vector<2x16x16xbf16>
    %128 = vector.extract_strided_slice %17 {offsets = [0, 0, 24], sizes = [2, 16, 4], strides = [1, 1, 1]} : vector<2x16x32xbf16> to vector<2x16x4xbf16>
    "tpu.trace_start"() <{level = 10 : i32, message = "tqk,tke->tqe"}> : () -> ()
    %cst_32 = arith.constant dense<0.000000e+00> : vector<2x16x4xf32>
    %129 = tpu.matmul %127, %128, %cst_32 {dimension_numbers = #tpu.dot_dimension_numbers<[2], [1], [1], [2], [0, 0, 0, 1, 1, 2], [0], [0]>} : vector<2x16x16xbf16>, vector<2x16x4xbf16>, vector<2x16x4xf32> -> vector<2x16x4xf32>
    "tpu.trace_stop"() : () -> ()
    %130 = vector.extract_strided_slice %11 {offsets = [0, 0, 28], sizes = [2, 16, 4], strides = [1, 1, 1]} : vector<2x16x32xbf16> to vector<2x16x4xbf16>
    %131 = vector.extract_strided_slice %14 {offsets = [0, 0, 28], sizes = [2, 16, 4], strides = [1, 1, 1]} : vector<2x16x32xbf16> to vector<2x16x4xbf16>
    "tpu.trace_start"() <{level = 10 : i32, message = "tqe,tke->tqk"}> : () -> ()
    %cst_33 = arith.constant dense<0.000000e+00> : vector<2x16x16xf32>
    %132 = tpu.matmul %130, %131, %cst_33 {dimension_numbers = #tpu.dot_dimension_numbers<[2], [2], [1], [1], [0, 0, 0, 1, 1, 1], [0], [0]>} : vector<2x16x4xbf16>, vector<2x16x4xbf16>, vector<2x16x16xf32> -> vector<2x16x16xf32>
    "tpu.trace_stop"() : () -> ()
    %cst_34 = arith.constant dense<0xFF800000> : vector<2x16xf32>
    %133 = vector.multi_reduction <maximumf>, %132, %cst_34 [2] : vector<2x16x16xf32> to vector<2x16xf32>
    %134 = vector.shape_cast %133 : vector<2x16xf32> to vector<2x16x1xf32>
    %135 = vector.broadcast %134 : vector<2x16x1xf32> to vector<2x16x16xf32>
    %136 = arith.subf %132, %135 : vector<2x16x16xf32>
    %137 = math.exp %136 : vector<2x16x16xf32>
    %cst_35 = arith.constant dense<0.000000e+00> : vector<2x16xf32>
    %138 = vector.multi_reduction <add>, %137, %cst_35 [2] : vector<2x16x16xf32> to vector<2x16xf32>
    %139 = vector.shape_cast %138 : vector<2x16xf32> to vector<2x16x1xf32>
    %140 = tpu.reciprocal %139 {approx = true} : vector<2x16x1xf32> -> vector<2x16x1xf32>
    %141 = vector.broadcast %140 : vector<2x16x1xf32> to vector<2x16x16xf32>
    %142 = arith.mulf %137, %141 : vector<2x16x16xf32>
    %143 = arith.truncf %142 : vector<2x16x16xf32> to vector<2x16x16xbf16>
    %144 = vector.extract_strided_slice %17 {offsets = [0, 0, 28], sizes = [2, 16, 4], strides = [1, 1, 1]} : vector<2x16x32xbf16> to vector<2x16x4xbf16>
    "tpu.trace_start"() <{level = 10 : i32, message = "tqk,tke->tqe"}> : () -> ()
    %cst_36 = arith.constant dense<0.000000e+00> : vector<2x16x4xf32>
    %145 = tpu.matmul %143, %144, %cst_36 {dimension_numbers = #tpu.dot_dimension_numbers<[2], [1], [1], [2], [0, 0, 0, 1, 1, 2], [0], [0]>} : vector<2x16x16xbf16>, vector<2x16x4xbf16>, vector<2x16x4xf32> -> vector<2x16x4xf32>
    "tpu.trace_stop"() : () -> ()
    %146 = tpu.concatenate %33, %49, %65, %81, %97, %113, %129, %145 in 2 : vector<2x16x4xf32>, vector<2x16x4xf32>, vector<2x16x4xf32>, vector<2x16x4xf32>, vector<2x16x4xf32>, vector<2x16x4xf32>, vector<2x16x4xf32>, vector<2x16x4xf32> -> vector<2x16x32xf32>
    %147 = vector.shape_cast %146 : vector<2x16x32xf32> to vector<32x32xf32>
    %148 = arith.truncf %147 : vector<32x32xf32> to vector<32x32xbf16>
    %c0_37 = arith.constant 0 : index
    %c0_38 = arith.constant 0 : index
    %149 = vector.load %arg4[%c0_37, %c0_38] : memref<32x32xbf16, #tpu.memory_space<vmem>>, vector<32x32xbf16>
    %cst_39 = arith.constant dense<0.000000e+00> : vector<32x32xf32>
    %150 = tpu.matmul %148, %149, %cst_39 {dimension_numbers = #tpu.dot_dimension_numbers<[1], [0], [0], [1], [0, 0, 1, 1], [], []>} : vector<32x32xbf16>, vector<32x32xbf16>, vector<32x32xf32> -> vector<32x32xf32>
    %c0_40 = arith.constant 0 : index
    %c0_41 = arith.constant 0 : index
    %151 = vector.load %arg5[%c0_40, %c0_41] : memref<1x32xf32, #tpu.memory_space<vmem>>, vector<1x32xf32>
    %152 = vector.shape_cast %151 : vector<1x32xf32> to vector<32xf32>
    %153 = vector.shape_cast %152 : vector<32xf32> to vector<1x32xf32>
    %154 = vector.broadcast %153 : vector<1x32xf32> to vector<32x32xf32>
    %155 = arith.addf %150, %154 : vector<32x32xf32>
    %c0_42 = arith.constant 0 : index
    %c0_43 = arith.constant 0 : index
    %156 = vector.load %arg1[%c0_42, %c0_43] : memref<32x32xf32, #tpu.memory_space<vmem>>, vector<32x32xf32>
    %157 = arith.addf %156, %155 : vector<32x32xf32>
    %c0_44 = arith.constant 0 : index
    %c0_45 = arith.constant 0 : index
    %158 = vector.load %arg12[%c0_44, %c0_45] : memref<3x32xf32, #tpu.memory_space<vmem>>, vector<1x32xf32>
    %159 = vector.shape_cast %158 : vector<1x32xf32> to vector<32xf32>
    %c0_46 = arith.constant 0 : index
    %c0_47 = arith.constant 0 : index
    %160 = vector.load %arg13[%c0_46, %c0_47] : memref<3x32xf32, #tpu.memory_space<vmem>>, vector<1x32xf32>
    %161 = vector.shape_cast %160 : vector<1x32xf32> to vector<32xf32>
    %cst_48 = arith.constant dense<0.000000e+00> : vector<32xf32>
    %162 = vector.multi_reduction <add>, %157, %cst_48 [1] : vector<32x32xf32> to vector<32xf32>
    %163 = vector.shape_cast %162 : vector<32xf32> to vector<32x1xf32>
    %cst_49 = arith.constant 3.200000e+01 : f32
    %164 = vector.broadcast %cst_49 : f32 to vector<32x1xf32>
    %165 = arith.divf %163, %164 : vector<32x1xf32>
    %166 = vector.broadcast %165 : vector<32x1xf32> to vector<32x32xf32>
    %167 = arith.subf %157, %166 : vector<32x32xf32>
    %168 = arith.mulf %167, %167 : vector<32x32xf32>
    %cst_50 = arith.constant dense<0.000000e+00> : vector<32xf32>
    %169 = vector.multi_reduction <add>, %168, %cst_50 [1] : vector<32x32xf32> to vector<32xf32>
    %170 = vector.shape_cast %169 : vector<32xf32> to vector<32x1xf32>
    %cst_51 = arith.constant 3.200000e+01 : f32
    %171 = vector.broadcast %cst_51 : f32 to vector<32x1xf32>
    %172 = arith.divf %170, %171 : vector<32x1xf32>
    %173 = vector.broadcast %165 : vector<32x1xf32> to vector<32x32xf32>
    %174 = arith.subf %157, %173 : vector<32x32xf32>
    %cst_52 = arith.constant 9.99999974E-6 : f32
    %175 = vector.broadcast %cst_52 : f32 to vector<32x1xf32>
    %176 = arith.addf %172, %175 : vector<32x1xf32>
    %177 = math.rsqrt %176 : vector<32x1xf32>
    %178 = vector.broadcast %177 : vector<32x1xf32> to vector<32x32xf32>
    %179 = arith.mulf %174, %178 : vector<32x32xf32>
    %180 = vector.shape_cast %159 : vector<32xf32> to vector<1x32xf32>
    %181 = vector.broadcast %180 : vector<1x32xf32> to vector<32x32xf32>
    %182 = arith.mulf %179, %181 : vector<32x32xf32>
    %183 = vector.shape_cast %161 : vector<32xf32> to vector<1x32xf32>
    %184 = vector.broadcast %183 : vector<1x32xf32> to vector<32x32xf32>
    %185 = arith.addf %182, %184 : vector<32x32xf32>
    %186 = arith.truncf %185 : vector<32x32xf32> to vector<32x32xbf16>
    %c0_53 = arith.constant 0 : index
    %c0_54 = arith.constant 0 : index
    %187 = vector.load %arg6[%c0_53, %c0_54] : memref<32x32xbf16, #tpu.memory_space<vmem>>, vector<32x32xbf16>
    %cst_55 = arith.constant dense<0.000000e+00> : vector<32x32xf32>
    %188 = tpu.matmul %186, %187, %cst_55 {dimension_numbers = #tpu.dot_dimension_numbers<[1], [0], [0], [1], [0, 0, 1, 1], [], []>} : vector<32x32xbf16>, vector<32x32xbf16>, vector<32x32xf32> -> vector<32x32xf32>
    %c0_56 = arith.constant 0 : index
    %c0_57 = arith.constant 0 : index
    %189 = vector.load %arg7[%c0_56, %c0_57] : memref<1x32xf32, #tpu.memory_space<vmem>>, vector<1x32xf32>
    %190 = vector.shape_cast %189 : vector<1x32xf32> to vector<32xf32>
    %191 = vector.shape_cast %190 : vector<32xf32> to vector<1x32xf32>
    %192 = vector.broadcast %191 : vector<1x32xf32> to vector<32x32xf32>
    %193 = arith.addf %188, %192 : vector<32x32xf32>
    %194 = vector.extract_strided_slice %193 {offsets = [0, 0], sizes = [32, 4], strides = [1, 1]} : vector<32x32xf32> to vector<32x4xf32>
    %195 = arith.truncf %194 : vector<32x4xf32> to vector<32x4xbf16>
    %c0_58 = arith.constant 0 : index
    %c0_59 = arith.constant 0 : index
    %196 = vector.load %arg8[%c0_58, %c0_59] : memref<32x32xbf16, #tpu.memory_space<vmem>>, vector<4x32xbf16>
    %cst_60 = arith.constant dense<0.000000e+00> : vector<32x32xf32>
    %197 = tpu.matmul %195, %196, %cst_60 {dimension_numbers = #tpu.dot_dimension_numbers<[1], [0], [0], [1], [0, 0, 1, 1], [], []>} : vector<32x4xbf16>, vector<4x32xbf16>, vector<32x32xf32> -> vector<32x32xf32>
    %cst_61 = arith.constant dense<0xFF800000> : vector<32xf32>
    %198 = vector.multi_reduction <maximumf>, %197, %cst_61 [1] : vector<32x32xf32> to vector<32xf32>
    %199 = vector.shape_cast %198 : vector<32xf32> to vector<32x1xf32>
    %200 = vector.broadcast %199 : vector<32x1xf32> to vector<32x32xf32>
    %201 = arith.subf %197, %200 : vector<32x32xf32>
    %202 = math.exp %201 : vector<32x32xf32>
    %cst_62 = arith.constant dense<0.000000e+00> : vector<32xf32>
    %203 = vector.multi_reduction <add>, %202, %cst_62 [1] : vector<32x32xf32> to vector<32xf32>
    %204 = vector.shape_cast %203 : vector<32xf32> to vector<32x1xf32>
    %205 = tpu.reciprocal %204 {approx = true} : vector<32x1xf32> -> vector<32x1xf32>
    %206 = vector.broadcast %205 : vector<32x1xf32> to vector<32x32xf32>
    %207 = arith.mulf %202, %206 : vector<32x32xf32>
    %208 = arith.truncf %207 : vector<32x32xf32> to vector<32x32xbf16>
    %c0_63 = arith.constant 0 : index
    %c0_64 = arith.constant 0 : index
    %209 = vector.load %arg9[%c0_63, %c0_64] : memref<32x32xbf16, #tpu.memory_space<vmem>>, vector<32x4xbf16>
    %cst_65 = arith.constant dense<0.000000e+00> : vector<32x4xf32>
    %210 = tpu.matmul %208, %209, %cst_65 {dimension_numbers = #tpu.dot_dimension_numbers<[1], [0], [0], [1], [0, 0, 1, 1], [], []>} : vector<32x32xbf16>, vector<32x4xbf16>, vector<32x4xf32> -> vector<32x4xf32>
    %211 = vector.extract_strided_slice %193 {offsets = [0, 4], sizes = [32, 4], strides = [1, 1]} : vector<32x32xf32> to vector<32x4xf32>
    %212 = arith.truncf %211 : vector<32x4xf32> to vector<32x4xbf16>
    %c4 = arith.constant 4 : index
    %c0_66 = arith.constant 0 : index
    %213 = vector.load %arg8[%c4, %c0_66] : memref<32x32xbf16, #tpu.memory_space<vmem>>, vector<4x32xbf16>
    %cst_67 = arith.constant dense<0.000000e+00> : vector<32x32xf32>
    %214 = tpu.matmul %212, %213, %cst_67 {dimension_numbers = #tpu.dot_dimension_numbers<[1], [0], [0], [1], [0, 0, 1, 1], [], []>} : vector<32x4xbf16>, vector<4x32xbf16>, vector<32x32xf32> -> vector<32x32xf32>
    %cst_68 = arith.constant dense<0xFF800000> : vector<32xf32>
    %215 = vector.multi_reduction <maximumf>, %214, %cst_68 [1] : vector<32x32xf32> to vector<32xf32>
    %216 = vector.shape_cast %215 : vector<32xf32> to vector<32x1xf32>
    %217 = vector.broadcast %216 : vector<32x1xf32> to vector<32x32xf32>
    %218 = arith.subf %214, %217 : vector<32x32xf32>
    %219 = math.exp %218 : vector<32x32xf32>
    %cst_69 = arith.constant dense<0.000000e+00> : vector<32xf32>
    %220 = vector.multi_reduction <add>, %219, %cst_69 [1] : vector<32x32xf32> to vector<32xf32>
    %221 = vector.shape_cast %220 : vector<32xf32> to vector<32x1xf32>
    %222 = tpu.reciprocal %221 {approx = true} : vector<32x1xf32> -> vector<32x1xf32>
    %223 = vector.broadcast %222 : vector<32x1xf32> to vector<32x32xf32>
    %224 = arith.mulf %219, %223 : vector<32x32xf32>
    %225 = arith.truncf %224 : vector<32x32xf32> to vector<32x32xbf16>
    %c0_70 = arith.constant 0 : index
    %c4_71 = arith.constant 4 : index
    %226 = vector.load %arg9[%c0_70, %c4_71] : memref<32x32xbf16, #tpu.memory_space<vmem>>, vector<32x4xbf16>
    %cst_72 = arith.constant dense<0.000000e+00> : vector<32x4xf32>
    %227 = tpu.matmul %225, %226, %cst_72 {dimension_numbers = #tpu.dot_dimension_numbers<[1], [0], [0], [1], [0, 0, 1, 1], [], []>} : vector<32x32xbf16>, vector<32x4xbf16>, vector<32x4xf32> -> vector<32x4xf32>
    %228 = vector.extract_strided_slice %193 {offsets = [0, 8], sizes = [32, 4], strides = [1, 1]} : vector<32x32xf32> to vector<32x4xf32>
    %229 = arith.truncf %228 : vector<32x4xf32> to vector<32x4xbf16>
    %c8 = arith.constant 8 : index
    %c0_73 = arith.constant 0 : index
    %230 = vector.load %arg8[%c8, %c0_73] : memref<32x32xbf16, #tpu.memory_space<vmem>>, vector<4x32xbf16>
    %cst_74 = arith.constant dense<0.000000e+00> : vector<32x32xf32>
    %231 = tpu.matmul %229, %230, %cst_74 {dimension_numbers = #tpu.dot_dimension_numbers<[1], [0], [0], [1], [0, 0, 1, 1], [], []>} : vector<32x4xbf16>, vector<4x32xbf16>, vector<32x32xf32> -> vector<32x32xf32>
    %cst_75 = arith.constant dense<0xFF800000> : vector<32xf32>
    %232 = vector.multi_reduction <maximumf>, %231, %cst_75 [1] : vector<32x32xf32> to vector<32xf32>
    %233 = vector.shape_cast %232 : vector<32xf32> to vector<32x1xf32>
    %234 = vector.broadcast %233 : vector<32x1xf32> to vector<32x32xf32>
    %235 = arith.subf %231, %234 : vector<32x32xf32>
    %236 = math.exp %235 : vector<32x32xf32>
    %cst_76 = arith.constant dense<0.000000e+00> : vector<32xf32>
    %237 = vector.multi_reduction <add>, %236, %cst_76 [1] : vector<32x32xf32> to vector<32xf32>
    %238 = vector.shape_cast %237 : vector<32xf32> to vector<32x1xf32>
    %239 = tpu.reciprocal %238 {approx = true} : vector<32x1xf32> -> vector<32x1xf32>
    %240 = vector.broadcast %239 : vector<32x1xf32> to vector<32x32xf32>
    %241 = arith.mulf %236, %240 : vector<32x32xf32>
    %242 = arith.truncf %241 : vector<32x32xf32> to vector<32x32xbf16>
    %c0_77 = arith.constant 0 : index
    %c8_78 = arith.constant 8 : index
    %243 = vector.load %arg9[%c0_77, %c8_78] : memref<32x32xbf16, #tpu.memory_space<vmem>>, vector<32x4xbf16>
    %cst_79 = arith.constant dense<0.000000e+00> : vector<32x4xf32>
    %244 = tpu.matmul %242, %243, %cst_79 {dimension_numbers = #tpu.dot_dimension_numbers<[1], [0], [0], [1], [0, 0, 1, 1], [], []>} : vector<32x32xbf16>, vector<32x4xbf16>, vector<32x4xf32> -> vector<32x4xf32>
    %245 = vector.extract_strided_slice %193 {offsets = [0, 12], sizes = [32, 4], strides = [1, 1]} : vector<32x32xf32> to vector<32x4xf32>
    %246 = arith.truncf %245 : vector<32x4xf32> to vector<32x4xbf16>
    %c12 = arith.constant 12 : index
    %c0_80 = arith.constant 0 : index
    %247 = vector.load %arg8[%c12, %c0_80] : memref<32x32xbf16, #tpu.memory_space<vmem>>, vector<4x32xbf16>
    %cst_81 = arith.constant dense<0.000000e+00> : vector<32x32xf32>
    %248 = tpu.matmul %246, %247, %cst_81 {dimension_numbers = #tpu.dot_dimension_numbers<[1], [0], [0], [1], [0, 0, 1, 1], [], []>} : vector<32x4xbf16>, vector<4x32xbf16>, vector<32x32xf32> -> vector<32x32xf32>
    %cst_82 = arith.constant dense<0xFF800000> : vector<32xf32>
    %249 = vector.multi_reduction <maximumf>, %248, %cst_82 [1] : vector<32x32xf32> to vector<32xf32>
    %250 = vector.shape_cast %249 : vector<32xf32> to vector<32x1xf32>
    %251 = vector.broadcast %250 : vector<32x1xf32> to vector<32x32xf32>
    %252 = arith.subf %248, %251 : vector<32x32xf32>
    %253 = math.exp %252 : vector<32x32xf32>
    %cst_83 = arith.constant dense<0.000000e+00> : vector<32xf32>
    %254 = vector.multi_reduction <add>, %253, %cst_83 [1] : vector<32x32xf32> to vector<32xf32>
    %255 = vector.shape_cast %254 : vector<32xf32> to vector<32x1xf32>
    %256 = tpu.reciprocal %255 {approx = true} : vector<32x1xf32> -> vector<32x1xf32>
    %257 = vector.broadcast %256 : vector<32x1xf32> to vector<32x32xf32>
    %258 = arith.mulf %253, %257 : vector<32x32xf32>
    %259 = arith.truncf %258 : vector<32x32xf32> to vector<32x32xbf16>
    %c0_84 = arith.constant 0 : index
    %c12_85 = arith.constant 12 : index
    %260 = vector.load %arg9[%c0_84, %c12_85] : memref<32x32xbf16, #tpu.memory_space<vmem>>, vector<32x4xbf16>
    %cst_86 = arith.constant dense<0.000000e+00> : vector<32x4xf32>
    %261 = tpu.matmul %259, %260, %cst_86 {dimension_numbers = #tpu.dot_dimension_numbers<[1], [0], [0], [1], [0, 0, 1, 1], [], []>} : vector<32x32xbf16>, vector<32x4xbf16>, vector<32x4xf32> -> vector<32x4xf32>
    %262 = vector.extract_strided_slice %193 {offsets = [0, 16], sizes = [32, 4], strides = [1, 1]} : vector<32x32xf32> to vector<32x4xf32>
    %263 = arith.truncf %262 : vector<32x4xf32> to vector<32x4xbf16>
    %c16 = arith.constant 16 : index
    %c0_87 = arith.constant 0 : index
    %264 = vector.load %arg8[%c16, %c0_87] : memref<32x32xbf16, #tpu.memory_space<vmem>>, vector<4x32xbf16>
    %cst_88 = arith.constant dense<0.000000e+00> : vector<32x32xf32>
    %265 = tpu.matmul %263, %264, %cst_88 {dimension_numbers = #tpu.dot_dimension_numbers<[1], [0], [0], [1], [0, 0, 1, 1], [], []>} : vector<32x4xbf16>, vector<4x32xbf16>, vector<32x32xf32> -> vector<32x32xf32>
    %cst_89 = arith.constant dense<0xFF800000> : vector<32xf32>
    %266 = vector.multi_reduction <maximumf>, %265, %cst_89 [1] : vector<32x32xf32> to vector<32xf32>
    %267 = vector.shape_cast %266 : vector<32xf32> to vector<32x1xf32>
    %268 = vector.broadcast %267 : vector<32x1xf32> to vector<32x32xf32>
    %269 = arith.subf %265, %268 : vector<32x32xf32>
    %270 = math.exp %269 : vector<32x32xf32>
    %cst_90 = arith.constant dense<0.000000e+00> : vector<32xf32>
    %271 = vector.multi_reduction <add>, %270, %cst_90 [1] : vector<32x32xf32> to vector<32xf32>
    %272 = vector.shape_cast %271 : vector<32xf32> to vector<32x1xf32>
    %273 = tpu.reciprocal %272 {approx = true} : vector<32x1xf32> -> vector<32x1xf32>
    %274 = vector.broadcast %273 : vector<32x1xf32> to vector<32x32xf32>
    %275 = arith.mulf %270, %274 : vector<32x32xf32>
    %276 = arith.truncf %275 : vector<32x32xf32> to vector<32x32xbf16>
    %c0_91 = arith.constant 0 : index
    %c16_92 = arith.constant 16 : index
    %277 = vector.load %arg9[%c0_91, %c16_92] : memref<32x32xbf16, #tpu.memory_space<vmem>>, vector<32x4xbf16>
    %cst_93 = arith.constant dense<0.000000e+00> : vector<32x4xf32>
    %278 = tpu.matmul %276, %277, %cst_93 {dimension_numbers = #tpu.dot_dimension_numbers<[1], [0], [0], [1], [0, 0, 1, 1], [], []>} : vector<32x32xbf16>, vector<32x4xbf16>, vector<32x4xf32> -> vector<32x4xf32>
    %279 = vector.extract_strided_slice %193 {offsets = [0, 20], sizes = [32, 4], strides = [1, 1]} : vector<32x32xf32> to vector<32x4xf32>
    %280 = arith.truncf %279 : vector<32x4xf32> to vector<32x4xbf16>
    %c20 = arith.constant 20 : index
    %c0_94 = arith.constant 0 : index
    %281 = vector.load %arg8[%c20, %c0_94] : memref<32x32xbf16, #tpu.memory_space<vmem>>, vector<4x32xbf16>
    %cst_95 = arith.constant dense<0.000000e+00> : vector<32x32xf32>
    %282 = tpu.matmul %280, %281, %cst_95 {dimension_numbers = #tpu.dot_dimension_numbers<[1], [0], [0], [1], [0, 0, 1, 1], [], []>} : vector<32x4xbf16>, vector<4x32xbf16>, vector<32x32xf32> -> vector<32x32xf32>
    %cst_96 = arith.constant dense<0xFF800000> : vector<32xf32>
    %283 = vector.multi_reduction <maximumf>, %282, %cst_96 [1] : vector<32x32xf32> to vector<32xf32>
    %284 = vector.shape_cast %283 : vector<32xf32> to vector<32x1xf32>
    %285 = vector.broadcast %284 : vector<32x1xf32> to vector<32x32xf32>
    %286 = arith.subf %282, %285 : vector<32x32xf32>
    %287 = math.exp %286 : vector<32x32xf32>
    %cst_97 = arith.constant dense<0.000000e+00> : vector<32xf32>
    %288 = vector.multi_reduction <add>, %287, %cst_97 [1] : vector<32x32xf32> to vector<32xf32>
    %289 = vector.shape_cast %288 : vector<32xf32> to vector<32x1xf32>
    %290 = tpu.reciprocal %289 {approx = true} : vector<32x1xf32> -> vector<32x1xf32>
    %291 = vector.broadcast %290 : vector<32x1xf32> to vector<32x32xf32>
    %292 = arith.mulf %287, %291 : vector<32x32xf32>
    %293 = arith.truncf %292 : vector<32x32xf32> to vector<32x32xbf16>
    %c0_98 = arith.constant 0 : index
    %c20_99 = arith.constant 20 : index
    %294 = vector.load %arg9[%c0_98, %c20_99] : memref<32x32xbf16, #tpu.memory_space<vmem>>, vector<32x4xbf16>
    %cst_100 = arith.constant dense<0.000000e+00> : vector<32x4xf32>
    %295 = tpu.matmul %293, %294, %cst_100 {dimension_numbers = #tpu.dot_dimension_numbers<[1], [0], [0], [1], [0, 0, 1, 1], [], []>} : vector<32x32xbf16>, vector<32x4xbf16>, vector<32x4xf32> -> vector<32x4xf32>
    %296 = vector.extract_strided_slice %193 {offsets = [0, 24], sizes = [32, 4], strides = [1, 1]} : vector<32x32xf32> to vector<32x4xf32>
    %297 = arith.truncf %296 : vector<32x4xf32> to vector<32x4xbf16>
    %c24 = arith.constant 24 : index
    %c0_101 = arith.constant 0 : index
    %298 = vector.load %arg8[%c24, %c0_101] : memref<32x32xbf16, #tpu.memory_space<vmem>>, vector<4x32xbf16>
    %cst_102 = arith.constant dense<0.000000e+00> : vector<32x32xf32>
    %299 = tpu.matmul %297, %298, %cst_102 {dimension_numbers = #tpu.dot_dimension_numbers<[1], [0], [0], [1], [0, 0, 1, 1], [], []>} : vector<32x4xbf16>, vector<4x32xbf16>, vector<32x32xf32> -> vector<32x32xf32>
    %cst_103 = arith.constant dense<0xFF800000> : vector<32xf32>
    %300 = vector.multi_reduction <maximumf>, %299, %cst_103 [1] : vector<32x32xf32> to vector<32xf32>
    %301 = vector.shape_cast %300 : vector<32xf32> to vector<32x1xf32>
    %302 = vector.broadcast %301 : vector<32x1xf32> to vector<32x32xf32>
    %303 = arith.subf %299, %302 : vector<32x32xf32>
    %304 = math.exp %303 : vector<32x32xf32>
    %cst_104 = arith.constant dense<0.000000e+00> : vector<32xf32>
    %305 = vector.multi_reduction <add>, %304, %cst_104 [1] : vector<32x32xf32> to vector<32xf32>
    %306 = vector.shape_cast %305 : vector<32xf32> to vector<32x1xf32>
    %307 = tpu.reciprocal %306 {approx = true} : vector<32x1xf32> -> vector<32x1xf32>
    %308 = vector.broadcast %307 : vector<32x1xf32> to vector<32x32xf32>
    %309 = arith.mulf %304, %308 : vector<32x32xf32>
    %310 = arith.truncf %309 : vector<32x32xf32> to vector<32x32xbf16>
    %c0_105 = arith.constant 0 : index
    %c24_106 = arith.constant 24 : index
    %311 = vector.load %arg9[%c0_105, %c24_106] : memref<32x32xbf16, #tpu.memory_space<vmem>>, vector<32x4xbf16>
    %cst_107 = arith.constant dense<0.000000e+00> : vector<32x4xf32>
    %312 = tpu.matmul %310, %311, %cst_107 {dimension_numbers = #tpu.dot_dimension_numbers<[1], [0], [0], [1], [0, 0, 1, 1], [], []>} : vector<32x32xbf16>, vector<32x4xbf16>, vector<32x4xf32> -> vector<32x4xf32>
    %313 = vector.extract_strided_slice %193 {offsets = [0, 28], sizes = [32, 4], strides = [1, 1]} : vector<32x32xf32> to vector<32x4xf32>
    %314 = arith.truncf %313 : vector<32x4xf32> to vector<32x4xbf16>
    %c28 = arith.constant 28 : index
    %c0_108 = arith.constant 0 : index
    %315 = vector.load %arg8[%c28, %c0_108] : memref<32x32xbf16, #tpu.memory_space<vmem>>, vector<4x32xbf16>
    %cst_109 = arith.constant dense<0.000000e+00> : vector<32x32xf32>
    %316 = tpu.matmul %314, %315, %cst_109 {dimension_numbers = #tpu.dot_dimension_numbers<[1], [0], [0], [1], [0, 0, 1, 1], [], []>} : vector<32x4xbf16>, vector<4x32xbf16>, vector<32x32xf32> -> vector<32x32xf32>
    %cst_110 = arith.constant dense<0xFF800000> : vector<32xf32>
    %317 = vector.multi_reduction <maximumf>, %316, %cst_110 [1] : vector<32x32xf32> to vector<32xf32>
    %318 = vector.shape_cast %317 : vector<32xf32> to vector<32x1xf32>
    %319 = vector.broadcast %318 : vector<32x1xf32> to vector<32x32xf32>
    %320 = arith.subf %316, %319 : vector<32x32xf32>
    %321 = math.exp %320 : vector<32x32xf32>
    %cst_111 = arith.constant dense<0.000000e+00> : vector<32xf32>
    %322 = vector.multi_reduction <add>, %321, %cst_111 [1] : vector<32x32xf32> to vector<32xf32>
    %323 = vector.shape_cast %322 : vector<32xf32> to vector<32x1xf32>
    %324 = tpu.reciprocal %323 {approx = true} : vector<32x1xf32> -> vector<32x1xf32>
    %325 = vector.broadcast %324 : vector<32x1xf32> to vector<32x32xf32>
    %326 = arith.mulf %321, %325 : vector<32x32xf32>
    %327 = arith.truncf %326 : vector<32x32xf32> to vector<32x32xbf16>
    %c0_112 = arith.constant 0 : index
    %c28_113 = arith.constant 28 : index
    %328 = vector.load %arg9[%c0_112, %c28_113] : memref<32x32xbf16, #tpu.memory_space<vmem>>, vector<32x4xbf16>
    %cst_114 = arith.constant dense<0.000000e+00> : vector<32x4xf32>
    %329 = tpu.matmul %327, %328, %cst_114 {dimension_numbers = #tpu.dot_dimension_numbers<[1], [0], [0], [1], [0, 0, 1, 1], [], []>} : vector<32x32xbf16>, vector<32x4xbf16>, vector<32x4xf32> -> vector<32x4xf32>
    %330 = tpu.concatenate %210, %227, %244, %261, %278, %295, %312, %329 in 1 : vector<32x4xf32>, vector<32x4xf32>, vector<32x4xf32>, vector<32x4xf32>, vector<32x4xf32>, vector<32x4xf32>, vector<32x4xf32>, vector<32x4xf32> -> vector<32x32xf32>
    %331 = arith.truncf %330 : vector<32x32xf32> to vector<32x32xbf16>
    %c0_115 = arith.constant 0 : index
    %c0_116 = arith.constant 0 : index
    %332 = vector.load %arg10[%c0_115, %c0_116] : memref<32x32xbf16, #tpu.memory_space<vmem>>, vector<32x32xbf16>
    %cst_117 = arith.constant dense<0.000000e+00> : vector<32x32xf32>
    %333 = tpu.matmul %331, %332, %cst_117 {dimension_numbers = #tpu.dot_dimension_numbers<[1], [0], [0], [1], [0, 0, 1, 1], [], []>} : vector<32x32xbf16>, vector<32x32xbf16>, vector<32x32xf32> -> vector<32x32xf32>
    %c0_118 = arith.constant 0 : index
    %c0_119 = arith.constant 0 : index
    %334 = vector.load %arg11[%c0_118, %c0_119] : memref<1x32xf32, #tpu.memory_space<vmem>>, vector<1x32xf32>
    %335 = vector.shape_cast %334 : vector<1x32xf32> to vector<32xf32>
    %336 = vector.shape_cast %335 : vector<32xf32> to vector<1x32xf32>
    %337 = vector.broadcast %336 : vector<1x32xf32> to vector<32x32xf32>
    %338 = arith.addf %333, %337 : vector<32x32xf32>
    %339 = arith.addf %185, %338 : vector<32x32xf32>
    %c1 = arith.constant 1 : index
    %c0_120 = arith.constant 0 : index
    %340 = vector.load %arg12[%c1, %c0_120] : memref<3x32xf32, #tpu.memory_space<vmem>>, vector<1x32xf32>
    %341 = vector.shape_cast %340 : vector<1x32xf32> to vector<32xf32>
    %c1_121 = arith.constant 1 : index
    %c0_122 = arith.constant 0 : index
    %342 = vector.load %arg13[%c1_121, %c0_122] : memref<3x32xf32, #tpu.memory_space<vmem>>, vector<1x32xf32>
    %343 = vector.shape_cast %342 : vector<1x32xf32> to vector<32xf32>
    %cst_123 = arith.constant dense<0.000000e+00> : vector<32xf32>
    %344 = vector.multi_reduction <add>, %339, %cst_123 [1] : vector<32x32xf32> to vector<32xf32>
    %345 = vector.shape_cast %344 : vector<32xf32> to vector<32x1xf32>
    %cst_124 = arith.constant 3.200000e+01 : f32
    %346 = vector.broadcast %cst_124 : f32 to vector<32x1xf32>
    %347 = arith.divf %345, %346 : vector<32x1xf32>
    %348 = vector.broadcast %347 : vector<32x1xf32> to vector<32x32xf32>
    %349 = arith.subf %339, %348 : vector<32x32xf32>
    %350 = arith.mulf %349, %349 : vector<32x32xf32>
    %cst_125 = arith.constant dense<0.000000e+00> : vector<32xf32>
    %351 = vector.multi_reduction <add>, %350, %cst_125 [1] : vector<32x32xf32> to vector<32xf32>
    %352 = vector.shape_cast %351 : vector<32xf32> to vector<32x1xf32>
    %cst_126 = arith.constant 3.200000e+01 : f32
    %353 = vector.broadcast %cst_126 : f32 to vector<32x1xf32>
    %354 = arith.divf %352, %353 : vector<32x1xf32>
    %355 = vector.broadcast %347 : vector<32x1xf32> to vector<32x32xf32>
    %356 = arith.subf %339, %355 : vector<32x32xf32>
    %cst_127 = arith.constant 9.99999974E-6 : f32
    %357 = vector.broadcast %cst_127 : f32 to vector<32x1xf32>
    %358 = arith.addf %354, %357 : vector<32x1xf32>
    %359 = math.rsqrt %358 : vector<32x1xf32>
    %360 = vector.broadcast %359 : vector<32x1xf32> to vector<32x32xf32>
    %361 = arith.mulf %356, %360 : vector<32x32xf32>
    %362 = vector.shape_cast %341 : vector<32xf32> to vector<1x32xf32>
    %363 = vector.broadcast %362 : vector<1x32xf32> to vector<32x32xf32>
    %364 = arith.mulf %361, %363 : vector<32x32xf32>
    %365 = vector.shape_cast %343 : vector<32xf32> to vector<1x32xf32>
    %366 = vector.broadcast %365 : vector<1x32xf32> to vector<32x32xf32>
    %367 = arith.addf %364, %366 : vector<32x32xf32>
    %368 = arith.truncf %367 : vector<32x32xf32> to vector<32x32xbf16>
    %c0_128 = arith.constant 0 : index
    %c0_129 = arith.constant 0 : index
    %369 = vector.load %arg14[%c0_128, %c0_129] : memref<32x2048xbf16, #tpu.memory_space<vmem>>, vector<32x2048xbf16>
    %cst_130 = arith.constant dense<0.000000e+00> : vector<32x2048xf32>
    %370 = tpu.matmul %368, %369, %cst_130 {dimension_numbers = #tpu.dot_dimension_numbers<[1], [0], [0], [1], [0, 0, 1, 1], [], []>} : vector<32x32xbf16>, vector<32x2048xbf16>, vector<32x2048xf32> -> vector<32x2048xf32>
    %c0_131 = arith.constant 0 : index
    %c0_132 = arith.constant 0 : index
    %371 = vector.load %arg15[%c0_131, %c0_132] : memref<1x2048xf32, #tpu.memory_space<vmem>>, vector<1x2048xf32>
    %372 = vector.shape_cast %371 : vector<1x2048xf32> to vector<2048xf32>
    %373 = vector.shape_cast %372 : vector<2048xf32> to vector<1x2048xf32>
    %374 = vector.broadcast %373 : vector<1x2048xf32> to vector<32x2048xf32>
    %375 = arith.addf %370, %374 : vector<32x2048xf32>
    %cst_133 = arith.constant 0.000000e+00 : f32
    %376 = vector.broadcast %cst_133 : f32 to vector<32x2048xf32>
    %377 = arith.maximumf %375, %376 : vector<32x2048xf32>
    %378 = arith.truncf %377 : vector<32x2048xf32> to vector<32x2048xbf16>
    %c0_134 = arith.constant 0 : index
    %c0_135 = arith.constant 0 : index
    %379 = vector.load %arg16[%c0_134, %c0_135] : memref<2048x32xbf16, #tpu.memory_space<vmem>>, vector<2048x32xbf16>
    %cst_136 = arith.constant dense<0.000000e+00> : vector<32x32xf32>
    %380 = tpu.matmul %378, %379, %cst_136 {dimension_numbers = #tpu.dot_dimension_numbers<[1], [0], [0], [1], [0, 0, 1, 1], [], []>} : vector<32x2048xbf16>, vector<2048x32xbf16>, vector<32x32xf32> -> vector<32x32xf32>
    %c0_137 = arith.constant 0 : index
    %c0_138 = arith.constant 0 : index
    %381 = vector.load %arg17[%c0_137, %c0_138] : memref<1x32xf32, #tpu.memory_space<vmem>>, vector<1x32xf32>
    %382 = vector.shape_cast %381 : vector<1x32xf32> to vector<32xf32>
    %383 = vector.shape_cast %382 : vector<32xf32> to vector<1x32xf32>
    %384 = vector.broadcast %383 : vector<1x32xf32> to vector<32x32xf32>
    %385 = arith.addf %380, %384 : vector<32x32xf32>
    %386 = arith.addf %367, %385 : vector<32x32xf32>
    %c2 = arith.constant 2 : index
    %c0_139 = arith.constant 0 : index
    %387 = vector.load %arg12[%c2, %c0_139] : memref<3x32xf32, #tpu.memory_space<vmem>>, vector<1x32xf32>
    %388 = vector.shape_cast %387 : vector<1x32xf32> to vector<32xf32>
    %c2_140 = arith.constant 2 : index
    %c0_141 = arith.constant 0 : index
    %389 = vector.load %arg13[%c2_140, %c0_141] : memref<3x32xf32, #tpu.memory_space<vmem>>, vector<1x32xf32>
    %390 = vector.shape_cast %389 : vector<1x32xf32> to vector<32xf32>
    %cst_142 = arith.constant dense<0.000000e+00> : vector<32xf32>
    %391 = vector.multi_reduction <add>, %386, %cst_142 [1] : vector<32x32xf32> to vector<32xf32>
    %392 = vector.shape_cast %391 : vector<32xf32> to vector<32x1xf32>
    %cst_143 = arith.constant 3.200000e+01 : f32
    %393 = vector.broadcast %cst_143 : f32 to vector<32x1xf32>
    %394 = arith.divf %392, %393 : vector<32x1xf32>
    %395 = vector.broadcast %394 : vector<32x1xf32> to vector<32x32xf32>
    %396 = arith.subf %386, %395 : vector<32x32xf32>
    %397 = arith.mulf %396, %396 : vector<32x32xf32>
    %cst_144 = arith.constant dense<0.000000e+00> : vector<32xf32>
    %398 = vector.multi_reduction <add>, %397, %cst_144 [1] : vector<32x32xf32> to vector<32xf32>
    %399 = vector.shape_cast %398 : vector<32xf32> to vector<32x1xf32>
    %cst_145 = arith.constant 3.200000e+01 : f32
    %400 = vector.broadcast %cst_145 : f32 to vector<32x1xf32>
    %401 = arith.divf %399, %400 : vector<32x1xf32>
    %402 = vector.broadcast %394 : vector<32x1xf32> to vector<32x32xf32>
    %403 = arith.subf %386, %402 : vector<32x32xf32>
    %cst_146 = arith.constant 9.99999974E-6 : f32
    %404 = vector.broadcast %cst_146 : f32 to vector<32x1xf32>
    %405 = arith.addf %401, %404 : vector<32x1xf32>
    %406 = math.rsqrt %405 : vector<32x1xf32>
    %407 = vector.broadcast %406 : vector<32x1xf32> to vector<32x32xf32>
    %408 = arith.mulf %403, %407 : vector<32x32xf32>
    %409 = vector.shape_cast %388 : vector<32xf32> to vector<1x32xf32>
    %410 = vector.broadcast %409 : vector<1x32xf32> to vector<32x32xf32>
    %411 = arith.mulf %408, %410 : vector<32x32xf32>
    %412 = vector.shape_cast %390 : vector<32xf32> to vector<1x32xf32>
    %413 = vector.broadcast %412 : vector<1x32xf32> to vector<32x32xf32>
    %414 = arith.addf %411, %413 : vector<32x32xf32>
    %c0_147 = arith.constant 0 : index
    %c0_148 = arith.constant 0 : index
    %415 = vector.load %arg1[%c0_147, %c0_148] : memref<32x32xf32, #tpu.memory_space<vmem>>, vector<32x32xf32>
    %416 = arith.addf %415, %414 : vector<32x32xf32>
    %c0_149 = arith.constant 0 : index
    %c0_150 = arith.constant 0 : index
    %417 = vector.load %arg18[%c0_149, %c0_150] : memref<32x32xf32, #tpu.memory_space<vmem>>, vector<32x32xf32>
    tpu.vector_store %arg18[%c0_149, %c0_150], %416 {strides = array<i32>} : memref<32x32xf32, #tpu.memory_space<vmem>>, vector<32x32xf32>,
    return
  }
  func.func @transform_0(%arg0: i32) -> (i32, i32) {
    %c0_i32 = arith.constant 0 : i32
    %c0_i32_0 = arith.constant 0 : i32
    return %arg0, %c0_i32 : i32, i32
  }
  func.func @transform_1(%arg0: i32) -> (i32, i32) {
    %c0_i32 = arith.constant 0 : i32
    %c0_i32_0 = arith.constant 0 : i32
    %c0_i32_1 = arith.constant 0 : i32
    return %c0_i32, %c0_i32_0 : i32, i32
  }
  func.func @transform_2(%arg0: i32) -> (i32, i32) {
    %c0_i32 = arith.constant 0 : i32
    %c0_i32_0 = arith.constant 0 : i32
    %c0_i32_1 = arith.constant 0 : i32
    return %c0_i32, %c0_i32_0 : i32, i32
  }
  func.func @transform_3(%arg0: i32) -> (i32, i32) {
    %c0_i32 = arith.constant 0 : i32
    %c0_i32_0 = arith.constant 0 : i32
    %c0_i32_1 = arith.constant 0 : i32
    return %c0_i32, %c0_i32_0 : i32, i32
  }
  func.func @transform_4(%arg0: i32) -> (i32, i32) {
    %c0_i32 = arith.constant 0 : i32
    %c0_i32_0 = arith.constant 0 : i32
    %c0_i32_1 = arith.constant 0 : i32
    return %c0_i32, %c0_i32_0 : i32, i32
  }
  func.func @transform_5(%arg0: i32) -> (i32, i32) {
    %c0_i32 = arith.constant 0 : i32
    %c0_i32_0 = arith.constant 0 : i32
    %c0_i32_1 = arith.constant 0 : i32
    return %c0_i32, %c0_i32_0 : i32, i32
  }
  func.func @transform_6(%arg0: i32) -> (i32, i32) {
    %c0_i32 = arith.constant 0 : i32
    %c0_i32_0 = arith.constant 0 : i32
    %c0_i32_1 = arith.constant 0 : i32
    return %c0_i32, %c0_i32_0 : i32, i32
  }
  func.func @transform_7(%arg0: i32) -> (i32, i32) {
    %c0_i32 = arith.constant 0 : i32
    %c0_i32_0 = arith.constant 0 : i32
    %c0_i32_1 = arith.constant 0 : i32
    return %c0_i32, %c0_i32_0 : i32, i32
  }
  func.func @transform_8(%arg0: i32) -> (i32, i32) {
    %c0_i32 = arith.constant 0 : i32
    %c0_i32_0 = arith.constant 0 : i32
    %c0_i32_1 = arith.constant 0 : i32
    return %c0_i32, %c0_i32_0 : i32, i32
  }
  func.func @transform_9(%arg0: i32) -> (i32, i32) {
    %c0_i32 = arith.constant 0 : i32
    %c0_i32_0 = arith.constant 0 : i32
    %c0_i32_1 = arith.constant 0 : i32
    return %c0_i32, %c0_i32_0 : i32, i32
  }
  func.func @transform_10(%arg0: i32) -> (i32, i32) {
    %c0_i32 = arith.constant 0 : i32
    %c0_i32_0 = arith.constant 0 : i32
    %c0_i32_1 = arith.constant 0 : i32
    return %c0_i32, %c0_i32_0 : i32, i32
  }
  func.func @transform_11(%arg0: i32) -> (i32, i32) {
    %c0_i32 = arith.constant 0 : i32
    %c0_i32_0 = arith.constant 0 : i32
    %c0_i32_1 = arith.constant 0 : i32
    return %c0_i32, %c0_i32_0 : i32, i32
  }
  func.func @transform_12(%arg0: i32) -> (i32, i32) {
    %c0_i32 = arith.constant 0 : i32
    %c0_i32_0 = arith.constant 0 : i32
    %c0_i32_1 = arith.constant 0 : i32
    return %c0_i32, %c0_i32_0 : i32, i32
  }
  func.func @transform_13(%arg0: i32) -> (i32, i32) {
    %c0_i32 = arith.constant 0 : i32
    %c0_i32_0 = arith.constant 0 : i32
    %c0_i32_1 = arith.constant 0 : i32
    return %c0_i32, %c0_i32_0 : i32, i32
  }
  func.func @transform_14(%arg0: i32) -> (i32, i32) {
    %c0_i32 = arith.constant 0 : i32
    %c0_i32_0 = arith.constant 0 : i32
    %c0_i32_1 = arith.constant 0 : i32
    return %c0_i32, %c0_i32_0 : i32, i32
  }
  func.func @transform_15(%arg0: i32) -> (i32, i32) {
    %c0_i32 = arith.constant 0 : i32
    %c0_i32_0 = arith.constant 0 : i32
    %c0_i32_1 = arith.constant 0 : i32
    return %c0_i32, %c0_i32_0 : i32, i32
  }
  func.func @transform_16(%arg0: i32) -> (i32, i32) {
    %c0_i32 = arith.constant 0 : i32
    %c0_i32_0 = arith.constant 0 : i32
    %c0_i32_1 = arith.constant 0 : i32
    return %c0_i32, %c0_i32_0 : i32, i32
  }
  func.func @transform_17(%arg0: i32) -> (i32, i32) {
    %c0_i32 = arith.constant 0 : i32
    %c0_i32_0 = arith.constant 0 : i32
    return %arg0, %c0_i32 : i32, i32
  }
}

</mosaic_0001>

<llo_original>
// kernel: tpu_custom_call.1
$region0: #{tpu_custom_call.1}
  #allocation0 [shape = 'u32[]', space=smem, size = 0x4, offset = 0x4, fixed_abs, tag = 'smem constant byte address 0x4 - core index']
  #allocation1 [shape = 'u32[72,128]{1,0:T(1,128)}', space=vmem, size = 0x9000, scoped, tag = 'internal scratch']
  %s0 = inlined_call_operand.vmem [shape: f32[128,32], index: 0, kind: input, shape index: {}]
  %s1 = inlined_call_operand.vmem [shape: bf16[32,96], index: 1, kind: input, shape index: {}]
  %s2 = inlined_call_operand.vmem [shape: f32[1,96], index: 2, kind: input, shape index: {}]
  %s3 = inlined_call_operand.vmem [shape: bf16[32,32], index: 3, kind: input, shape index: {}]
  %s4 = inlined_call_operand.vmem [shape: f32[1,32], index: 4, kind: input, shape index: {}]
  %s5 = inlined_call_operand.vmem [shape: bf16[32,32], index: 5, kind: input, shape index: {}]
  %s6 = inlined_call_operand.vmem [shape: f32[1,32], index: 6, kind: input, shape index: {}]
  %s7 = inlined_call_operand.vmem [shape: bf16[32,32], index: 7, kind: input, shape index: {}]
  %s8 = inlined_call_operand.vmem [shape: bf16[32,32], index: 8, kind: input, shape index: {}]
  %s9 = inlined_call_operand.vmem [shape: bf16[32,32], index: 9, kind: input, shape index: {}]
  %s10 = inlined_call_operand.vmem [shape: f32[1,32], index: 10, kind: input, shape index: {}]
  %s11 = inlined_call_operand.vmem [shape: f32[3,32], index: 11, kind: input, shape index: {}]
  %s12 = inlined_call_operand.vmem [shape: f32[3,32], index: 12, kind: input, shape index: {}]
  %s13 = inlined_call_operand.vmem [shape: bf16[32,2048], index: 13, kind: input, shape index: {}]
  %s14 = inlined_call_operand.vmem [shape: f32[1,2048], index: 14, kind: input, shape index: {}]
  %s15 = inlined_call_operand.vmem [shape: bf16[2048,32], index: 15, kind: input, shape index: {}]
  %s16 = inlined_call_operand.vmem [shape: f32[1,32], index: 16, kind: input, shape index: {}]
  %s17 = inlined_call_operand.vmem [shape: f32[128,32], index: 17, kind: output, shape index: {}]
  %s18 = sld [smem:[#allocation0]]
  $region101: #{tpu_custom_call.1} parent=0
    _
  %s20 = ssub.s32 1, %s18
  %s21 = scalar_select 0, %s20, %s18
  loop: start=0, step=1, limit=6
  $region2: #{tpu_custom_call.1} parent=0 // loop_pre_header
    _
  $region3: #{tpu_custom_call.1} parent=0 // loop_header
    %s23 = sphi 0, %s27
    %p24 = scmp.ge.s32.totalorder %s23, 6
    %s33 = sphi 0, %s35
    %s36 = sphi 0, %s33
    %s37 = sphi 0, %s36
    %s53 = sphi 0, %s37
    %s57 = sphi 0, %s57
    %s59 = sphi 0, %s57
    %s60 = sphi 0, %s59
    %s74 = sphi 0, %s60
    %s78 = sphi 0, %s78
    %s80 = sphi 0, %s78
    %s81 = sphi 0, %s80
    %s95 = sphi 0, %s81
    %s99 = sphi 0, %s99
    %s101 = sphi 0, %s99
    %s102 = sphi 0, %s101
    %s116 = sphi 0, %s102
    %s120 = sphi 0, %s120
    %s122 = sphi 0, %s120
    %s123 = sphi 0, %s122
    %s137 = sphi 0, %s123
    %s141 = sphi 0, %s141
    %s143 = sphi 0, %s141
    %s144 = sphi 0, %s143
    %s158 = sphi 0, %s144
    %s162 = sphi 0, %s162
    %s164 = sphi 0, %s162
    %s165 = sphi 0, %s164
    %s179 = sphi 0, %s165
    %s183 = sphi 0, %s183
    %s185 = sphi 0, %s183
    %s186 = sphi 0, %s185
    %s200 = sphi 0, %s186
    %s204 = sphi 0, %s204
    %s206 = sphi 0, %s204
    %s207 = sphi 0, %s206
    %s221 = sphi 0, %s207
    %s225 = sphi 0, %s225
    %s227 = sphi 0, %s225
    %s228 = sphi 0, %s227
    %s242 = sphi 0, %s228
    %s246 = sphi 0, %s246
    %s248 = sphi 0, %s246
    %s249 = sphi 0, %s248
    %s263 = sphi 0, %s249
    %s267 = sphi 0, %s267
    %s269 = sphi 0, %s267
    %s270 = sphi 0, %s269
    %s284 = sphi 0, %s270
    %s288 = sphi 0, %s288
    %s290 = sphi 0, %s288
    %s291 = sphi 0, %s290
    %s305 = sphi 0, %s291
    %s309 = sphi 0, %s309
    %s311 = sphi 0, %s309
    %s312 = sphi 0, %s311
    %s326 = sphi 0, %s312
    %s330 = sphi 0, %s330
    %s332 = sphi 0, %s330
    %s333 = sphi 0, %s332
    %s347 = sphi 0, %s333
    %s351 = sphi 0, %s351
    %s353 = sphi 0, %s351
    %s354 = sphi 0, %s353
    %s368 = sphi 0, %s354
    %s372 = sphi 0, %s372
    %s374 = sphi 0, %s372
    %s375 = sphi 0, %s374
    %s389 = sphi 0, %s375
    %s395 = sphi 0, %s397
    %s398 = sphi 0, %s395
    %s399 = sphi 0, %s398
    %s415 = sphi 0, %s399
  $region4: #{tpu_custom_call.1} parent=0 // loop_header_branch
    %26 = sbr.rel (%p24) target = $region8
  $region5: #{tpu_custom_call.1} parent=0 // loop_body
    %s28 = ssub.s32 %s23, 1
    %s29 = ssub.s32 %s23, 2
    %s30 = sadd.s32 %s23, 1
    %s31 = ssub.s32 %s23, %s30
    %p32 = scmp.eq.s32.totalorder %s31, 0
    %s34 = sadd.s32 %s33, 1
    %s35 = scalar_select %p32, %s33, %s34
    %p38 = pneg %p32
    %p39 = scmp.eq.s32.totalorder %s23, 3
    %p40 = por %p38, %p39
    %p41 = scmp.ne.s32.totalorder %s33, %s36
    %p42 = scmp.eq.s32.totalorder %s23, 0
    %p43 = por %p41, %p42
    %p44 = scmp.ne.s32.totalorder %s33, %s36
    %p45 = scmp.eq.s32.totalorder %s28, 3
    %p46 = por %p44, %p45
    %p47 = scmp.ne.s32.totalorder %s36, %s37
    %p48 = scmp.eq.s32.totalorder %s28, 0
    %p49 = por %p47, %p48
    %p50 = scmp.ne.s32.totalorder %s36, %s37
    %p51 = scmp.eq.s32.totalorder %s29, 3
    %p52 = por %p50, %p51
    %p54 = scmp.ne.s32.totalorder %s37, %s53
    %p55 = scmp.eq.s32.totalorder %s29, 0
    %p56 = por %p54, %p55
    %s58 = sadd.s32 %s57, 1
    %p61 = scmp.eq.s32.totalorder %s23, 3
    %p62 = scmp.ne.s32.totalorder %s57, %s59
    %p63 = scmp.eq.s32.totalorder %s23, 0
    %p64 = por %p62, %p63
    %p65 = scmp.ne.s32.totalorder %s57, %s59
    %p66 = scmp.eq.s32.totalorder %s28, 3
    %p67 = por %p65, %p66
    %p68 = scmp.ne.s32.totalorder %s59, %s60
    %p69 = scmp.eq.s32.totalorder %s28, 0
    %p70 = por %p68, %p69
    %p71 = scmp.ne.s32.totalorder %s59, %s60
    %p72 = scmp.eq.s32.totalorder %s29, 3
    %p73 = por %p71, %p72
    %p75 = scmp.ne.s32.totalorder %s60, %s74
    %p76 = scmp.eq.s32.totalorder %s29, 0
    %p77 = por %p75, %p76
    %s79 = sadd.s32 %s78, 1
    %p82 = scmp.eq.s32.totalorder %s23, 3
    %p83 = scmp.ne.s32.totalorder %s78, %s80
    %p84 = scmp.eq.s32.totalorder %s23, 0
    %p85 = por %p83, %p84
    %p86 = scmp.ne.s32.totalorder %s78, %s80
    %p87 = scmp.eq.s32.totalorder %s28, 3
    %p88 = por %p86, %p87
    %p89 = scmp.ne.s32.totalorder %s80, %s81
    %p90 = scmp.eq.s32.totalorder %s28, 0
    %p91 = por %p89, %p90
    %p92 = scmp.ne.s32.totalorder %s80, %s81
    %p93 = scmp.eq.s32.totalorder %s29, 3
    %p94 = por %p92, %p93
    %p96 = scmp.ne.s32.totalorder %s81, %s95
    %p97 = scmp.eq.s32.totalorder %s29, 0
    %p98 = por %p96, %p97
    %s100 = sadd.s32 %s99, 1
    %p103 = scmp.eq.s32.totalorder %s23, 3
    %p104 = scmp.ne.s32.totalorder %s99, %s101
    %p105 = scmp.eq.s32.totalorder %s23, 0
    %p106 = por %p104, %p105
    %p107 = scmp.ne.s32.totalorder %s99, %s101
    %p108 = scmp.eq.s32.totalorder %s28, 3
    %p109 = por %p107, %p108
    %p110 = scmp.ne.s32.totalorder %s101, %s102
    %p111 = scmp.eq.s32.totalorder %s28, 0
    %p112 = por %p110, %p111
    %p113 = scmp.ne.s32.totalorder %s101, %s102
    %p114 = scmp.eq.s32.totalorder %s29, 3
    %p115 = por %p113, %p114
    %p117 = scmp.ne.s32.totalorder %s102, %s116
    %p118 = scmp.eq.s32.totalorder %s29, 0
    %p119 = por %p117, %p118
    %s121 = sadd.s32 %s120, 1
    %p124 = scmp.eq.s32.totalorder %s23, 3
    %p125 = scmp.ne.s32.totalorder %s120, %s122
    %p126 = scmp.eq.s32.totalorder %s23, 0
    %p127 = por %p125, %p126
    %p128 = scmp.ne.s32.totalorder %s120, %s122
    %p129 = scmp.eq.s32.totalorder %s28, 3
    %p130 = por %p128, %p129
    %p131 = scmp.ne.s32.totalorder %s122, %s123
    %p132 = scmp.eq.s32.totalorder %s28, 0
    %p133 = por %p131, %p132
    %p134 = scmp.ne.s32.totalorder %s122, %s123
    %p135 = scmp.eq.s32.totalorder %s29, 3
    %p136 = por %p134, %p135
    %p138 = scmp.ne.s32.totalorder %s123, %s137
    %p139 = scmp.eq.s32.totalorder %s29, 0
    %p140 = por %p138, %p139
    %s142 = sadd.s32 %s141, 1
    %p145 = scmp.eq.s32.totalorder %s23, 3
    %p146 = scmp.ne.s32.totalorder %s141, %s143
    %p147 = scmp.eq.s32.totalorder %s23, 0
    %p148 = por %p146, %p147
    %p149 = scmp.ne.s32.totalorder %s141, %s143
    %p150 = scmp.eq.s32.totalorder %s28, 3
    %p151 = por %p149, %p150
    %p152 = scmp.ne.s32.totalorder %s143, %s144
    %p153 = scmp.eq.s32.totalorder %s28, 0
    %p154 = por %p152, %p153
    %p155 = scmp.ne.s32.totalorder %s143, %s144
    %p156 = scmp.eq.s32.totalorder %s29, 3
    %p157 = por %p155, %p156
    %p159 = scmp.ne.s32.totalorder %s144, %s158
    %p160 = scmp.eq.s32.totalorder %s29, 0
    %p161 = por %p159, %p160
    %s163 = sadd.s32 %s162, 1
    %p166 = scmp.eq.s32.totalorder %s23, 3
    %p167 = scmp.ne.s32.totalorder %s162, %s164
    %p168 = scmp.eq.s32.totalorder %s23, 0
    %p169 = por %p167, %p168
    %p170 = scmp.ne.s32.totalorder %s162, %s164
    %p171 = scmp.eq.s32.totalorder %s28, 3
    %p172 = por %p170, %p171
    %p173 = scmp.ne.s32.totalorder %s164, %s165
    %p174 = scmp.eq.s32.totalorder %s28, 0
    %p175 = por %p173, %p174
    %p176 = scmp.ne.s32.totalorder %s164, %s165
    %p177 = scmp.eq.s32.totalorder %s29, 3
    %p178 = por %p176, %p177
    %p180 = scmp.ne.s32.totalorder %s165, %s179
    %p181 = scmp.eq.s32.totalorder %s29, 0
    %p182 = por %p180, %p181
    %s184 = sadd.s32 %s183, 1
    %p187 = scmp.eq.s32.totalorder %s23, 3
    %p188 = scmp.ne.s32.totalorder %s183, %s185
    %p189 = scmp.eq.s32.totalorder %s23, 0
    %p190 = por %p188, %p189
    %p191 = scmp.ne.s32.totalorder %s183, %s185
    %p192 = scmp.eq.s32.totalorder %s28, 3
    %p193 = por %p191, %p192
    %p194 = scmp.ne.s32.totalorder %s185, %s186
    %p195 = scmp.eq.s32.totalorder %s28, 0
    %p196 = por %p194, %p195
    %p197 = scmp.ne.s32.totalorder %s185, %s186
    %p198 = scmp.eq.s32.totalorder %s29, 3
    %p199 = por %p197, %p198
    %p201 = scmp.ne.s32.totalorder %s186, %s200
    %p202 = scmp.eq.s32.totalorder %s29, 0
    %p203 = por %p201, %p202
    %s205 = sadd.s32 %s204, 1
    %p208 = scmp.eq.s32.totalorder %s23, 3
    %p209 = scmp.ne.s32.totalorder %s204, %s206
    %p210 = scmp.eq.s32.totalorder %s23, 0
    %p211 = por %p209, %p210
    %p212 = scmp.ne.s32.totalorder %s204, %s206
    %p213 = scmp.eq.s32.totalorder %s28, 3
    %p214 = por %p212, %p213
    %p215 = scmp.ne.s32.totalorder %s206, %s207
    %p216 = scmp.eq.s32.totalorder %s28, 0
    %p217 = por %p215, %p216
    %p218 = scmp.ne.s32.totalorder %s206, %s207
    %p219 = scmp.eq.s32.totalorder %s29, 3
    %p220 = por %p218, %p219
    %p222 = scmp.ne.s32.totalorder %s207, %s221
    %p223 = scmp.eq.s32.totalorder %s29, 0
    %p224 = por %p222, %p223
    %s226 = sadd.s32 %s225, 1
    %p229 = scmp.eq.s32.totalorder %s23, 3
    %p230 = scmp.ne.s32.totalorder %s225, %s227
    %p231 = scmp.eq.s32.totalorder %s23, 0
    %p232 = por %p230, %p231
    %p233 = scmp.ne.s32.totalorder %s225, %s227
    %p234 = scmp.eq.s32.totalorder %s28, 3
    %p235 = por %p233, %p234
    %p236 = scmp.ne.s32.totalorder %s227, %s228
    %p237 = scmp.eq.s32.totalorder %s28, 0
    %p238 = por %p236, %p237
    %p239 = scmp.ne.s32.totalorder %s227, %s228
    %p240 = scmp.eq.s32.totalorder %s29, 3
    %p241 = por %p239, %p240
    %p243 = scmp.ne.s32.totalorder %s228, %s242
    %p244 = scmp.eq.s32.totalorder %s29, 0
    %p245 = por %p243, %p244
    %s247 = sadd.s32 %s246, 1
    %p250 = scmp.eq.s32.totalorder %s23, 3
    %p251 = scmp.ne.s32.totalorder %s246, %s248
    %p252 = scmp.eq.s32.totalorder %s23, 0
    %p253 = por %p251, %p252
    %p254 = scmp.ne.s32.totalorder %s246, %s248
    %p255 = scmp.eq.s32.totalorder %s28, 3
    %p256 = por %p254, %p255
    %p257 = scmp.ne.s32.totalorder %s248, %s249
    %p258 = scmp.eq.s32.totalorder %s28, 0
    %p259 = por %p257, %p258
    %p260 = scmp.ne.s32.totalorder %s248, %s249
    %p261 = scmp.eq.s32.totalorder %s29, 3
    %p262 = por %p260, %p261
    %p264 = scmp.ne.s32.totalorder %s249, %s263
    %p265 = scmp.eq.s32.totalorder %s29, 0
    %p266 = por %p264, %p265
    %s268 = sadd.s32 %s267, 1
    %p271 = scmp.eq.s32.totalorder %s23, 3
    %p272 = scmp.ne.s32.totalorder %s267, %s269
    %p273 = scmp.eq.s32.totalorder %s23, 0
    %p274 = por %p272, %p273
    %p275 = scmp.ne.s32.totalorder %s267, %s269
    %p276 = scmp.eq.s32.totalorder %s28, 3
    %p277 = por %p275, %p276
    %p278 = scmp.ne.s32.totalorder %s269, %s270
    %p279 = scmp.eq.s32.totalorder %s28, 0
    %p280 = por %p278, %p279
    %p281 = scmp.ne.s32.totalorder %s269, %s270
    %p282 = scmp.eq.s32.totalorder %s29, 3
    %p283 = por %p281, %p282
    %p285 = scmp.ne.s32.totalorder %s270, %s284
    %p286 = scmp.eq.s32.totalorder %s29, 0
    %p287 = por %p285, %p286
    %s289 = sadd.s32 %s288, 1
    %p292 = scmp.eq.s32.totalorder %s23, 3
    %p293 = scmp.ne.s32.totalorder %s288, %s290
    %p294 = scmp.eq.s32.totalorder %s23, 0
    %p295 = por %p293, %p294
    %p296 = scmp.ne.s32.totalorder %s288, %s290
    %p297 = scmp.eq.s32.totalorder %s28, 3
    %p298 = por %p296, %p297
    %p299 = scmp.ne.s32.totalorder %s290, %s291
    %p300 = scmp.eq.s32.totalorder %s28, 0
    %p301 = por %p299, %p300
    %p302 = scmp.ne.s32.totalorder %s290, %s291
    %p303 = scmp.eq.s32.totalorder %s29, 3
    %p304 = por %p302, %p303
    %p306 = scmp.ne.s32.totalorder %s291, %s305
    %p307 = scmp.eq.s32.totalorder %s29, 0
    %p308 = por %p306, %p307
    %s310 = sadd.s32 %s309, 1
    %p313 = scmp.eq.s32.totalorder %s23, 3
    %p314 = scmp.ne.s32.totalorder %s309, %s311
    %p315 = scmp.eq.s32.totalorder %s23, 0
    %p316 = por %p314, %p315
    %p317 = scmp.ne.s32.totalorder %s309, %s311
    %p318 = scmp.eq.s32.totalorder %s28, 3
    %p319 = por %p317, %p318
    %p320 = scmp.ne.s32.totalorder %s311, %s312
    %p321 = scmp.eq.s32.totalorder %s28, 0
    %p322 = por %p320, %p321
    %p323 = scmp.ne.s32.totalorder %s311, %s312
    %p324 = scmp.eq.s32.totalorder %s29, 3
    %p325 = por %p323, %p324
    %p327 = scmp.ne.s32.totalorder %s312, %s326
    %p328 = scmp.eq.s32.totalorder %s29, 0
    %p329 = por %p327, %p328
    %s331 = sadd.s32 %s330, 1
    %p334 = scmp.eq.s32.totalorder %s23, 3
    %p335 = scmp.ne.s32.totalorder %s330, %s332
    %p336 = scmp.eq.s32.totalorder %s23, 0
    %p337 = por %p335, %p336
    %p338 = scmp.ne.s32.totalorder %s330, %s332
    %p339 = scmp.eq.s32.totalorder %s28, 3
    %p340 = por %p338, %p339
    %p341 = scmp.ne.s32.totalorder %s332, %s333
    %p342 = scmp.eq.s32.totalorder %s28, 0
    %p343 = por %p341, %p342
    %p344 = scmp.ne.s32.totalorder %s332, %s333
    %p345 = scmp.eq.s32.totalorder %s29, 3
    %p346 = por %p344, %p345
    %p348 = scmp.ne.s32.totalorder %s333, %s347
    %p349 = scmp.eq.s32.totalorder %s29, 0
    %p350 = por %p348, %p349
    %s352 = sadd.s32 %s351, 1
    %p355 = scmp.eq.s32.totalorder %s23, 3
    %p356 = scmp.ne.s32.totalorder %s351, %s353
    %p357 = scmp.eq.s32.totalorder %s23, 0
    %p358 = por %p356, %p357
    %p359 = scmp.ne.s32.totalorder %s351, %s353
    %p360 = scmp.eq.s32.totalorder %s28, 3
    %p361 = por %p359, %p360
    %p362 = scmp.ne.s32.totalorder %s353, %s354
    %p363 = scmp.eq.s32.totalorder %s28, 0
    %p364 = por %p362, %p363
    %p365 = scmp.ne.s32.totalorder %s353, %s354
    %p366 = scmp.eq.s32.totalorder %s29, 3
    %p367 = por %p365, %p366
    %p369 = scmp.ne.s32.totalorder %s354, %s368
    %p370 = scmp.eq.s32.totalorder %s29, 0
    %p371 = por %p369, %p370
    %s373 = sadd.s32 %s372, 1
    %p376 = scmp.eq.s32.totalorder %s23, 3
    %p377 = scmp.ne.s32.totalorder %s372, %s374
    %p378 = scmp.eq.s32.totalorder %s23, 0
    %p379 = por %p377, %p378
    %p380 = scmp.ne.s32.totalorder %s372, %s374
    %p381 = scmp.eq.s32.totalorder %s28, 3
    %p382 = por %p380, %p381
    %p383 = scmp.ne.s32.totalorder %s374, %s375
    %p384 = scmp.eq.s32.totalorder %s28, 0
    %p385 = por %p383, %p384
    %p386 = scmp.ne.s32.totalorder %s374, %s375
    %p387 = scmp.eq.s32.totalorder %s29, 3
    %p388 = por %p386, %p387
    %p390 = scmp.ne.s32.totalorder %s375, %s389
    %p391 = scmp.eq.s32.totalorder %s29, 0
    %p392 = por %p390, %p391
    %s393 = ssub.s32 %s23, %s30
    %p394 = scmp.eq.s32.totalorder %s393, 0
    %s396 = sadd.s32 %s395, 1
    %s397 = scalar_select %p394, %s395, %s396
    %p400 = pneg %p394
    %p401 = scmp.eq.s32.totalorder %s23, 3
    %p402 = por %p400, %p401
    %p403 = scmp.ne.s32.totalorder %s395, %s398
    %p404 = scmp.eq.s32.totalorder %s23, 0
    %p405 = por %p403, %p404
    %p406 = scmp.ne.s32.totalorder %s395, %s398
    %p407 = scmp.eq.s32.totalorder %s28, 3
    %p408 = por %p406, %p407
    %p409 = scmp.ne.s32.totalorder %s398, %s399
    %p410 = scmp.eq.s32.totalorder %s28, 0
    %p411 = por %p409, %p410
    %p412 = scmp.ne.s32.totalorder %s398, %s399
    %p413 = scmp.eq.s32.totalorder %s29, 3
    %p414 = por %p412, %p413
    %p416 = scmp.ne.s32.totalorder %s399, %s415
    %p417 = scmp.eq.s32.totalorder %s29, 0
    %p418 = por %p416, %p417
    %p419 = scmp.le.s32.totalorder 1, %s23
    %p420 = scmp.lt.s32.totalorder %s23, 5
    %p421 = pnand %p419, %p420
    %p422 = pneg %p421
    // Predicated region
    $region9: #{tpu_custom_call.1} parent=5 // pred_check
      _
    $region10: #{tpu_custom_call.1} parent=5 // pred_check_branch
      %424 = sbr.rel (%p421) target = $region12
    $region11: #{tpu_custom_call.1} parent=5 // pred_region
      %s425 = ssub.s32 %s23, 1
      // Predicated region
      $region13: #{tpu_custom_call.1} parent=11 // pred_check
        %p426 = pneg %p70
      $region14: #{tpu_custom_call.1} parent=11 // pred_check_branch
        %428 = sbr.rel (%p426) target = $region16
      $region15: #{tpu_custom_call.1} parent=11 // pred_region
        _
      $region16: #{tpu_custom_call.1} parent=11 // pred_fallthru
        _
      // Predicated region
      $region17: #{tpu_custom_call.1} parent=11 // pred_check
        %p429 = pneg %p91
      $region18: #{tpu_custom_call.1} parent=11 // pred_check_branch
        %431 = sbr.rel (%p429) target = $region20
      $region19: #{tpu_custom_call.1} parent=11 // pred_region
        _
      $region20: #{tpu_custom_call.1} parent=11 // pred_fallthru
        _
      // Predicated region
      $region21: #{tpu_custom_call.1} parent=11 // pred_check
        %p432 = pneg %p112
      $region22: #{tpu_custom_call.1} parent=11 // pred_check_branch
        %434 = sbr.rel (%p432) target = $region24
      $region23: #{tpu_custom_call.1} parent=11 // pred_region
        _
      $region24: #{tpu_custom_call.1} parent=11 // pred_fallthru
        _
      // Predicated region
      $region25: #{tpu_custom_call.1} parent=11 // pred_check
        %p435 = pneg %p133
      $region26: #{tpu_custom_call.1} parent=11 // pred_check_branch
        %437 = sbr.rel (%p435) target = $region28
      $region27: #{tpu_custom_call.1} parent=11 // pred_region
        _
      $region28: #{tpu_custom_call.1} parent=11 // pred_fallthru
        _
      // Predicated region
      $region29: #{tpu_custom_call.1} parent=11 // pred_check
        %p438 = pneg %p154
      $region30: #{tpu_custom_call.1} parent=11 // pred_check_branch
        %440 = sbr.rel (%p438) target = $region32
      $region31: #{tpu_custom_call.1} parent=11 // pred_region
        _
      $region32: #{tpu_custom_call.1} parent=11 // pred_fallthru
        _
      // Predicated region
      $region33: #{tpu_custom_call.1} parent=11 // pred_check
        %p441 = pneg %p175
      $region34: #{tpu_custom_call.1} parent=11 // pred_check_branch
        %443 = sbr.rel (%p441) target = $region36
      $region35: #{tpu_custom_call.1} parent=11 // pred_region
        _
      $region36: #{tpu_custom_call.1} parent=11 // pred_fallthru
        _
      // Predicated region
      $region37: #{tpu_custom_call.1} parent=11 // pred_check
        %p444 = pneg %p196
      $region38: #{tpu_custom_call.1} parent=11 // pred_check_branch
        %446 = sbr.rel (%p444) target = $region40
      $region39: #{tpu_custom_call.1} parent=11 // pred_region
        _
      $region40: #{tpu_custom_call.1} parent=11 // pred_fallthru
        _
      // Predicated region
      $region41: #{tpu_custom_call.1} parent=11 // pred_check
        %p447 = pneg %p217
      $region42: #{tpu_custom_call.1} parent=11 // pred_check_branch
        %449 = sbr.rel (%p447) target = $region44
      $region43: #{tpu_custom_call.1} parent=11 // pred_region
        _
      $region44: #{tpu_custom_call.1} parent=11 // pred_fallthru
        _
      // Predicated region
      $region45: #{tpu_custom_call.1} parent=11 // pred_check
        %p450 = pneg %p238
      $region46: #{tpu_custom_call.1} parent=11 // pred_check_branch
        %452 = sbr.rel (%p450) target = $region48
      $region47: #{tpu_custom_call.1} parent=11 // pred_region
        _
      $region48: #{tpu_custom_call.1} parent=11 // pred_fallthru
        _
      // Predicated region
      $region49: #{tpu_custom_call.1} parent=11 // pred_check
        %p453 = pneg %p259
      $region50: #{tpu_custom_call.1} parent=11 // pred_check_branch
        %455 = sbr.rel (%p453) target = $region52
      $region51: #{tpu_custom_call.1} parent=11 // pred_region
        _
      $region52: #{tpu_custom_call.1} parent=11 // pred_fallthru
        _
      // Predicated region
      $region53: #{tpu_custom_call.1} parent=11 // pred_check
        %p456 = pneg %p280
      $region54: #{tpu_custom_call.1} parent=11 // pred_check_branch
        %458 = sbr.rel (%p456) target = $region56
      $region55: #{tpu_custom_call.1} parent=11 // pred_region
        _
      $region56: #{tpu_custom_call.1} parent=11 // pred_fallthru
        _
      // Predicated region
      $region57: #{tpu_custom_call.1} parent=11 // pred_check
        %p459 = pneg %p301
      $region58: #{tpu_custom_call.1} parent=11 // pred_check_branch
        %461 = sbr.rel (%p459) target = $region60
      $region59: #{tpu_custom_call.1} parent=11 // pred_region
        _
      $region60: #{tpu_custom_call.1} parent=11 // pred_fallthru
        _
      // Predicated region
      $region61: #{tpu_custom_call.1} parent=11 // pred_check
        %p462 = pneg %p322
      $region62: #{tpu_custom_call.1} parent=11 // pred_check_branch
        %464 = sbr.rel (%p462) target = $region64
      $region63: #{tpu_custom_call.1} parent=11 // pred_region
        _
      $region64: #{tpu_custom_call.1} parent=11 // pred_fallthru
        _
      // Predicated region
      $region65: #{tpu_custom_call.1} parent=11 // pred_check
        %p465 = pneg %p343
      $region66: #{tpu_custom_call.1} parent=11 // pred_check_branch
        %467 = sbr.rel (%p465) target = $region68
      $region67: #{tpu_custom_call.1} parent=11 // pred_region
        _
      $region68: #{tpu_custom_call.1} parent=11 // pred_fallthru
        _
      // Predicated region
      $region69: #{tpu_custom_call.1} parent=11 // pred_check
        %p468 = pneg %p364
      $region70: #{tpu_custom_call.1} parent=11 // pred_check_branch
        %470 = sbr.rel (%p468) target = $region72
      $region71: #{tpu_custom_call.1} parent=11 // pred_region
        _
      $region72: #{tpu_custom_call.1} parent=11 // pred_fallthru
        _
      // Predicated region
      $region73: #{tpu_custom_call.1} parent=11 // pred_check
        %p471 = pneg %p385
      $region74: #{tpu_custom_call.1} parent=11 // pred_check_branch
        %473 = sbr.rel (%p471) target = $region76
      $region75: #{tpu_custom_call.1} parent=11 // pred_region
        _
      $region76: #{tpu_custom_call.1} parent=11 // pred_fallthru
        _
    $region12: #{tpu_custom_call.1} parent=5 // pred_fallthru
      _
    %p474 = scmp.lt.s32.totalorder %s23, 4
    // Predicated region
    $region77: #{tpu_custom_call.1} parent=5 // pred_check
      %p475 = pneg %p474
    $region78: #{tpu_custom_call.1} parent=5 // pred_check_branch
      %477 = sbr.rel (%p475) target = $region80
    $region79: #{tpu_custom_call.1} parent=5 // pred_region
      // Predicated region
      $region81: #{tpu_custom_call.1} parent=79 // pred_check
        %p478 = pneg %p43
      $region82: #{tpu_custom_call.1} parent=79 // pred_check_branch
        %480 = sbr.rel (%p478) target = $region84
      $region83: #{tpu_custom_call.1} parent=79 // pred_region
        %s481 = smul.u32 4, %s23
        %p482 = scmp.lt.s32.totalorder %s481, 15
        %s483 = scalar_select %p482, %s481, 15
        %s484 = smul.addr %s483, 8
        %s485 = scalar_lea.vmem %s0, %s484
        %s486 = smul.u32 4, %s23
      $region84: #{tpu_custom_call.1} parent=79 // pred_fallthru
        _
    $region80: #{tpu_custom_call.1} parent=5 // pred_fallthru
      _
    %p487 = scmp.le.s32.totalorder 1, %s23
    %p488 = scmp.lt.s32.totalorder %s23, 5
    %p489 = pnand %p487, %p488
    %p490 = pneg %p489
    // Predicated region
    $region85: #{tpu_custom_call.1} parent=5 // pred_check
      _
    $region86: #{tpu_custom_call.1} parent=5 // pred_check_branch
      %492 = sbr.rel (%p489) target = $region88
    $region87: #{tpu_custom_call.1} parent=5 // pred_region
      %s493 = ssub.s32 %s23, 1
      %s494 = smul.u32 4, %s28
      %p495 = scmp.lt.s32.totalorder %s494, 15
      %s496 = scalar_select %p495, %s494, 15
      %s497 = smul.addr %s496, 8
      %s498 = scalar_lea.vmem %s0, %s497
      %p499 = pneg %p49
      %p500 = pneg %p46
      %p501 = pneg %p70
      %p502 = pneg %p67
      %p503 = pneg %p91
      %p504 = pneg %p88
      %p505 = pneg %p112
      %p506 = pneg %p109
      %p507 = pneg %p133
      %p508 = pneg %p130
      %p509 = pneg %p154
      %p510 = pneg %p151
      %p511 = pneg %p175
      %p512 = pneg %p172
      %p513 = pneg %p196
      %p514 = pneg %p193
      %p515 = pneg %p217
      %p516 = pneg %p214
      %p517 = pneg %p238
      %p518 = pneg %p235
      %p519 = pneg %p259
      %p520 = pneg %p256
      %p521 = pneg %p280
      %p522 = pneg %p277
      %p523 = pneg %p301
      %p524 = pneg %p298
      %p525 = pneg %p322
      %p526 = pneg %p319
      %p527 = pneg %p343
      %p528 = pneg %p340
      %p529 = pneg %p364
      %p530 = pneg %p361
      %p531 = pneg %p385
      %p532 = pneg %p382
      %p533 = pneg %p411
      %p534 = pneg %p408
      %s535 = smul.u32 4, %s28
      %p536 = scmp.lt.s32.totalorder %s535, 15
      %s537 = scalar_select %p536, %s535, 15
      %s538 = smul.addr %s537, 8
      %s539 = scalar_lea.vmem %s17, %s538
      %s540 = smul.u32 4, %s28
      %p541 = scmp.lt.s32.totalorder %s540, 15
      %s542 = scalar_select %p541, %s540, 15
      %s543 = smul.addr %s542, 8
      %s544 = scalar_lea.vmem %s0, %s543
      %s545 = smul.u32 4, %s28
      %s546 = smul.u32 4, %s28
      %p547 = scmp.lt.s32.totalorder %s546, 15
      %s548 = scalar_select %p547, %s546, 15
      %s549 = smul.addr %s548, 8
      %s550 = scalar_lea.vmem %s17, %s549
      %s551 = smul.u32 4, %s28
      %v553 = vld [vmem:[%s544] sm:$0xff]
      %v554 = vld [vmem:[%s544 + $0x8] sm:$0xff]
      %v555 = vld [vmem:[%s544 + $0x10] sm:$0xff]
      %v556 = vld [vmem:[%s544 + $0x18] sm:$0xff]
      %v557 = vpack.c.bf16 %v554, %v553
      %v558 = vpack.c.bf16 %v556, %v555
      %v559 = vld [vmem:[%s1] sm:$0xf]
      %v560 = vld [vmem:[%s1 + $0x4] sm:$0xf]
      %v561 = vld [vmem:[%s1 + $0x8] sm:$0xf]
      %v562 = vld [vmem:[%s1 + $0xc] sm:$0xf]
      %v563 = vld [vmem:[%s2] sm:$0x1]
      %v565 = vperm.slane %v563, 0
      %v571 = vunpack.c.l.b16 %v559
      %v572 = vunpack.c.l.b16 %v560
      %v573 = vunpack.c.l.b16 %v561
      %v574 = vunpack.c.l.b16 %v562
      %v575 = vpack.c.b16 %v572, %v571
      %v576 = vpack.c.b16 %v574, %v573
      %vm579 = vcmask 261120
      %v581 = vsel %vm579, %v557, 0
      %v584 = vsel %vm579, %v558, 0
      %586 = vmatpush.bf16.msra.mxu0 0
      %587 = vmatpush.bf16.msra.mxu0 0
      %588 = vmatpush.bf16.msra.mxu0 0
      %589 = vmatpush.bf16.msra.mxu0 0
      %590 = vmatpush.bf16.msra.mxu0 0
      %591 = vmatpush.bf16.msra.mxu0 0
      %592 = vmatpush.bf16.msra.mxu0 %v576
      %593 = vmatpush.bf16.msra.mxu0 %v575
      %594 = vmatmul.bf16.gmra.mxu0 %v581
      %v595 = vpop.f32.mrf.mxu0
      %v596 = vadd.f32 %v565, %v595
      %v597 = vpop.f32.mrf.mxu0
      %v598 = vadd.f32 %v565, %v597
      %599 = vmatmul.bf16.gmra.mxu0 %v584
      %v600 = vpop.f32.mrf.mxu0
      %v601 = vadd.f32 %v565, %v600
      %v602 = vpop.f32.mrf.mxu0
      %v603 = vadd.f32 %v565, %v602
      %604 = vdwg.mxu0
      %v605 = vpack.c.bf16 %v596, %v596
      %v606 = vpack.c.bf16 %v598, %v598
      %v607 = vpack.c.bf16 %v601, %v601
      %v608 = vpack.c.bf16 %v603, %v603
      %v611 = vunpack.c.l.b16 %v605
      %v612 = vunpack.c.l.b16 %v606
      %v613 = vpack.c.b16 %v612, %v611
      %614 = vrot.lane.b32.xlu0 %v613, 96
      %v615 = vpop.permute.xlu0 %614
      %vm616 = vcmask 31744
      %v618 = vsel %vm616, %v613, 0
      %v621 = vsel %vm616, %v615, 0
      %623 = vmatpush.bf16.xpose.msra.mxu0 0
      %624 = vmatpush.bf16.xpose.msra.mxu0 0
      %625 = vmatpush.bf16.xpose.msra.mxu0 0
      %626 = vmatpush.bf16.xpose.msra.mxu0 0
      %627 = vmatpush.bf16.xpose.msra.mxu0 0
      %628 = vmatpush.bf16.xpose.msra.mxu0 0
      %629 = vmatpush.bf16.xpose.msra.mxu0 0
      %630 = vmatpush.bf16.xpose.msra.mxu0 %v621
      %631 = vmatmul.bf16.gmra.mxu0 %v618
      %v632 = vpop.f32.mrf.mxu0
      %v633 = vadd.f32 0.0, %v632
      %v634 = vpop.f32.mrf.mxu0
      %v635 = vadd.f32 0.0, %v634
      %636 = vdwg.mxu0
      %v639 = vunpack.c.l.b16 %v607
      %v640 = vunpack.c.l.b16 %v608
      %v641 = vpack.c.b16 %v640, %v639
      %642 = vrot.lane.b32.xlu0 %v641, 96
      %v643 = vpop.permute.xlu0 %642
      %v645 = vsel %vm616, %v641, 0
      %v648 = vsel %vm616, %v643, 0
      %650 = vmatpush.bf16.xpose.msra.mxu0 0
      %651 = vmatpush.bf16.xpose.msra.mxu0 0
      %652 = vmatpush.bf16.xpose.msra.mxu0 0
      %653 = vmatpush.bf16.xpose.msra.mxu0 0
      %654 = vmatpush.bf16.xpose.msra.mxu0 0
      %655 = vmatpush.bf16.xpose.msra.mxu0 0
      %656 = vmatpush.bf16.xpose.msra.mxu0 0
      %657 = vmatpush.bf16.xpose.msra.mxu0 %v648
      %658 = vmatmul.bf16.gmra.mxu0 %v645
      %v659 = vpop.f32.mrf.mxu0
      %v660 = vadd.f32 0.0, %v659
      %v661 = vpop.f32.mrf.mxu0
      %v662 = vadd.f32 0.0, %v661
      %663 = vdwg.mxu0
      %vm664 = vcmask 130048
      %v665 = vsel %vm664, %v633, -inf
      %666 = vmax.xlane.f32.xlu0 %v665
      %v667 = vpop.xlane.xlu0 %666
      %v668 = vsel %vm664, %v635, -inf
      %669 = vmax.xlane.f32.xlu0 %v668
      %v670 = vpop.xlane.xlu0 %669
      %v671 = vsel %vm664, %v660, -inf
      %672 = vmax.xlane.f32.xlu0 %v671
      %v673 = vpop.xlane.xlu0 %672
      %v674 = vsel %vm664, %v662, -inf
      %675 = vmax.xlane.f32.xlu0 %v674
      %v676 = vpop.xlane.xlu0 %675
      %v677 = vsub.f32 %v633, %v667
      %v678 = vsub.f32 %v635, %v670
      %v679 = vsub.f32 %v660, %v673
      %v680 = vsub.f32 %v662, %v676
      %v681 = vmul.f32 %v677, 1.442695
      %v682 = vpow.pop %v681
      %v683 = vmul.f32 %v678, 1.442695
      %v684 = vpow.pop %v683
      %v685 = vmul.f32 %v679, 1.442695
      %v686 = vpow.pop %v685
      %v687 = vmul.f32 %v680, 1.442695
      %v688 = vpow.pop %v687
      %v689 = vsel %vm664, %v682, 0.0
      %690 = vadd.xlane.f32.xlu0 %v689
      %v691 = vpop.xlane.xlu0 %690
      %v692 = vsel %vm664, %v684, 0.0
      %693 = vadd.xlane.f32.xlu0 %v692
      %v694 = vpop.xlane.xlu0 %693
      %v695 = vsel %vm664, %v686, 0.0
      %696 = vadd.xlane.f32.xlu0 %v695
      %v697 = vpop.xlane.xlu0 %696
      %v698 = vsel %vm664, %v688, 0.0
      %699 = vadd.xlane.f32.xlu0 %v698
      %v700 = vpop.xlane.xlu0 %699
      %v701 = vrcp.pop %v691
      %v702 = vrcp.pop %v694
      %v703 = vrcp.pop %v697
      %v704 = vrcp.pop %v700
      %v705 = vmul.f32 %v682, %v701
      %v706 = vmul.f32 %v684, %v702
      %v707 = vmul.f32 %v686, %v703
      %v708 = vmul.f32 %v688, %v704
      %v709 = vpack.c.bf16 %v705, %v705
      %v710 = vpack.c.bf16 %v706, %v706
      %v711 = vpack.c.bf16 %v707, %v707
      %v712 = vpack.c.bf16 %v708, %v708
      %v715 = vunpack.c.l.b16 %v709
      %v716 = vunpack.c.l.b16 %v710
      %v717 = vpack.c.b16 %v716, %v715
      %718 = vrot.lane.b32.xlu0 %v613, 64
      %v719 = vpop.permute.xlu0 %718
      %v722 = vsel %vm664, %v717, 0
      %724 = vmatpush.bf16.msra.mxu0 0
      %725 = vmatpush.bf16.msra.mxu0 0
      %726 = vmatpush.bf16.msra.mxu0 0
      %727 = vmatpush.bf16.msra.mxu0 0
      %728 = vmatpush.bf16.msra.mxu0 0
      %729 = vmatpush.bf16.msra.mxu0 0
      %730 = vmatpush.bf16.msra.mxu0 0
      %731 = vmatpush.bf16.msra.mxu0 %v719
      %732 = vmatmul.bf16.gmra.mxu0 %v722
      %v733 = vpop.f32.mrf.mxu0
      %v734 = vadd.f32 0.0, %v733
      %v735 = vpop.f32.mrf.mxu0
      %v736 = vadd.f32 0.0, %v735
      %737 = vdwg.mxu0
      %v740 = vunpack.c.l.b16 %v711
      %v741 = vunpack.c.l.b16 %v712
      %v742 = vpack.c.b16 %v741, %v740
      %743 = vrot.lane.b32.xlu0 %v641, 64
      %v744 = vpop.permute.xlu0 %743
      %v747 = vsel %vm664, %v742, 0
      %749 = vmatpush.bf16.msra.mxu0 0
      %750 = vmatpush.bf16.msra.mxu0 0
      %751 = vmatpush.bf16.msra.mxu0 0
      %752 = vmatpush.bf16.msra.mxu0 0
      %753 = vmatpush.bf16.msra.mxu0 0
      %754 = vmatpush.bf16.msra.mxu0 0
      %755 = vmatpush.bf16.msra.mxu0 0
      %756 = vmatpush.bf16.msra.mxu0 %v744
      %757 = vmatmul.bf16.gmra.mxu0 %v747
      %v758 = vpop.f32.mrf.mxu0
      %v759 = vadd.f32 0.0, %v758
      %v760 = vpop.f32.mrf.mxu0
      %v761 = vadd.f32 0.0, %v760
      %762 = vdwg.mxu0
      %763 = vrot.lane.b32.xlu0 %v613, 124
      %v764 = vpop.permute.xlu0 %763
      %765 = vrot.lane.b32.xlu0 %v613, 92
      %v766 = vpop.permute.xlu0 %765
      %v768 = vsel %vm616, %v764, 0
      %v771 = vsel %vm616, %v766, 0
      %773 = vmatpush.bf16.xpose.msra.mxu0 0
      %774 = vmatpush.bf16.xpose.msra.mxu0 0
      %775 = vmatpush.bf16.xpose.msra.mxu0 0
      %776 = vmatpush.bf16.xpose.msra.mxu0 0
      %777 = vmatpush.bf16.xpose.msra.mxu0 0
      %778 = vmatpush.bf16.xpose.msra.mxu0 0
      %779 = vmatpush.bf16.xpose.msra.mxu0 0
      %780 = vmatpush.bf16.xpose.msra.mxu0 %v771
      %781 = vmatmul.bf16.gmra.mxu0 %v768
      %v782 = vpop.f32.mrf.mxu0
      %v783 = vadd.f32 0.0, %v782
      %v784 = vpop.f32.mrf.mxu0
      %v785 = vadd.f32 0.0, %v784
      %786 = vdwg.mxu0
      %787 = vrot.lane.b32.xlu0 %v641, 124
      %v788 = vpop.permute.xlu0 %787
      %789 = vrot.lane.b32.xlu0 %v641, 92
      %v790 = vpop.permute.xlu0 %789
      %v792 = vsel %vm616, %v788, 0
      %v795 = vsel %vm616, %v790, 0
      %797 = vmatpush.bf16.xpose.msra.mxu0 0
      %798 = vmatpush.bf16.xpose.msra.mxu0 0
      %799 = vmatpush.bf16.xpose.msra.mxu0 0
      %800 = vmatpush.bf16.xpose.msra.mxu0 0
      %801 = vmatpush.bf16.xpose.msra.mxu0 0
      %802 = vmatpush.bf16.xpose.msra.mxu0 0
      %803 = vmatpush.bf16.xpose.msra.mxu0 0
      %804 = vmatpush.bf16.xpose.msra.mxu0 %v795
      %805 = vmatmul.bf16.gmra.mxu0 %v792
      %v806 = vpop.f32.mrf.mxu0
      %v807 = vadd.f32 0.0, %v806
      %v808 = vpop.f32.mrf.mxu0
      %v809 = vadd.f32 0.0, %v808
      %810 = vdwg.mxu0
      %v811 = vsel %vm664, %v783, -inf
      %812 = vmax.xlane.f32.xlu0 %v811
      %v813 = vpop.xlane.xlu0 %812
      %v814 = vsel %vm664, %v785, -inf
      %815 = vmax.xlane.f32.xlu0 %v814
      %v816 = vpop.xlane.xlu0 %815
      %v817 = vsel %vm664, %v807, -inf
      %818 = vmax.xlane.f32.xlu0 %v817
      %v819 = vpop.xlane.xlu0 %818
      %v820 = vsel %vm664, %v809, -inf
      %821 = vmax.xlane.f32.xlu0 %v820
      %v822 = vpop.xlane.xlu0 %821
      %v823 = vsub.f32 %v783, %v813
      %v824 = vsub.f32 %v785, %v816
      %v825 = vsub.f32 %v807, %v819
      %v826 = vsub.f32 %v809, %v822
      %v827 = vmul.f32 %v823, 1.442695
      %v828 = vpow.pop %v827
      %v829 = vmul.f32 %v824, 1.442695
      %v830 = vpow.pop %v829
      %v831 = vmul.f32 %v825, 1.442695
      %v832 = vpow.pop %v831
      %v833 = vmul.f32 %v826, 1.442695
      %v834 = vpow.pop %v833
      %v835 = vsel %vm664, %v828, 0.0
      %836 = vadd.xlane.f32.xlu0 %v835
      %v837 = vpop.xlane.xlu0 %836
      %v838 = vsel %vm664, %v830, 0.0
      %839 = vadd.xlane.f32.xlu0 %v838
      %v840 = vpop.xlane.xlu0 %839
      %v841 = vsel %vm664, %v832, 0.0
      %842 = vadd.xlane.f32.xlu0 %v841
      %v843 = vpop.xlane.xlu0 %842
      %v844 = vsel %vm664, %v834, 0.0
      %845 = vadd.xlane.f32.xlu0 %v844
      %v846 = vpop.xlane.xlu0 %845
      %v847 = vrcp.pop %v837
      %v848 = vrcp.pop %v840
      %v849 = vrcp.pop %v843
      %v850 = vrcp.pop %v846
      %v851 = vmul.f32 %v828, %v847
      %v852 = vmul.f32 %v830, %v848
      %v853 = vmul.f32 %v832, %v849
      %v854 = vmul.f32 %v834, %v850
      %v855 = vpack.c.bf16 %v851, %v851
      %v856 = vpack.c.bf16 %v852, %v852
      %v857 = vpack.c.bf16 %v853, %v853
      %v858 = vpack.c.bf16 %v854, %v854
      %v861 = vunpack.c.l.b16 %v855
      %v862 = vunpack.c.l.b16 %v856
      %v863 = vpack.c.b16 %v862, %v861
      %864 = vrot.lane.b32.xlu0 %v613, 60
      %v865 = vpop.permute.xlu0 %864
      %v868 = vsel %vm664, %v863, 0
      %870 = vmatpush.bf16.msra.mxu0 0
      %871 = vmatpush.bf16.msra.mxu0 0
      %872 = vmatpush.bf16.msra.mxu0 0
      %873 = vmatpush.bf16.msra.mxu0 0
      %874 = vmatpush.bf16.msra.mxu0 0
      %875 = vmatpush.bf16.msra.mxu0 0
      %876 = vmatpush.bf16.msra.mxu0 0
      %877 = vmatpush.bf16.msra.mxu0 %v865
      %878 = vmatmul.bf16.gmra.mxu0 %v868
      %v879 = vpop.f32.mrf.mxu0
      %v880 = vadd.f32 0.0, %v879
      %v881 = vpop.f32.mrf.mxu0
      %v882 = vadd.f32 0.0, %v881
      %883 = vdwg.mxu0
      %v886 = vunpack.c.l.b16 %v857
      %v887 = vunpack.c.l.b16 %v858
      %v888 = vpack.c.b16 %v887, %v886
      %889 = vrot.lane.b32.xlu0 %v641, 60
      %v890 = vpop.permute.xlu0 %889
      %v893 = vsel %vm664, %v888, 0
      %895 = vmatpush.bf16.msra.mxu0 0
      %896 = vmatpush.bf16.msra.mxu0 0
      %897 = vmatpush.bf16.msra.mxu0 0
      %898 = vmatpush.bf16.msra.mxu0 0
      %899 = vmatpush.bf16.msra.mxu0 0
      %900 = vmatpush.bf16.msra.mxu0 0
      %901 = vmatpush.bf16.msra.mxu0 0
      %902 = vmatpush.bf16.msra.mxu0 %v890
      %903 = vmatmul.bf16.gmra.mxu0 %v893
      %v904 = vpop.f32.mrf.mxu0
      %v905 = vadd.f32 0.0, %v904
      %v906 = vpop.f32.mrf.mxu0
      %v907 = vadd.f32 0.0, %v906
      %908 = vdwg.mxu0
      %909 = vrot.lane.b32.xlu0 %v613, 120
      %v910 = vpop.permute.xlu0 %909
      %911 = vrot.lane.b32.xlu0 %v613, 88
      %v912 = vpop.permute.xlu0 %911
      %v914 = vsel %vm616, %v910, 0
      %v917 = vsel %vm616, %v912, 0
      %919 = vmatpush.bf16.xpose.msra.mxu0 0
      %920 = vmatpush.bf16.xpose.msra.mxu0 0
      %921 = vmatpush.bf16.xpose.msra.mxu0 0
      %922 = vmatpush.bf16.xpose.msra.mxu0 0
      %923 = vmatpush.bf16.xpose.msra.mxu0 0
      %924 = vmatpush.bf16.xpose.msra.mxu0 0
      %925 = vmatpush.bf16.xpose.msra.mxu0 0
      %926 = vmatpush.bf16.xpose.msra.mxu0 %v917
      %927 = vmatmul.bf16.gmra.mxu0 %v914
      %v928 = vpop.f32.mrf.mxu0
      %v929 = vadd.f32 0.0, %v928
      %v930 = vpop.f32.mrf.mxu0
      %v931 = vadd.f32 0.0, %v930
      %932 = vdwg.mxu0
      %933 = vrot.lane.b32.xlu0 %v641, 120
      %v934 = vpop.permute.xlu0 %933
      %935 = vrot.lane.b32.xlu0 %v641, 88
      %v936 = vpop.permute.xlu0 %935
      %v938 = vsel %vm616, %v934, 0
      %v941 = vsel %vm616, %v936, 0
      %943 = vmatpush.bf16.xpose.msra.mxu0 0
      %944 = vmatpush.bf16.xpose.msra.mxu0 0
      %945 = vmatpush.bf16.xpose.msra.mxu0 0
      %946 = vmatpush.bf16.xpose.msra.mxu0 0
      %947 = vmatpush.bf16.xpose.msra.mxu0 0
      %948 = vmatpush.bf16.xpose.msra.mxu0 0
      %949 = vmatpush.bf16.xpose.msra.mxu0 0
      %950 = vmatpush.bf16.xpose.msra.mxu0 %v941
      %951 = vmatmul.bf16.gmra.mxu0 %v938
      %v952 = vpop.f32.mrf.mxu0
      %v953 = vadd.f32 0.0, %v952
      %v954 = vpop.f32.mrf.mxu0
      %v955 = vadd.f32 0.0, %v954
      %956 = vdwg.mxu0
      %v957 = vsel %vm664, %v929, -inf
      %958 = vmax.xlane.f32.xlu0 %v957
      %v959 = vpop.xlane.xlu0 %958
      %v960 = vsel %vm664, %v931, -inf
      %961 = vmax.xlane.f32.xlu0 %v960
      %v962 = vpop.xlane.xlu0 %961
      %v963 = vsel %vm664, %v953, -inf
      %964 = vmax.xlane.f32.xlu0 %v963
      %v965 = vpop.xlane.xlu0 %964
      %v966 = vsel %vm664, %v955, -inf
      %967 = vmax.xlane.f32.xlu0 %v966
      %v968 = vpop.xlane.xlu0 %967
      %v969 = vsub.f32 %v929, %v959
      %v970 = vsub.f32 %v931, %v962
      %v971 = vsub.f32 %v953, %v965
      %v972 = vsub.f32 %v955, %v968
      %v973 = vmul.f32 %v969, 1.442695
      %v974 = vpow.pop %v973
      %v975 = vmul.f32 %v970, 1.442695
      %v976 = vpow.pop %v975
      %v977 = vmul.f32 %v971, 1.442695
      %v978 = vpow.pop %v977
      %v979 = vmul.f32 %v972, 1.442695
      %v980 = vpow.pop %v979
      %v981 = vsel %vm664, %v974, 0.0
      %982 = vadd.xlane.f32.xlu0 %v981
      %v983 = vpop.xlane.xlu0 %982
      %v984 = vsel %vm664, %v976, 0.0
      %985 = vadd.xlane.f32.xlu0 %v984
      %v986 = vpop.xlane.xlu0 %985
      %v987 = vsel %vm664, %v978, 0.0
      %988 = vadd.xlane.f32.xlu0 %v987
      %v989 = vpop.xlane.xlu0 %988
      %v990 = vsel %vm664, %v980, 0.0
      %991 = vadd.xlane.f32.xlu0 %v990
      %v992 = vpop.xlane.xlu0 %991
      %v993 = vrcp.pop %v983
      %v994 = vrcp.pop %v986
      %v995 = vrcp.pop %v989
      %v996 = vrcp.pop %v992
      %v997 = vmul.f32 %v974, %v993
      %v998 = vmul.f32 %v976, %v994
      %v999 = vmul.f32 %v978, %v995
      %v1000 = vmul.f32 %v980, %v996
      %v1001 = vpack.c.bf16 %v997, %v997
      %v1002 = vpack.c.bf16 %v998, %v998
      %v1003 = vpack.c.bf16 %v999, %v999
      %v1004 = vpack.c.bf16 %v1000, %v1000
      %v1007 = vunpack.c.l.b16 %v1001
      %v1008 = vunpack.c.l.b16 %v1002
      %v1009 = vpack.c.b16 %v1008, %v1007
      %1010 = vrot.lane.b32.xlu0 %v613, 56
      %v1011 = vpop.permute.xlu0 %1010
      %v1014 = vsel %vm664, %v1009, 0
      %1016 = vmatpush.bf16.msra.mxu0 0
      %1017 = vmatpush.bf16.msra.mxu0 0
      %1018 = vmatpush.bf16.msra.mxu0 0
      %1019 = vmatpush.bf16.msra.mxu0 0
      %1020 = vmatpush.bf16.msra.mxu0 0
      %1021 = vmatpush.bf16.msra.mxu0 0
      %1022 = vmatpush.bf16.msra.mxu0 0
      %1023 = vmatpush.bf16.msra.mxu0 %v1011
      %1024 = vmatmul.bf16.gmra.mxu0 %v1014
      %v1025 = vpop.f32.mrf.mxu0
      %v1026 = vadd.f32 0.0, %v1025
      %v1027 = vpop.f32.mrf.mxu0
      %v1028 = vadd.f32 0.0, %v1027
      %1029 = vdwg.mxu0
      %v1032 = vunpack.c.l.b16 %v1003
      %v1033 = vunpack.c.l.b16 %v1004
      %v1034 = vpack.c.b16 %v1033, %v1032
      %1035 = vrot.lane.b32.xlu0 %v641, 56
      %v1036 = vpop.permute.xlu0 %1035
      %v1039 = vsel %vm664, %v1034, 0
      %1041 = vmatpush.bf16.msra.mxu0 0
      %1042 = vmatpush.bf16.msra.mxu0 0
      %1043 = vmatpush.bf16.msra.mxu0 0
      %1044 = vmatpush.bf16.msra.mxu0 0
      %1045 = vmatpush.bf16.msra.mxu0 0
      %1046 = vmatpush.bf16.msra.mxu0 0
      %1047 = vmatpush.bf16.msra.mxu0 0
      %1048 = vmatpush.bf16.msra.mxu0 %v1036
      %1049 = vmatmul.bf16.gmra.mxu0 %v1039
      %v1050 = vpop.f32.mrf.mxu0
      %v1051 = vadd.f32 0.0, %v1050
      %v1052 = vpop.f32.mrf.mxu0
      %v1053 = vadd.f32 0.0, %v1052
      %1054 = vdwg.mxu0
      %1055 = vrot.lane.b32.xlu0 %v613, 116
      %v1056 = vpop.permute.xlu0 %1055
      %1057 = vrot.lane.b32.xlu0 %v613, 84
      %v1058 = vpop.permute.xlu0 %1057
      %v1060 = vsel %vm616, %v1056, 0
      %v1063 = vsel %vm616, %v1058, 0
      %1065 = vmatpush.bf16.xpose.msra.mxu0 0
      %1066 = vmatpush.bf16.xpose.msra.mxu0 0
      %1067 = vmatpush.bf16.xpose.msra.mxu0 0
      %1068 = vmatpush.bf16.xpose.msra.mxu0 0
      %1069 = vmatpush.bf16.xpose.msra.mxu0 0
      %1070 = vmatpush.bf16.xpose.msra.mxu0 0
      %1071 = vmatpush.bf16.xpose.msra.mxu0 0
      %1072 = vmatpush.bf16.xpose.msra.mxu0 %v1063
      %1073 = vmatmul.bf16.gmra.mxu0 %v1060
      %v1074 = vpop.f32.mrf.mxu0
      %v1075 = vadd.f32 0.0, %v1074
      %v1076 = vpop.f32.mrf.mxu0
      %v1077 = vadd.f32 0.0, %v1076
      %1078 = vdwg.mxu0
      %1079 = vrot.lane.b32.xlu0 %v641, 116
      %v1080 = vpop.permute.xlu0 %1079
      %1081 = vrot.lane.b32.xlu0 %v641, 84
      %v1082 = vpop.permute.xlu0 %1081
      %v1084 = vsel %vm616, %v1080, 0
      %v1087 = vsel %vm616, %v1082, 0
      %1089 = vmatpush.bf16.xpose.msra.mxu0 0
      %1090 = vmatpush.bf16.xpose.msra.mxu0 0
      %1091 = vmatpush.bf16.xpose.msra.mxu0 0
      %1092 = vmatpush.bf16.xpose.msra.mxu0 0
      %1093 = vmatpush.bf16.xpose.msra.mxu0 0
      %1094 = vmatpush.bf16.xpose.msra.mxu0 0
      %1095 = vmatpush.bf16.xpose.msra.mxu0 0
      %1096 = vmatpush.bf16.xpose.msra.mxu0 %v1087
      %1097 = vmatmul.bf16.gmra.mxu0 %v1084
      %v1098 = vpop.f32.mrf.mxu0
      %v1099 = vadd.f32 0.0, %v1098
      %v1100 = vpop.f32.mrf.mxu0
      %v1101 = vadd.f32 0.0, %v1100
      %1102 = vdwg.mxu0
      %v1103 = vsel %vm664, %v1075, -inf
      %1104 = vmax.xlane.f32.xlu0 %v1103
      %v1105 = vpop.xlane.xlu0 %1104
      %v1106 = vsel %vm664, %v1077, -inf
      %1107 = vmax.xlane.f32.xlu0 %v1106
      %v1108 = vpop.xlane.xlu0 %1107
      %v1109 = vsel %vm664, %v1099, -inf
      %1110 = vmax.xlane.f32.xlu0 %v1109
      %v1111 = vpop.xlane.xlu0 %1110
      %v1112 = vsel %vm664, %v1101, -inf
      %1113 = vmax.xlane.f32.xlu0 %v1112
      %v1114 = vpop.xlane.xlu0 %1113
      %v1115 = vsub.f32 %v1075, %v1105
      %v1116 = vsub.f32 %v1077, %v1108
      %v1117 = vsub.f32 %v1099, %v1111
      %v1118 = vsub.f32 %v1101, %v1114
      %v1119 = vmul.f32 %v1115, 1.442695
      %v1120 = vpow.pop %v1119
      %v1121 = vmul.f32 %v1116, 1.442695
      %v1122 = vpow.pop %v1121
      %v1123 = vmul.f32 %v1117, 1.442695
      %v1124 = vpow.pop %v1123
      %v1125 = vmul.f32 %v1118, 1.442695
      %v1126 = vpow.pop %v1125
      %v1127 = vsel %vm664, %v1120, 0.0
      %1128 = vadd.xlane.f32.xlu0 %v1127
      %v1129 = vpop.xlane.xlu0 %1128
      %v1130 = vsel %vm664, %v1122, 0.0
      %1131 = vadd.xlane.f32.xlu0 %v1130
      %v1132 = vpop.xlane.xlu0 %1131
      %v1133 = vsel %vm664, %v1124, 0.0
      %1134 = vadd.xlane.f32.xlu0 %v1133
      %v1135 = vpop.xlane.xlu0 %1134
      %v1136 = vsel %vm664, %v1126, 0.0
      %1137 = vadd.xlane.f32.xlu0 %v1136
      %v1138 = vpop.xlane.xlu0 %1137
      %v1139 = vrcp.pop %v1129
      %v1140 = vrcp.pop %v1132
      %v1141 = vrcp.pop %v1135
      %v1142 = vrcp.pop %v1138
      %v1143 = vmul.f32 %v1120, %v1139
      %v1144 = vmul.f32 %v1122, %v1140
      %v1145 = vmul.f32 %v1124, %v1141
      %v1146 = vmul.f32 %v1126, %v1142
      %v1147 = vpack.c.bf16 %v1143, %v1143
      %v1148 = vpack.c.bf16 %v1144, %v1144
      %v1149 = vpack.c.bf16 %v1145, %v1145
      %v1150 = vpack.c.bf16 %v1146, %v1146
      %v1153 = vunpack.c.l.b16 %v1147
      %v1154 = vunpack.c.l.b16 %v1148
      %v1155 = vpack.c.b16 %v1154, %v1153
      %1156 = vrot.lane.b32.xlu0 %v613, 52
      %v1157 = vpop.permute.xlu0 %1156
      %v1160 = vsel %vm664, %v1155, 0
      %1162 = vmatpush.bf16.msra.mxu0 0
      %1163 = vmatpush.bf16.msra.mxu0 0
      %1164 = vmatpush.bf16.msra.mxu0 0
      %1165 = vmatpush.bf16.msra.mxu0 0
      %1166 = vmatpush.bf16.msra.mxu0 0
      %1167 = vmatpush.bf16.msra.mxu0 0
      %1168 = vmatpush.bf16.msra.mxu0 0
      %1169 = vmatpush.bf16.msra.mxu0 %v1157
      %1170 = vmatmul.bf16.gmra.mxu0 %v1160
      %v1171 = vpop.f32.mrf.mxu0
      %v1172 = vadd.f32 0.0, %v1171
      %v1173 = vpop.f32.mrf.mxu0
      %v1174 = vadd.f32 0.0, %v1173
      %1175 = vdwg.mxu0
      %v1178 = vunpack.c.l.b16 %v1149
      %v1179 = vunpack.c.l.b16 %v1150
      %v1180 = vpack.c.b16 %v1179, %v1178
      %1181 = vrot.lane.b32.xlu0 %v641, 52
      %v1182 = vpop.permute.xlu0 %1181
      %v1185 = vsel %vm664, %v1180, 0
      %1187 = vmatpush.bf16.msra.mxu0 0
      %1188 = vmatpush.bf16.msra.mxu0 0
      %1189 = vmatpush.bf16.msra.mxu0 0
      %1190 = vmatpush.bf16.msra.mxu0 0
      %1191 = vmatpush.bf16.msra.mxu0 0
      %1192 = vmatpush.bf16.msra.mxu0 0
      %1193 = vmatpush.bf16.msra.mxu0 0
      %1194 = vmatpush.bf16.msra.mxu0 %v1182
      %1195 = vmatmul.bf16.gmra.mxu0 %v1185
      %v1196 = vpop.f32.mrf.mxu0
      %v1197 = vadd.f32 0.0, %v1196
      %v1198 = vpop.f32.mrf.mxu0
      %v1199 = vadd.f32 0.0, %v1198
      %1200 = vdwg.mxu0
      %1201 = vrot.lane.b32.xlu0 %v613, 112
      %v1202 = vpop.permute.xlu0 %1201
      %1203 = vrot.lane.b32.xlu0 %v613, 80
      %v1204 = vpop.permute.xlu0 %1203
      %v1206 = vsel %vm616, %v1202, 0
      %v1209 = vsel %vm616, %v1204, 0
      %1211 = vmatpush.bf16.xpose.msra.mxu0 0
      %1212 = vmatpush.bf16.xpose.msra.mxu0 0
      %1213 = vmatpush.bf16.xpose.msra.mxu0 0
      %1214 = vmatpush.bf16.xpose.msra.mxu0 0
      %1215 = vmatpush.bf16.xpose.msra.mxu0 0
      %1216 = vmatpush.bf16.xpose.msra.mxu0 0
      %1217 = vmatpush.bf16.xpose.msra.mxu0 0
      %1218 = vmatpush.bf16.xpose.msra.mxu0 %v1209
      %1219 = vmatmul.bf16.gmra.mxu0 %v1206
      %v1220 = vpop.f32.mrf.mxu0
      %v1221 = vadd.f32 0.0, %v1220
      %v1222 = vpop.f32.mrf.mxu0
      %v1223 = vadd.f32 0.0, %v1222
      %1224 = vdwg.mxu0
      %1225 = vrot.lane.b32.xlu0 %v641, 112
      %v1226 = vpop.permute.xlu0 %1225
      %1227 = vrot.lane.b32.xlu0 %v641, 80
      %v1228 = vpop.permute.xlu0 %1227
      %v1230 = vsel %vm616, %v1226, 0
      %v1233 = vsel %vm616, %v1228, 0
      %1235 = vmatpush.bf16.xpose.msra.mxu0 0
      %1236 = vmatpush.bf16.xpose.msra.mxu0 0
      %1237 = vmatpush.bf16.xpose.msra.mxu0 0
      %1238 = vmatpush.bf16.xpose.msra.mxu0 0
      %1239 = vmatpush.bf16.xpose.msra.mxu0 0
      %1240 = vmatpush.bf16.xpose.msra.mxu0 0
      %1241 = vmatpush.bf16.xpose.msra.mxu0 0
      %1242 = vmatpush.bf16.xpose.msra.mxu0 %v1233
      %1243 = vmatmul.bf16.gmra.mxu0 %v1230
      %v1244 = vpop.f32.mrf.mxu0
      %v1245 = vadd.f32 0.0, %v1244
      %v1246 = vpop.f32.mrf.mxu0
      %v1247 = vadd.f32 0.0, %v1246
      %1248 = vdwg.mxu0
      %v1249 = vsel %vm664, %v1221, -inf
      %1250 = vmax.xlane.f32.xlu0 %v1249
      %v1251 = vpop.xlane.xlu0 %1250
      %v1252 = vsel %vm664, %v1223, -inf
      %1253 = vmax.xlane.f32.xlu0 %v1252
      %v1254 = vpop.xlane.xlu0 %1253
      %v1255 = vsel %vm664, %v1245, -inf
      %1256 = vmax.xlane.f32.xlu0 %v1255
      %v1257 = vpop.xlane.xlu0 %1256
      %v1258 = vsel %vm664, %v1247, -inf
      %1259 = vmax.xlane.f32.xlu0 %v1258
      %v1260 = vpop.xlane.xlu0 %1259
      %v1261 = vsub.f32 %v1221, %v1251
      %v1262 = vsub.f32 %v1223, %v1254
      %v1263 = vsub.f32 %v1245, %v1257
      %v1264 = vsub.f32 %v1247, %v1260
      %v1265 = vmul.f32 %v1261, 1.442695
      %v1266 = vpow.pop %v1265
      %v1267 = vmul.f32 %v1262, 1.442695
      %v1268 = vpow.pop %v1267
      %v1269 = vmul.f32 %v1263, 1.442695
      %v1270 = vpow.pop %v1269
      %v1271 = vmul.f32 %v1264, 1.442695
      %v1272 = vpow.pop %v1271
      %v1273 = vsel %vm664, %v1266, 0.0
      %1274 = vadd.xlane.f32.xlu0 %v1273
      %v1275 = vpop.xlane.xlu0 %1274
      %v1276 = vsel %vm664, %v1268, 0.0
      %1277 = vadd.xlane.f32.xlu0 %v1276
      %v1278 = vpop.xlane.xlu0 %1277
      %v1279 = vsel %vm664, %v1270, 0.0
      %1280 = vadd.xlane.f32.xlu0 %v1279
      %v1281 = vpop.xlane.xlu0 %1280
      %v1282 = vsel %vm664, %v1272, 0.0
      %1283 = vadd.xlane.f32.xlu0 %v1282
      %v1284 = vpop.xlane.xlu0 %1283
      %v1285 = vrcp.pop %v1275
      %v1286 = vrcp.pop %v1278
      %v1287 = vrcp.pop %v1281
      %v1288 = vrcp.pop %v1284
      %v1289 = vmul.f32 %v1266, %v1285
      %v1290 = vmul.f32 %v1268, %v1286
      %v1291 = vmul.f32 %v1270, %v1287
      %v1292 = vmul.f32 %v1272, %v1288
      %v1293 = vpack.c.bf16 %v1289, %v1289
      %v1294 = vpack.c.bf16 %v1290, %v1290
      %v1295 = vpack.c.bf16 %v1291, %v1291
      %v1296 = vpack.c.bf16 %v1292, %v1292
      %v1299 = vunpack.c.l.b16 %v1293
      %v1300 = vunpack.c.l.b16 %v1294
      %v1301 = vpack.c.b16 %v1300, %v1299
      %1302 = vrot.lane.b32.xlu0 %v613, 48
      %v1303 = vpop.permute.xlu0 %1302
      %v1306 = vsel %vm664, %v1301, 0
      %1308 = vmatpush.bf16.msra.mxu0 0
      %1309 = vmatpush.bf16.msra.mxu0 0
      %1310 = vmatpush.bf16.msra.mxu0 0
      %1311 = vmatpush.bf16.msra.mxu0 0
      %1312 = vmatpush.bf16.msra.mxu0 0
      %1313 = vmatpush.bf16.msra.mxu0 0
      %1314 = vmatpush.bf16.msra.mxu0 0
      %1315 = vmatpush.bf16.msra.mxu0 %v1303
      %1316 = vmatmul.bf16.gmra.mxu0 %v1306
      %v1317 = vpop.f32.mrf.mxu0
      %v1318 = vadd.f32 0.0, %v1317
      %v1319 = vpop.f32.mrf.mxu0
      %v1320 = vadd.f32 0.0, %v1319
      %1321 = vdwg.mxu0
      %v1324 = vunpack.c.l.b16 %v1295
      %v1325 = vunpack.c.l.b16 %v1296
      %v1326 = vpack.c.b16 %v1325, %v1324
      %1327 = vrot.lane.b32.xlu0 %v641, 48
      %v1328 = vpop.permute.xlu0 %1327
      %v1331 = vsel %vm664, %v1326, 0
      %1333 = vmatpush.bf16.msra.mxu0 0
      %1334 = vmatpush.bf16.msra.mxu0 0
      %1335 = vmatpush.bf16.msra.mxu0 0
      %1336 = vmatpush.bf16.msra.mxu0 0
      %1337 = vmatpush.bf16.msra.mxu0 0
      %1338 = vmatpush.bf16.msra.mxu0 0
      %1339 = vmatpush.bf16.msra.mxu0 0
      %1340 = vmatpush.bf16.msra.mxu0 %v1328
      %1341 = vmatmul.bf16.gmra.mxu0 %v1331
      %v1342 = vpop.f32.mrf.mxu0
      %v1343 = vadd.f32 0.0, %v1342
      %v1344 = vpop.f32.mrf.mxu0
      %v1345 = vadd.f32 0.0, %v1344
      %1346 = vdwg.mxu0
      %1347 = vrot.lane.b32.xlu0 %v613, 108
      %v1348 = vpop.permute.xlu0 %1347
      %1349 = vrot.lane.b32.xlu0 %v613, 76
      %v1350 = vpop.permute.xlu0 %1349
      %v1352 = vsel %vm616, %v1348, 0
      %v1355 = vsel %vm616, %v1350, 0
      %1357 = vmatpush.bf16.xpose.msra.mxu0 0
      %1358 = vmatpush.bf16.xpose.msra.mxu0 0
      %1359 = vmatpush.bf16.xpose.msra.mxu0 0
      %1360 = vmatpush.bf16.xpose.msra.mxu0 0
      %1361 = vmatpush.bf16.xpose.msra.mxu0 0
      %1362 = vmatpush.bf16.xpose.msra.mxu0 0
      %1363 = vmatpush.bf16.xpose.msra.mxu0 0
      %1364 = vmatpush.bf16.xpose.msra.mxu0 %v1355
      %1365 = vmatmul.bf16.gmra.mxu0 %v1352
      %v1366 = vpop.f32.mrf.mxu0
      %v1367 = vadd.f32 0.0, %v1366
      %v1368 = vpop.f32.mrf.mxu0
      %v1369 = vadd.f32 0.0, %v1368
      %1370 = vdwg.mxu0
      %1371 = vrot.lane.b32.xlu0 %v641, 108
      %v1372 = vpop.permute.xlu0 %1371
      %1373 = vrot.lane.b32.xlu0 %v641, 76
      %v1374 = vpop.permute.xlu0 %1373
      %v1376 = vsel %vm616, %v1372, 0
      %v1379 = vsel %vm616, %v1374, 0
      %1381 = vmatpush.bf16.xpose.msra.mxu0 0
      %1382 = vmatpush.bf16.xpose.msra.mxu0 0
      %1383 = vmatpush.bf16.xpose.msra.mxu0 0
      %1384 = vmatpush.bf16.xpose.msra.mxu0 0
      %1385 = vmatpush.bf16.xpose.msra.mxu0 0
      %1386 = vmatpush.bf16.xpose.msra.mxu0 0
      %1387 = vmatpush.bf16.xpose.msra.mxu0 0
      %1388 = vmatpush.bf16.xpose.msra.mxu0 %v1379
      %1389 = vmatmul.bf16.gmra.mxu0 %v1376
      %v1390 = vpop.f32.mrf.mxu0
      %v1391 = vadd.f32 0.0, %v1390
      %v1392 = vpop.f32.mrf.mxu0
      %v1393 = vadd.f32 0.0, %v1392
      %1394 = vdwg.mxu0
      %v1395 = vsel %vm664, %v1367, -inf
      %1396 = vmax.xlane.f32.xlu0 %v1395
      %v1397 = vpop.xlane.xlu0 %1396
      %v1398 = vsel %vm664, %v1369, -inf
      %1399 = vmax.xlane.f32.xlu0 %v1398
      %v1400 = vpop.xlane.xlu0 %1399
      %v1401 = vsel %vm664, %v1391, -inf
      %1402 = vmax.xlane.f32.xlu0 %v1401
      %v1403 = vpop.xlane.xlu0 %1402
      %v1404 = vsel %vm664, %v1393, -inf
      %1405 = vmax.xlane.f32.xlu0 %v1404
      %v1406 = vpop.xlane.xlu0 %1405
      %v1407 = vsub.f32 %v1367, %v1397
      %v1408 = vsub.f32 %v1369, %v1400
      %v1409 = vsub.f32 %v1391, %v1403
      %v1410 = vsub.f32 %v1393, %v1406
      %v1411 = vmul.f32 %v1407, 1.442695
      %v1412 = vpow.pop %v1411
      %v1413 = vmul.f32 %v1408, 1.442695
      %v1414 = vpow.pop %v1413
      %v1415 = vmul.f32 %v1409, 1.442695
      %v1416 = vpow.pop %v1415
      %v1417 = vmul.f32 %v1410, 1.442695
      %v1418 = vpow.pop %v1417
      %v1419 = vsel %vm664, %v1412, 0.0
      %1420 = vadd.xlane.f32.xlu0 %v1419
      %v1421 = vpop.xlane.xlu0 %1420
      %v1422 = vsel %vm664, %v1414, 0.0
      %1423 = vadd.xlane.f32.xlu0 %v1422
      %v1424 = vpop.xlane.xlu0 %1423
      %v1425 = vsel %vm664, %v1416, 0.0
      %1426 = vadd.xlane.f32.xlu0 %v1425
      %v1427 = vpop.xlane.xlu0 %1426
      %v1428 = vsel %vm664, %v1418, 0.0
      %1429 = vadd.xlane.f32.xlu0 %v1428
      %v1430 = vpop.xlane.xlu0 %1429
      %v1431 = vrcp.pop %v1421
      %v1432 = vrcp.pop %v1424
      %v1433 = vrcp.pop %v1427
      %v1434 = vrcp.pop %v1430
      %v1435 = vmul.f32 %v1412, %v1431
      %v1436 = vmul.f32 %v1414, %v1432
      %v1437 = vmul.f32 %v1416, %v1433
      %v1438 = vmul.f32 %v1418, %v1434
      %v1439 = vpack.c.bf16 %v1435, %v1435
      %v1440 = vpack.c.bf16 %v1436, %v1436
      %v1441 = vpack.c.bf16 %v1437, %v1437
      %v1442 = vpack.c.bf16 %v1438, %v1438
      %v1445 = vunpack.c.l.b16 %v1439
      %v1446 = vunpack.c.l.b16 %v1440
      %v1447 = vpack.c.b16 %v1446, %v1445
      %1448 = vrot.lane.b32.xlu0 %v613, 44
      %v1449 = vpop.permute.xlu0 %1448
      %v1452 = vsel %vm664, %v1447, 0
      %1454 = vmatpush.bf16.msra.mxu0 0
      %1455 = vmatpush.bf16.msra.mxu0 0
      %1456 = vmatpush.bf16.msra.mxu0 0
      %1457 = vmatpush.bf16.msra.mxu0 0
      %1458 = vmatpush.bf16.msra.mxu0 0
      %1459 = vmatpush.bf16.msra.mxu0 0
      %1460 = vmatpush.bf16.msra.mxu0 0
      %1461 = vmatpush.bf16.msra.mxu0 %v1449
      %1462 = vmatmul.bf16.gmra.mxu0 %v1452
      %v1463 = vpop.f32.mrf.mxu0
      %v1464 = vadd.f32 0.0, %v1463
      %v1465 = vpop.f32.mrf.mxu0
      %v1466 = vadd.f32 0.0, %v1465
      %1467 = vdwg.mxu0
      %v1470 = vunpack.c.l.b16 %v1441
      %v1471 = vunpack.c.l.b16 %v1442
      %v1472 = vpack.c.b16 %v1471, %v1470
      %1473 = vrot.lane.b32.xlu0 %v641, 44
      %v1474 = vpop.permute.xlu0 %1473
      %v1477 = vsel %vm664, %v1472, 0
      %1479 = vmatpush.bf16.msra.mxu0 0
      %1480 = vmatpush.bf16.msra.mxu0 0
      %1481 = vmatpush.bf16.msra.mxu0 0
      %1482 = vmatpush.bf16.msra.mxu0 0
      %1483 = vmatpush.bf16.msra.mxu0 0
      %1484 = vmatpush.bf16.msra.mxu0 0
      %1485 = vmatpush.bf16.msra.mxu0 0
      %1486 = vmatpush.bf16.msra.mxu0 %v1474
      %1487 = vmatmul.bf16.gmra.mxu0 %v1477
      %v1488 = vpop.f32.mrf.mxu0
      %v1489 = vadd.f32 0.0, %v1488
      %v1490 = vpop.f32.mrf.mxu0
      %v1491 = vadd.f32 0.0, %v1490
      %1492 = vdwg.mxu0
      %1493 = vrot.lane.b32.xlu0 %v613, 104
      %v1494 = vpop.permute.xlu0 %1493
      %1495 = vrot.lane.b32.xlu0 %v613, 72
      %v1496 = vpop.permute.xlu0 %1495
      %v1498 = vsel %vm616, %v1494, 0
      %v1501 = vsel %vm616, %v1496, 0
      %1503 = vmatpush.bf16.xpose.msra.mxu0 0
      %1504 = vmatpush.bf16.xpose.msra.mxu0 0
      %1505 = vmatpush.bf16.xpose.msra.mxu0 0
      %1506 = vmatpush.bf16.xpose.msra.mxu0 0
      %1507 = vmatpush.bf16.xpose.msra.mxu0 0
      %1508 = vmatpush.bf16.xpose.msra.mxu0 0
      %1509 = vmatpush.bf16.xpose.msra.mxu0 0
      %1510 = vmatpush.bf16.xpose.msra.mxu0 %v1501
      %1511 = vmatmul.bf16.gmra.mxu0 %v1498
      %v1512 = vpop.f32.mrf.mxu0
      %v1513 = vadd.f32 0.0, %v1512
      %v1514 = vpop.f32.mrf.mxu0
      %v1515 = vadd.f32 0.0, %v1514
      %1516 = vdwg.mxu0
      %1517 = vrot.lane.b32.xlu0 %v641, 104
      %v1518 = vpop.permute.xlu0 %1517
      %1519 = vrot.lane.b32.xlu0 %v641, 72
      %v1520 = vpop.permute.xlu0 %1519
      %v1522 = vsel %vm616, %v1518, 0
      %v1525 = vsel %vm616, %v1520, 0
      %1527 = vmatpush.bf16.xpose.msra.mxu0 0
      %1528 = vmatpush.bf16.xpose.msra.mxu0 0
      %1529 = vmatpush.bf16.xpose.msra.mxu0 0
      %1530 = vmatpush.bf16.xpose.msra.mxu0 0
      %1531 = vmatpush.bf16.xpose.msra.mxu0 0
      %1532 = vmatpush.bf16.xpose.msra.mxu0 0
      %1533 = vmatpush.bf16.xpose.msra.mxu0 0
      %1534 = vmatpush.bf16.xpose.msra.mxu0 %v1525
      %1535 = vmatmul.bf16.gmra.mxu0 %v1522
      %v1536 = vpop.f32.mrf.mxu0
      %v1537 = vadd.f32 0.0, %v1536
      %v1538 = vpop.f32.mrf.mxu0
      %v1539 = vadd.f32 0.0, %v1538
      %1540 = vdwg.mxu0
      %v1541 = vsel %vm664, %v1513, -inf
      %1542 = vmax.xlane.f32.xlu0 %v1541
      %v1543 = vpop.xlane.xlu0 %1542
      %v1544 = vsel %vm664, %v1515, -inf
      %1545 = vmax.xlane.f32.xlu0 %v1544
      %v1546 = vpop.xlane.xlu0 %1545
      %v1547 = vsel %vm664, %v1537, -inf
      %1548 = vmax.xlane.f32.xlu0 %v1547
      %v1549 = vpop.xlane.xlu0 %1548
      %v1550 = vsel %vm664, %v1539, -inf
      %1551 = vmax.xlane.f32.xlu0 %v1550
      %v1552 = vpop.xlane.xlu0 %1551
      %v1553 = vsub.f32 %v1513, %v1543
      %v1554 = vsub.f32 %v1515, %v1546
      %v1555 = vsub.f32 %v1537, %v1549
      %v1556 = vsub.f32 %v1539, %v1552
      %v1557 = vmul.f32 %v1553, 1.442695
      %v1558 = vpow.pop %v1557
      %v1559 = vmul.f32 %v1554, 1.442695
      %v1560 = vpow.pop %v1559
      %v1561 = vmul.f32 %v1555, 1.442695
      %v1562 = vpow.pop %v1561
      %v1563 = vmul.f32 %v1556, 1.442695
      %v1564 = vpow.pop %v1563
      %v1565 = vsel %vm664, %v1558, 0.0
      %1566 = vadd.xlane.f32.xlu0 %v1565
      %v1567 = vpop.xlane.xlu0 %1566
      %v1568 = vsel %vm664, %v1560, 0.0
      %1569 = vadd.xlane.f32.xlu0 %v1568
      %v1570 = vpop.xlane.xlu0 %1569
      %v1571 = vsel %vm664, %v1562, 0.0
      %1572 = vadd.xlane.f32.xlu0 %v1571
      %v1573 = vpop.xlane.xlu0 %1572
      %v1574 = vsel %vm664, %v1564, 0.0
      %1575 = vadd.xlane.f32.xlu0 %v1574
      %v1576 = vpop.xlane.xlu0 %1575
      %v1577 = vrcp.pop %v1567
      %v1578 = vrcp.pop %v1570
      %v1579 = vrcp.pop %v1573
      %v1580 = vrcp.pop %v1576
      %v1581 = vmul.f32 %v1558, %v1577
      %v1582 = vmul.f32 %v1560, %v1578
      %v1583 = vmul.f32 %v1562, %v1579
      %v1584 = vmul.f32 %v1564, %v1580
      %v1585 = vpack.c.bf16 %v1581, %v1581
      %v1586 = vpack.c.bf16 %v1582, %v1582
      %v1587 = vpack.c.bf16 %v1583, %v1583
      %v1588 = vpack.c.bf16 %v1584, %v1584
      %v1591 = vunpack.c.l.b16 %v1585
      %v1592 = vunpack.c.l.b16 %v1586
      %v1593 = vpack.c.b16 %v1592, %v1591
      %1594 = vrot.lane.b32.xlu0 %v613, 40
      %v1595 = vpop.permute.xlu0 %1594
      %v1598 = vsel %vm664, %v1593, 0
      %1600 = vmatpush.bf16.msra.mxu0 0
      %1601 = vmatpush.bf16.msra.mxu0 0
      %1602 = vmatpush.bf16.msra.mxu0 0
      %1603 = vmatpush.bf16.msra.mxu0 0
      %1604 = vmatpush.bf16.msra.mxu0 0
      %1605 = vmatpush.bf16.msra.mxu0 0
      %1606 = vmatpush.bf16.msra.mxu0 0
      %1607 = vmatpush.bf16.msra.mxu0 %v1595
      %1608 = vmatmul.bf16.gmra.mxu0 %v1598
      %v1609 = vpop.f32.mrf.mxu0
      %v1610 = vadd.f32 0.0, %v1609
      %v1611 = vpop.f32.mrf.mxu0
      %v1612 = vadd.f32 0.0, %v1611
      %1613 = vdwg.mxu0
      %v1616 = vunpack.c.l.b16 %v1587
      %v1617 = vunpack.c.l.b16 %v1588
      %v1618 = vpack.c.b16 %v1617, %v1616
      %1619 = vrot.lane.b32.xlu0 %v641, 40
      %v1620 = vpop.permute.xlu0 %1619
      %v1623 = vsel %vm664, %v1618, 0
      %1625 = vmatpush.bf16.msra.mxu0 0
      %1626 = vmatpush.bf16.msra.mxu0 0
      %1627 = vmatpush.bf16.msra.mxu0 0
      %1628 = vmatpush.bf16.msra.mxu0 0
      %1629 = vmatpush.bf16.msra.mxu0 0
      %1630 = vmatpush.bf16.msra.mxu0 0
      %1631 = vmatpush.bf16.msra.mxu0 0
      %1632 = vmatpush.bf16.msra.mxu0 %v1620
      %1633 = vmatmul.bf16.gmra.mxu0 %v1623
      %v1634 = vpop.f32.mrf.mxu0
      %v1635 = vadd.f32 0.0, %v1634
      %v1636 = vpop.f32.mrf.mxu0
      %v1637 = vadd.f32 0.0, %v1636
      %1638 = vdwg.mxu0
      %1639 = vrot.lane.b32.xlu0 %v613, 100
      %v1640 = vpop.permute.xlu0 %1639
      %1641 = vrot.lane.b32.xlu0 %v613, 68
      %v1642 = vpop.permute.xlu0 %1641
      %v1644 = vsel %vm616, %v1640, 0
      %v1647 = vsel %vm616, %v1642, 0
      %1649 = vmatpush.bf16.xpose.msra.mxu0 0
      %1650 = vmatpush.bf16.xpose.msra.mxu0 0
      %1651 = vmatpush.bf16.xpose.msra.mxu0 0
      %1652 = vmatpush.bf16.xpose.msra.mxu0 0
      %1653 = vmatpush.bf16.xpose.msra.mxu0 0
      %1654 = vmatpush.bf16.xpose.msra.mxu0 0
      %1655 = vmatpush.bf16.xpose.msra.mxu0 0
      %1656 = vmatpush.bf16.xpose.msra.mxu0 %v1647
      %1657 = vmatmul.bf16.gmra.mxu0 %v1644
      %v1658 = vpop.f32.mrf.mxu0
      %v1659 = vadd.f32 0.0, %v1658
      %v1660 = vpop.f32.mrf.mxu0
      %v1661 = vadd.f32 0.0, %v1660
      %1662 = vdwg.mxu0
      %1663 = vrot.lane.b32.xlu0 %v641, 100
      %v1664 = vpop.permute.xlu0 %1663
      %1665 = vrot.lane.b32.xlu0 %v641, 68
      %v1666 = vpop.permute.xlu0 %1665
      %v1668 = vsel %vm616, %v1664, 0
      %v1671 = vsel %vm616, %v1666, 0
      %1673 = vmatpush.bf16.xpose.msra.mxu0 0
      %1674 = vmatpush.bf16.xpose.msra.mxu0 0
      %1675 = vmatpush.bf16.xpose.msra.mxu0 0
      %1676 = vmatpush.bf16.xpose.msra.mxu0 0
      %1677 = vmatpush.bf16.xpose.msra.mxu0 0
      %1678 = vmatpush.bf16.xpose.msra.mxu0 0
      %1679 = vmatpush.bf16.xpose.msra.mxu0 0
      %1680 = vmatpush.bf16.xpose.msra.mxu0 %v1671
      %1681 = vmatmul.bf16.gmra.mxu0 %v1668
      %v1682 = vpop.f32.mrf.mxu0
      %v1683 = vadd.f32 0.0, %v1682
      %v1684 = vpop.f32.mrf.mxu0
      %v1685 = vadd.f32 0.0, %v1684
      %1686 = vdwg.mxu0
      %v1687 = vsel %vm664, %v1659, -inf
      %1688 = vmax.xlane.f32.xlu0 %v1687
      %v1689 = vpop.xlane.xlu0 %1688
      %v1690 = vsel %vm664, %v1661, -inf
      %1691 = vmax.xlane.f32.xlu0 %v1690
      %v1692 = vpop.xlane.xlu0 %1691
      %v1693 = vsel %vm664, %v1683, -inf
      %1694 = vmax.xlane.f32.xlu0 %v1693
      %v1695 = vpop.xlane.xlu0 %1694
      %v1696 = vsel %vm664, %v1685, -inf
      %1697 = vmax.xlane.f32.xlu0 %v1696
      %v1698 = vpop.xlane.xlu0 %1697
      %v1699 = vsub.f32 %v1659, %v1689
      %v1700 = vsub.f32 %v1661, %v1692
      %v1701 = vsub.f32 %v1683, %v1695
      %v1702 = vsub.f32 %v1685, %v1698
      %v1703 = vmul.f32 %v1699, 1.442695
      %v1704 = vpow.pop %v1703
      %v1705 = vmul.f32 %v1700, 1.442695
      %v1706 = vpow.pop %v1705
      %v1707 = vmul.f32 %v1701, 1.442695
      %v1708 = vpow.pop %v1707
      %v1709 = vmul.f32 %v1702, 1.442695
      %v1710 = vpow.pop %v1709
      %v1711 = vsel %vm664, %v1704, 0.0
      %1712 = vadd.xlane.f32.xlu0 %v1711
      %v1713 = vpop.xlane.xlu0 %1712
      %v1714 = vsel %vm664, %v1706, 0.0
      %1715 = vadd.xlane.f32.xlu0 %v1714
      %v1716 = vpop.xlane.xlu0 %1715
      %v1717 = vsel %vm664, %v1708, 0.0
      %1718 = vadd.xlane.f32.xlu0 %v1717
      %v1719 = vpop.xlane.xlu0 %1718
      %v1720 = vsel %vm664, %v1710, 0.0
      %1721 = vadd.xlane.f32.xlu0 %v1720
      %v1722 = vpop.xlane.xlu0 %1721
      %v1723 = vrcp.pop %v1713
      %v1724 = vrcp.pop %v1716
      %v1725 = vrcp.pop %v1719
      %v1726 = vrcp.pop %v1722
      %v1727 = vmul.f32 %v1704, %v1723
      %v1728 = vmul.f32 %v1706, %v1724
      %v1729 = vmul.f32 %v1708, %v1725
      %v1730 = vmul.f32 %v1710, %v1726
      %v1731 = vpack.c.bf16 %v1727, %v1727
      %v1732 = vpack.c.bf16 %v1728, %v1728
      %v1733 = vpack.c.bf16 %v1729, %v1729
      %v1734 = vpack.c.bf16 %v1730, %v1730
      %v1737 = vunpack.c.l.b16 %v1731
      %v1738 = vunpack.c.l.b16 %v1732
      %v1739 = vpack.c.b16 %v1738, %v1737
      %1740 = vrot.lane.b32.xlu0 %v613, 36
      %v1741 = vpop.permute.xlu0 %1740
      %v1744 = vsel %vm664, %v1739, 0
      %1746 = vmatpush.bf16.msra.mxu0 0
      %1747 = vmatpush.bf16.msra.mxu0 0
      %1748 = vmatpush.bf16.msra.mxu0 0
      %1749 = vmatpush.bf16.msra.mxu0 0
      %1750 = vmatpush.bf16.msra.mxu0 0
      %1751 = vmatpush.bf16.msra.mxu0 0
      %1752 = vmatpush.bf16.msra.mxu0 0
      %1753 = vmatpush.bf16.msra.mxu0 %v1741
      %1754 = vmatmul.bf16.gmra.mxu0 %v1744
      %v1755 = vpop.f32.mrf.mxu0
      %v1756 = vadd.f32 0.0, %v1755
      %v1757 = vpop.f32.mrf.mxu0
      %v1758 = vadd.f32 0.0, %v1757
      %1759 = vdwg.mxu0
      %v1762 = vunpack.c.l.b16 %v1733
      %v1763 = vunpack.c.l.b16 %v1734
      %v1764 = vpack.c.b16 %v1763, %v1762
      %1765 = vrot.lane.b32.xlu0 %v641, 36
      %v1766 = vpop.permute.xlu0 %1765
      %v1769 = vsel %vm664, %v1764, 0
      %1771 = vmatpush.bf16.msra.mxu0 0
      %1772 = vmatpush.bf16.msra.mxu0 0
      %1773 = vmatpush.bf16.msra.mxu0 0
      %1774 = vmatpush.bf16.msra.mxu0 0
      %1775 = vmatpush.bf16.msra.mxu0 0
      %1776 = vmatpush.bf16.msra.mxu0 0
      %1777 = vmatpush.bf16.msra.mxu0 0
      %1778 = vmatpush.bf16.msra.mxu0 %v1766
      %1779 = vmatmul.bf16.gmra.mxu0 %v1769
      %v1780 = vpop.f32.mrf.mxu0
      %v1781 = vadd.f32 0.0, %v1780
      %v1782 = vpop.f32.mrf.mxu0
      %v1783 = vadd.f32 0.0, %v1782
      %1784 = vdwg.mxu0
      %1789 = vrot.lane.b32.xlu0 %v880, 4
      %v1790 = vpop.permute.xlu0 %1789
      %1791 = vrot.lane.b32.xlu0 %v882, 4
      %v1792 = vpop.permute.xlu0 %1791
      %1793 = vrot.lane.b32.xlu0 %v905, 4
      %v1794 = vpop.permute.xlu0 %1793
      %1795 = vrot.lane.b32.xlu0 %v907, 4
      %v1796 = vpop.permute.xlu0 %1795
      %1805 = vrot.lane.b32.xlu0 %v1026, 8
      %v1806 = vpop.permute.xlu0 %1805
      %1807 = vrot.lane.b32.xlu0 %v1028, 8
      %v1808 = vpop.permute.xlu0 %1807
      %1809 = vrot.lane.b32.xlu0 %v1051, 8
      %v1810 = vpop.permute.xlu0 %1809
      %1811 = vrot.lane.b32.xlu0 %v1053, 8
      %v1812 = vpop.permute.xlu0 %1811
      %1821 = vrot.lane.b32.xlu0 %v1172, 12
      %v1822 = vpop.permute.xlu0 %1821
      %1823 = vrot.lane.b32.xlu0 %v1174, 12
      %v1824 = vpop.permute.xlu0 %1823
      %1825 = vrot.lane.b32.xlu0 %v1197, 12
      %v1826 = vpop.permute.xlu0 %1825
      %1827 = vrot.lane.b32.xlu0 %v1199, 12
      %v1828 = vpop.permute.xlu0 %1827
      %1837 = vrot.lane.b32.xlu0 %v1318, 16
      %v1838 = vpop.permute.xlu0 %1837
      %1839 = vrot.lane.b32.xlu0 %v1320, 16
      %v1840 = vpop.permute.xlu0 %1839
      %1841 = vrot.lane.b32.xlu0 %v1343, 16
      %v1842 = vpop.permute.xlu0 %1841
      %1843 = vrot.lane.b32.xlu0 %v1345, 16
      %v1844 = vpop.permute.xlu0 %1843
      %1853 = vrot.lane.b32.xlu0 %v1464, 20
      %v1854 = vpop.permute.xlu0 %1853
      %1855 = vrot.lane.b32.xlu0 %v1466, 20
      %v1856 = vpop.permute.xlu0 %1855
      %1857 = vrot.lane.b32.xlu0 %v1489, 20
      %v1858 = vpop.permute.xlu0 %1857
      %1859 = vrot.lane.b32.xlu0 %v1491, 20
      %v1860 = vpop.permute.xlu0 %1859
      %1869 = vrot.lane.b32.xlu0 %v1610, 24
      %v1870 = vpop.permute.xlu0 %1869
      %1871 = vrot.lane.b32.xlu0 %v1612, 24
      %v1872 = vpop.permute.xlu0 %1871
      %1873 = vrot.lane.b32.xlu0 %v1635, 24
      %v1874 = vpop.permute.xlu0 %1873
      %1875 = vrot.lane.b32.xlu0 %v1637, 24
      %v1876 = vpop.permute.xlu0 %1875
      %1885 = vrot.lane.b32.xlu0 %v1756, 28
      %v1886 = vpop.permute.xlu0 %1885
      %1887 = vrot.lane.b32.xlu0 %v1758, 28
      %v1888 = vpop.permute.xlu0 %1887
      %1889 = vrot.lane.b32.xlu0 %v1781, 28
      %v1890 = vpop.permute.xlu0 %1889
      %1891 = vrot.lane.b32.xlu0 %v1783, 28
      %v1892 = vpop.permute.xlu0 %1891
      %v1897 = vsel %vm616, %v734, %v1790
      %v1898 = vsel %vm616, %v736, %v1792
      %v1899 = vsel %vm616, %v759, %v1794
      %v1900 = vsel %vm616, %v761, %v1796
      %vm1901 = vcmask 64512
      %v1902 = vsel %vm1901, %v1897, %v1806
      %v1903 = vsel %vm1901, %v1898, %v1808
      %v1904 = vsel %vm1901, %v1899, %v1810
      %v1905 = vsel %vm1901, %v1900, %v1812
      %vm1906 = vcmask 97280
      %v1907 = vsel %vm1906, %v1902, %v1822
      %v1908 = vsel %vm1906, %v1903, %v1824
      %v1909 = vsel %vm1906, %v1904, %v1826
      %v1910 = vsel %vm1906, %v1905, %v1828
      %v1911 = vsel %vm664, %v1907, %v1838
      %v1912 = vsel %vm664, %v1908, %v1840
      %v1913 = vsel %vm664, %v1909, %v1842
      %v1914 = vsel %vm664, %v1910, %v1844
      %vm1915 = vcmask 162816
      %v1916 = vsel %vm1915, %v1911, %v1854
      %v1917 = vsel %vm1915, %v1912, %v1856
      %v1918 = vsel %vm1915, %v1913, %v1858
      %v1919 = vsel %vm1915, %v1914, %v1860
      %vm1920 = vcmask 195584
      %v1921 = vsel %vm1920, %v1916, %v1870
      %v1922 = vsel %vm1920, %v1917, %v1872
      %v1923 = vsel %vm1920, %v1918, %v1874
      %v1924 = vsel %vm1920, %v1919, %v1876
      %vm1925 = vcmask 228352
      %v1926 = vsel %vm1925, %v1921, %v1886
      %v1927 = vsel %vm1925, %v1922, %v1888
      %v1928 = vsel %vm1925, %v1923, %v1890
      %v1929 = vsel %vm1925, %v1924, %v1892
      %v1930 = vpack.c.bf16 %v1927, %v1926
      %v1931 = vpack.c.bf16 %v1929, %v1928
      %v1932 = vld [vmem:[%s3] sm:$0xf]
      %v1933 = vld [vmem:[%s3 + $0x4] sm:$0xf]
      %v1934 = vld [vmem:[%s3 + $0x8] sm:$0xf]
      %v1935 = vld [vmem:[%s3 + $0xc] sm:$0xf]
      %v1936 = vld [vmem:[%s4] sm:$0x1]
      %v1938 = vperm.slane %v1936, 0
      %v1944 = vunpack.c.l.b16 %v1932
      %v1945 = vunpack.c.l.b16 %v1933
      %v1946 = vunpack.c.l.b16 %v1934
      %v1947 = vunpack.c.l.b16 %v1935
      %v1948 = vpack.c.b16 %v1945, %v1944
      %v1949 = vpack.c.b16 %v1947, %v1946
      %v1953 = vsel %vm579, %v1930, 0
      %v1956 = vsel %vm579, %v1931, 0
      %1958 = vmatpush.bf16.msra.mxu0 0
      %1959 = vmatpush.bf16.msra.mxu0 0
      %1960 = vmatpush.bf16.msra.mxu0 0
      %1961 = vmatpush.bf16.msra.mxu0 0
      %1962 = vmatpush.bf16.msra.mxu0 0
      %1963 = vmatpush.bf16.msra.mxu0 0
      %1964 = vmatpush.bf16.msra.mxu0 %v1949
      %1965 = vmatpush.bf16.msra.mxu0 %v1948
      %1966 = vmatmul.bf16.gmra.mxu0 %v1953
      %v1967 = vpop.f32.mrf.mxu0
      %v1968 = vadd.f32 %v1938, %v1967
      %v1969 = vpop.f32.mrf.mxu0
      %v1970 = vadd.f32 %v1938, %v1969
      %1971 = vmatmul.bf16.gmra.mxu0 %v1956
      %v1972 = vpop.f32.mrf.mxu0
      %v1973 = vadd.f32 %v1938, %v1972
      %v1974 = vpop.f32.mrf.mxu0
      %v1975 = vadd.f32 %v1938, %v1974
      %1976 = vdwg.mxu0
      %v1977 = vld [vmem:[%s544] sm:$0xff]
      %v1978 = vld [vmem:[%s544 + $0x8] sm:$0xff]
      %v1979 = vld [vmem:[%s544 + $0x10] sm:$0xff]
      %v1980 = vld [vmem:[%s544 + $0x18] sm:$0xff]
      %v1981 = vadd.f32 %v1977, %v1968
      %v1982 = vadd.f32 %v1978, %v1970
      %v1983 = vadd.f32 %v1979, %v1973
      %v1984 = vadd.f32 %v1980, %v1975
      %v1985 = vld [vmem:[%s11] sm:$0x1]
      %v1986 = vld [vmem:[%s12] sm:$0x1]
      %v1987 = vsel %vm579, %v1981, 0.0
      %1988 = vadd.xlane.f32.xlu0 %v1987
      %v1989 = vpop.xlane.xlu0 %1988
      %v1990 = vsel %vm579, %v1982, 0.0
      %1991 = vadd.xlane.f32.xlu0 %v1990
      %v1992 = vpop.xlane.xlu0 %1991
      %v1993 = vsel %vm579, %v1983, 0.0
      %1994 = vadd.xlane.f32.xlu0 %v1993
      %v1995 = vpop.xlane.xlu0 %1994
      %v1996 = vsel %vm579, %v1984, 0.0
      %1997 = vadd.xlane.f32.xlu0 %v1996
      %v1998 = vpop.xlane.xlu0 %1997
      %v1999 = vrcp.pop 32.0
      %v2000 = vmul.f32 32.0, %v1999
      %v2001 = vsub.f32 1.0, %v2000
      %v2002 = vmul.f32 %v1999, %v2001
      %v2003 = vadd.f32 %v1999, %v2002
      %vm2004 = vweird.f32 %v1999
      %v2005 = vsel %vm2004, %v1999, %v2003
      %v2006 = vmul.f32 %v1989, %v2005
      %v2007 = vmul.f32 %v1992, %v2005
      %v2008 = vmul.f32 %v1995, %v2005
      %v2009 = vmul.f32 %v1998, %v2005
      %v2010 = vsub.f32 %v1981, %v2006
      %v2011 = vsub.f32 %v1982, %v2007
      %v2012 = vsub.f32 %v1983, %v2008
      %v2013 = vsub.f32 %v1984, %v2009
      %v2014 = vmul.f32 %v2010, %v2010
      %v2015 = vmul.f32 %v2011, %v2011
      %v2016 = vmul.f32 %v2012, %v2012
      %v2017 = vmul.f32 %v2013, %v2013
      %v2018 = vsel %vm579, %v2014, 0.0
      %2019 = vadd.xlane.f32.xlu0 %v2018
      %v2020 = vpop.xlane.xlu0 %2019
      %v2021 = vsel %vm579, %v2015, 0.0
      %2022 = vadd.xlane.f32.xlu0 %v2021
      %v2023 = vpop.xlane.xlu0 %2022
      %v2024 = vsel %vm579, %v2016, 0.0
      %2025 = vadd.xlane.f32.xlu0 %v2024
      %v2026 = vpop.xlane.xlu0 %2025
      %v2027 = vsel %vm579, %v2017, 0.0
      %2028 = vadd.xlane.f32.xlu0 %v2027
      %v2029 = vpop.xlane.xlu0 %2028
      %v2030 = vmul.f32 %v2020, %v2005
      %v2031 = vmul.f32 %v2023, %v2005
      %v2032 = vmul.f32 %v2026, %v2005
      %v2033 = vmul.f32 %v2029, %v2005
      %v2034 = vadd.f32 %v2030, 1e-05
      %v2035 = vadd.f32 %v2031, 1e-05
      %v2036 = vadd.f32 %v2032, 1e-05
      %v2037 = vadd.f32 %v2033, 1e-05
      %v2038 = vrsqrt.pop %v2034
      %v2039 = vmul.f32 %v2038, %v2034
      %v2040 = vmul.f32 %v2039, %v2038
      %v2041 = vmul.f32 0.5, %v2040
      %v2042 = vsub.f32 1.5, %v2041
      %v2043 = vmul.f32 %v2038, %v2042
      %vm2044 = vweird.f32 %v2034
      %vm2045 = vweird.f32 %v2038
      %vm2046 = vmor %vm2044, %vm2045
      %v2047 = vsel %vm2046, %v2038, %v2043
      %v2048 = vrsqrt.pop %v2035
      %v2049 = vmul.f32 %v2048, %v2035
      %v2050 = vmul.f32 %v2049, %v2048
      %v2051 = vmul.f32 0.5, %v2050
      %v2052 = vsub.f32 1.5, %v2051
      %v2053 = vmul.f32 %v2048, %v2052
      %vm2054 = vweird.f32 %v2035
      %vm2055 = vweird.f32 %v2048
      %vm2056 = vmor %vm2054, %vm2055
      %v2057 = vsel %vm2056, %v2048, %v2053
      %v2058 = vrsqrt.pop %v2036
      %v2059 = vmul.f32 %v2058, %v2036
      %v2060 = vmul.f32 %v2059, %v2058
      %v2061 = vmul.f32 0.5, %v2060
      %v2062 = vsub.f32 1.5, %v2061
      %v2063 = vmul.f32 %v2058, %v2062
      %vm2064 = vweird.f32 %v2036
      %vm2065 = vweird.f32 %v2058
      %vm2066 = vmor %vm2064, %vm2065
      %v2067 = vsel %vm2066, %v2058, %v2063
      %v2068 = vrsqrt.pop %v2037
      %v2069 = vmul.f32 %v2068, %v2037
      %v2070 = vmul.f32 %v2069, %v2068
      %v2071 = vmul.f32 0.5, %v2070
      %v2072 = vsub.f32 1.5, %v2071
      %v2073 = vmul.f32 %v2068, %v2072
      %vm2074 = vweird.f32 %v2037
      %vm2075 = vweird.f32 %v2068
      %vm2076 = vmor %vm2074, %vm2075
      %v2077 = vsel %vm2076, %v2068, %v2073
      %v2078 = vmul.f32 %v2010, %v2047
      %v2079 = vmul.f32 %v2011, %v2057
      %v2080 = vmul.f32 %v2012, %v2067
      %v2081 = vmul.f32 %v2013, %v2077
      %v2082 = vperm.slane %v1985, 0
      %v2083 = vmul.f32 %v2078, %v2082
      %v2084 = vmul.f32 %v2079, %v2082
      %v2085 = vmul.f32 %v2080, %v2082
      %v2086 = vmul.f32 %v2081, %v2082
      %v2087 = vperm.slane %v1986, 0
      %v2088 = vadd.f32 %v2083, %v2087
      %v2089 = vadd.f32 %v2084, %v2087
      %v2090 = vadd.f32 %v2085, %v2087
      %v2091 = vadd.f32 %v2086, %v2087
      %v2092 = vpack.c.bf16 %v2089, %v2088
      %v2093 = vpack.c.bf16 %v2091, %v2090
      %v2094 = vld [vmem:[%s5] sm:$0xf]
      %v2095 = vld [vmem:[%s5 + $0x4] sm:$0xf]
      %v2096 = vld [vmem:[%s5 + $0x8] sm:$0xf]
      %v2097 = vld [vmem:[%s5 + $0xc] sm:$0xf]
      %v2098 = vld [vmem:[%s6] sm:$0x1]
      %v2100 = vperm.slane %v2098, 0
      %v2106 = vunpack.c.l.b16 %v2094
      %v2107 = vunpack.c.l.b16 %v2095
      %v2108 = vunpack.c.l.b16 %v2096
      %v2109 = vunpack.c.l.b16 %v2097
      %v2110 = vpack.c.b16 %v2107, %v2106
      %v2111 = vpack.c.b16 %v2109, %v2108
      %v2115 = vsel %vm579, %v2092, 0
      %v2118 = vsel %vm579, %v2093, 0
      %2120 = vmatpush.bf16.msra.mxu0 0
      %2121 = vmatpush.bf16.msra.mxu0 0
      %2122 = vmatpush.bf16.msra.mxu0 0
      %2123 = vmatpush.bf16.msra.mxu0 0
      %2124 = vmatpush.bf16.msra.mxu0 0
      %2125 = vmatpush.bf16.msra.mxu0 0
      %2126 = vmatpush.bf16.msra.mxu0 %v2111
      %2127 = vmatpush.bf16.msra.mxu0 %v2110
      %2128 = vmatmul.bf16.gmra.mxu0 %v2115
      %v2129 = vpop.f32.mrf.mxu0
      %v2130 = vadd.f32 %v2100, %v2129
      %v2131 = vpop.f32.mrf.mxu0
      %v2132 = vadd.f32 %v2100, %v2131
      %2133 = vmatmul.bf16.gmra.mxu0 %v2118
      %v2134 = vpop.f32.mrf.mxu0
      %v2135 = vadd.f32 %v2100, %v2134
      %v2136 = vpop.f32.mrf.mxu0
      %v2137 = vadd.f32 %v2100, %v2136
      %2138 = vdwg.mxu0
      %v2139 = vpack.c.bf16 %v2132, %v2130
      %v2140 = vpack.c.bf16 %v2137, %v2135
      %v2141 = vld [vmem:[%s7] sm:$0x3]
      %v2143 = vsel %vm616, %v2139, 0
      %v2146 = vsel %vm616, %v2140, 0
      %vm2148 = vcmask 1041408
      %v2150 = vsel %vm2148, %v2141, 0
      %2152 = vmatpush.bf16.msra.mxu0 0
      %2153 = vmatpush.bf16.msra.mxu0 0
      %2154 = vmatpush.bf16.msra.mxu0 0
      %2155 = vmatpush.bf16.msra.mxu0 0
      %2156 = vmatpush.bf16.msra.mxu0 0
      %2157 = vmatpush.bf16.msra.mxu0 0
      %2158 = vmatpush.bf16.msra.mxu0 0
      %2159 = vmatpush.bf16.msra.mxu0 %v2150
      %2160 = vmatmul.bf16.gmra.mxu0 %v2143
      %v2161 = vpop.f32.mrf.mxu0
      %v2162 = vadd.f32 0.0, %v2161
      %v2163 = vpop.f32.mrf.mxu0
      %v2164 = vadd.f32 0.0, %v2163
      %2165 = vmatmul.bf16.gmra.mxu0 %v2146
      %v2166 = vpop.f32.mrf.mxu0
      %v2167 = vadd.f32 0.0, %v2166
      %v2168 = vpop.f32.mrf.mxu0
      %v2169 = vadd.f32 0.0, %v2168
      %2170 = vdwg.mxu0
      %v2171 = vsel %vm579, %v2162, -inf
      %2172 = vmax.xlane.f32.xlu0 %v2171
      %v2173 = vpop.xlane.xlu0 %2172
      %v2174 = vsel %vm579, %v2164, -inf
      %2175 = vmax.xlane.f32.xlu0 %v2174
      %v2176 = vpop.xlane.xlu0 %2175
      %v2177 = vsel %vm579, %v2167, -inf
      %2178 = vmax.xlane.f32.xlu0 %v2177
      %v2179 = vpop.xlane.xlu0 %2178
      %v2180 = vsel %vm579, %v2169, -inf
      %2181 = vmax.xlane.f32.xlu0 %v2180
      %v2182 = vpop.xlane.xlu0 %2181
      %v2183 = vsub.f32 %v2162, %v2173
      %v2184 = vsub.f32 %v2164, %v2176
      %v2185 = vsub.f32 %v2167, %v2179
      %v2186 = vsub.f32 %v2169, %v2182
      %v2187 = vmul.f32 %v2183, 1.442695
      %v2188 = vpow.pop %v2187
      %v2189 = vmul.f32 %v2184, 1.442695
      %v2190 = vpow.pop %v2189
      %v2191 = vmul.f32 %v2185, 1.442695
      %v2192 = vpow.pop %v2191
      %v2193 = vmul.f32 %v2186, 1.442695
      %v2194 = vpow.pop %v2193
      %v2195 = vsel %vm579, %v2188, 0.0
      %2196 = vadd.xlane.f32.xlu0 %v2195
      %v2197 = vpop.xlane.xlu0 %2196
      %v2198 = vsel %vm579, %v2190, 0.0
      %2199 = vadd.xlane.f32.xlu0 %v2198
      %v2200 = vpop.xlane.xlu0 %2199
      %v2201 = vsel %vm579, %v2192, 0.0
      %2202 = vadd.xlane.f32.xlu0 %v2201
      %v2203 = vpop.xlane.xlu0 %2202
      %v2204 = vsel %vm579, %v2194, 0.0
      %2205 = vadd.xlane.f32.xlu0 %v2204
      %v2206 = vpop.xlane.xlu0 %2205
      %v2207 = vrcp.pop %v2197
      %v2208 = vrcp.pop %v2200
      %v2209 = vrcp.pop %v2203
      %v2210 = vrcp.pop %v2206
      %v2211 = vmul.f32 %v2188, %v2207
      %v2212 = vmul.f32 %v2190, %v2208
      %v2213 = vmul.f32 %v2192, %v2209
      %v2214 = vmul.f32 %v2194, %v2210
      %v2215 = vpack.c.bf16 %v2212, %v2211
      %v2216 = vpack.c.bf16 %v2214, %v2213
      %v2217 = vld [vmem:[%s8] sm:$0xf]
      %v2218 = vld [vmem:[%s8 + $0x4] sm:$0xf]
      %v2219 = vld [vmem:[%s8 + $0x8] sm:$0xf]
      %v2220 = vld [vmem:[%s8 + $0xc] sm:$0xf]
      %v2225 = vunpack.c.l.b16 %v2217
      %v2226 = vunpack.c.l.b16 %v2218
      %v2227 = vunpack.c.l.b16 %v2219
      %v2228 = vunpack.c.l.b16 %v2220
      %v2229 = vpack.c.b16 %v2226, %v2225
      %v2230 = vpack.c.b16 %v2228, %v2227
      %v2234 = vsel %vm579, %v2215, 0
      %v2237 = vsel %vm579, %v2216, 0
      %2239 = vmatpush.bf16.msra.mxu0 0
      %2240 = vmatpush.bf16.msra.mxu0 0
      %2241 = vmatpush.bf16.msra.mxu0 0
      %2242 = vmatpush.bf16.msra.mxu0 0
      %2243 = vmatpush.bf16.msra.mxu0 0
      %2244 = vmatpush.bf16.msra.mxu0 0
      %2245 = vmatpush.bf16.msra.mxu0 %v2230
      %2246 = vmatpush.bf16.msra.mxu0 %v2229
      %2247 = vmatmul.bf16.gmra.mxu0 %v2234
      %v2248 = vpop.f32.mrf.mxu0
      %v2249 = vadd.f32 0.0, %v2248
      %v2250 = vpop.f32.mrf.mxu0
      %v2251 = vadd.f32 0.0, %v2250
      %2252 = vmatmul.bf16.gmra.mxu0 %v2237
      %v2253 = vpop.f32.mrf.mxu0
      %v2254 = vadd.f32 0.0, %v2253
      %v2255 = vpop.f32.mrf.mxu0
      %v2256 = vadd.f32 0.0, %v2255
      %2257 = vdwg.mxu0
      %v2258 = vld [vmem:[%s7] sm:$0xc]
      %2261 = vrot.lane.b32.xlu0 %v2139, 124
      %v2262 = vpop.permute.xlu0 %2261
      %2263 = vrot.lane.b32.xlu0 %v2140, 124
      %v2264 = vpop.permute.xlu0 %2263
      %v2266 = vunpack.c.l.b16 %v2258
      %v2267 = vpack.c.b16 %v2266, %v2266
      %v2268 = vrot.slane %v2267, 2
      %v2270 = vsel %vm616, %v2262, 0
      %v2273 = vsel %vm616, %v2264, 0
      %v2276 = vsel %vm2148, %v2268, 0
      %2278 = vmatpush.bf16.msra.mxu0 0
      %2279 = vmatpush.bf16.msra.mxu0 0
      %2280 = vmatpush.bf16.msra.mxu0 0
      %2281 = vmatpush.bf16.msra.mxu0 0
      %2282 = vmatpush.bf16.msra.mxu0 0
      %2283 = vmatpush.bf16.msra.mxu0 0
      %2284 = vmatpush.bf16.msra.mxu0 0
      %2285 = vmatpush.bf16.msra.mxu0 %v2276
      %2286 = vmatmul.bf16.gmra.mxu0 %v2270
      %v2287 = vpop.f32.mrf.mxu0
      %v2288 = vadd.f32 0.0, %v2287
      %v2289 = vpop.f32.mrf.mxu0
      %v2290 = vadd.f32 0.0, %v2289
      %2291 = vmatmul.bf16.gmra.mxu0 %v2273
      %v2292 = vpop.f32.mrf.mxu0
      %v2293 = vadd.f32 0.0, %v2292
      %v2294 = vpop.f32.mrf.mxu0
      %v2295 = vadd.f32 0.0, %v2294
      %2296 = vdwg.mxu0
      %v2297 = vsel %vm579, %v2288, -inf
      %2298 = vmax.xlane.f32.xlu0 %v2297
      %v2299 = vpop.xlane.xlu0 %2298
      %v2300 = vsel %vm579, %v2290, -inf
      %2301 = vmax.xlane.f32.xlu0 %v2300
      %v2302 = vpop.xlane.xlu0 %2301
      %v2303 = vsel %vm579, %v2293, -inf
      %2304 = vmax.xlane.f32.xlu0 %v2303
      %v2305 = vpop.xlane.xlu0 %2304
      %v2306 = vsel %vm579, %v2295, -inf
      %2307 = vmax.xlane.f32.xlu0 %v2306
      %v2308 = vpop.xlane.xlu0 %2307
      %v2309 = vsub.f32 %v2288, %v2299
      %v2310 = vsub.f32 %v2290, %v2302
      %v2311 = vsub.f32 %v2293, %v2305
      %v2312 = vsub.f32 %v2295, %v2308
      %v2313 = vmul.f32 %v2309, 1.442695
      %v2314 = vpow.pop %v2313
      %v2315 = vmul.f32 %v2310, 1.442695
      %v2316 = vpow.pop %v2315
      %v2317 = vmul.f32 %v2311, 1.442695
      %v2318 = vpow.pop %v2317
      %v2319 = vmul.f32 %v2312, 1.442695
      %v2320 = vpow.pop %v2319
      %v2321 = vsel %vm579, %v2314, 0.0
      %2322 = vadd.xlane.f32.xlu0 %v2321
      %v2323 = vpop.xlane.xlu0 %2322
      %v2324 = vsel %vm579, %v2316, 0.0
      %2325 = vadd.xlane.f32.xlu0 %v2324
      %v2326 = vpop.xlane.xlu0 %2325
      %v2327 = vsel %vm579, %v2318, 0.0
      %2328 = vadd.xlane.f32.xlu0 %v2327
      %v2329 = vpop.xlane.xlu0 %2328
      %v2330 = vsel %vm579, %v2320, 0.0
      %2331 = vadd.xlane.f32.xlu0 %v2330
      %v2332 = vpop.xlane.xlu0 %2331
      %v2333 = vrcp.pop %v2323
      %v2334 = vrcp.pop %v2326
      %v2335 = vrcp.pop %v2329
      %v2336 = vrcp.pop %v2332
      %v2337 = vmul.f32 %v2314, %v2333
      %v2338 = vmul.f32 %v2316, %v2334
      %v2339 = vmul.f32 %v2318, %v2335
      %v2340 = vmul.f32 %v2320, %v2336
      %v2341 = vpack.c.bf16 %v2338, %v2337
      %v2342 = vpack.c.bf16 %v2340, %v2339
      %2343 = vrot.lane.b32.xlu0 %v2229, 124
      %v2344 = vpop.permute.xlu0 %2343
      %2345 = vrot.lane.b32.xlu0 %v2230, 124
      %v2346 = vpop.permute.xlu0 %2345
      %v2350 = vsel %vm579, %v2341, 0
      %v2353 = vsel %vm579, %v2342, 0
      %2355 = vmatpush.bf16.msra.mxu0 0
      %2356 = vmatpush.bf16.msra.mxu0 0
      %2357 = vmatpush.bf16.msra.mxu0 0
      %2358 = vmatpush.bf16.msra.mxu0 0
      %2359 = vmatpush.bf16.msra.mxu0 0
      %2360 = vmatpush.bf16.msra.mxu0 0
      %2361 = vmatpush.bf16.msra.mxu0 %v2346
      %2362 = vmatpush.bf16.msra.mxu0 %v2344
      %2363 = vmatmul.bf16.gmra.mxu0 %v2350
      %v2364 = vpop.f32.mrf.mxu0
      %v2365 = vadd.f32 0.0, %v2364
      %v2366 = vpop.f32.mrf.mxu0
      %v2367 = vadd.f32 0.0, %v2366
      %2368 = vmatmul.bf16.gmra.mxu0 %v2353
      %v2369 = vpop.f32.mrf.mxu0
      %v2370 = vadd.f32 0.0, %v2369
      %v2371 = vpop.f32.mrf.mxu0
      %v2372 = vadd.f32 0.0, %v2371
      %2373 = vdwg.mxu0
      %v2374 = vld [vmem:[%s7 + $0x4] sm:$0x3]
      %2375 = vrot.lane.b32.xlu0 %v2139, 120
      %v2376 = vpop.permute.xlu0 %2375
      %2377 = vrot.lane.b32.xlu0 %v2140, 120
      %v2378 = vpop.permute.xlu0 %2377
      %v2380 = vsel %vm616, %v2376, 0
      %v2383 = vsel %vm616, %v2378, 0
      %v2386 = vsel %vm2148, %v2374, 0
      %2388 = vmatpush.bf16.msra.mxu0 0
      %2389 = vmatpush.bf16.msra.mxu0 0
      %2390 = vmatpush.bf16.msra.mxu0 0
      %2391 = vmatpush.bf16.msra.mxu0 0
      %2392 = vmatpush.bf16.msra.mxu0 0
      %2393 = vmatpush.bf16.msra.mxu0 0
      %2394 = vmatpush.bf16.msra.mxu0 0
      %2395 = vmatpush.bf16.msra.mxu0 %v2386
      %2396 = vmatmul.bf16.gmra.mxu0 %v2380
      %v2397 = vpop.f32.mrf.mxu0
      %v2398 = vadd.f32 0.0, %v2397
      %v2399 = vpop.f32.mrf.mxu0
      %v2400 = vadd.f32 0.0, %v2399
      %2401 = vmatmul.bf16.gmra.mxu0 %v2383
      %v2402 = vpop.f32.mrf.mxu0
      %v2403 = vadd.f32 0.0, %v2402
      %v2404 = vpop.f32.mrf.mxu0
      %v2405 = vadd.f32 0.0, %v2404
      %2406 = vdwg.mxu0
      %v2407 = vsel %vm579, %v2398, -inf
      %2408 = vmax.xlane.f32.xlu0 %v2407
      %v2409 = vpop.xlane.xlu0 %2408
      %v2410 = vsel %vm579, %v2400, -inf
      %2411 = vmax.xlane.f32.xlu0 %v2410
      %v2412 = vpop.xlane.xlu0 %2411
      %v2413 = vsel %vm579, %v2403, -inf
      %2414 = vmax.xlane.f32.xlu0 %v2413
      %v2415 = vpop.xlane.xlu0 %2414
      %v2416 = vsel %vm579, %v2405, -inf
      %2417 = vmax.xlane.f32.xlu0 %v2416
      %v2418 = vpop.xlane.xlu0 %2417
      %v2419 = vsub.f32 %v2398, %v2409
      %v2420 = vsub.f32 %v2400, %v2412
      %v2421 = vsub.f32 %v2403, %v2415
      %v2422 = vsub.f32 %v2405, %v2418
      %v2423 = vmul.f32 %v2419, 1.442695
      %v2424 = vpow.pop %v2423
      %v2425 = vmul.f32 %v2420, 1.442695
      %v2426 = vpow.pop %v2425
      %v2427 = vmul.f32 %v2421, 1.442695
      %v2428 = vpow.pop %v2427
      %v2429 = vmul.f32 %v2422, 1.442695
      %v2430 = vpow.pop %v2429
      %v2431 = vsel %vm579, %v2424, 0.0
      %2432 = vadd.xlane.f32.xlu0 %v2431
      %v2433 = vpop.xlane.xlu0 %2432
      %v2434 = vsel %vm579, %v2426, 0.0
      %2435 = vadd.xlane.f32.xlu0 %v2434
      %v2436 = vpop.xlane.xlu0 %2435
      %v2437 = vsel %vm579, %v2428, 0.0
      %2438 = vadd.xlane.f32.xlu0 %v2437
      %v2439 = vpop.xlane.xlu0 %2438
      %v2440 = vsel %vm579, %v2430, 0.0
      %2441 = vadd.xlane.f32.xlu0 %v2440
      %v2442 = vpop.xlane.xlu0 %2441
      %v2443 = vrcp.pop %v2433
      %v2444 = vrcp.pop %v2436
      %v2445 = vrcp.pop %v2439
      %v2446 = vrcp.pop %v2442
      %v2447 = vmul.f32 %v2424, %v2443
      %v2448 = vmul.f32 %v2426, %v2444
      %v2449 = vmul.f32 %v2428, %v2445
      %v2450 = vmul.f32 %v2430, %v2446
      %v2451 = vpack.c.bf16 %v2448, %v2447
      %v2452 = vpack.c.bf16 %v2450, %v2449
      %2453 = vrot.lane.b32.xlu0 %v2229, 120
      %v2454 = vpop.permute.xlu0 %2453
      %2455 = vrot.lane.b32.xlu0 %v2230, 120
      %v2456 = vpop.permute.xlu0 %2455
      %v2460 = vsel %vm579, %v2451, 0
      %v2463 = vsel %vm579, %v2452, 0
      %2465 = vmatpush.bf16.msra.mxu0 0
      %2466 = vmatpush.bf16.msra.mxu0 0
      %2467 = vmatpush.bf16.msra.mxu0 0
      %2468 = vmatpush.bf16.msra.mxu0 0
      %2469 = vmatpush.bf16.msra.mxu0 0
      %2470 = vmatpush.bf16.msra.mxu0 0
      %2471 = vmatpush.bf16.msra.mxu0 %v2456
      %2472 = vmatpush.bf16.msra.mxu0 %v2454
      %2473 = vmatmul.bf16.gmra.mxu0 %v2460
      %v2474 = vpop.f32.mrf.mxu0
      %v2475 = vadd.f32 0.0, %v2474
      %v2476 = vpop.f32.mrf.mxu0
      %v2477 = vadd.f32 0.0, %v2476
      %2478 = vmatmul.bf16.gmra.mxu0 %v2463
      %v2479 = vpop.f32.mrf.mxu0
      %v2480 = vadd.f32 0.0, %v2479
      %v2481 = vpop.f32.mrf.mxu0
      %v2482 = vadd.f32 0.0, %v2481
      %2483 = vdwg.mxu0
      %v2484 = vld [vmem:[%s7 + $0x4] sm:$0xc]
      %2485 = vrot.lane.b32.xlu0 %v2139, 116
      %v2486 = vpop.permute.xlu0 %2485
      %2487 = vrot.lane.b32.xlu0 %v2140, 116
      %v2488 = vpop.permute.xlu0 %2487
      %v2490 = vunpack.c.l.b16 %v2484
      %v2491 = vpack.c.b16 %v2490, %v2490
      %v2492 = vrot.slane %v2491, 2
      %v2494 = vsel %vm616, %v2486, 0
      %v2497 = vsel %vm616, %v2488, 0
      %v2500 = vsel %vm2148, %v2492, 0
      %2502 = vmatpush.bf16.msra.mxu0 0
      %2503 = vmatpush.bf16.msra.mxu0 0
      %2504 = vmatpush.bf16.msra.mxu0 0
      %2505 = vmatpush.bf16.msra.mxu0 0
      %2506 = vmatpush.bf16.msra.mxu0 0
      %2507 = vmatpush.bf16.msra.mxu0 0
      %2508 = vmatpush.bf16.msra.mxu0 0
      %2509 = vmatpush.bf16.msra.mxu0 %v2500
      %2510 = vmatmul.bf16.gmra.mxu0 %v2494
      %v2511 = vpop.f32.mrf.mxu0
      %v2512 = vadd.f32 0.0, %v2511
      %v2513 = vpop.f32.mrf.mxu0
      %v2514 = vadd.f32 0.0, %v2513
      %2515 = vmatmul.bf16.gmra.mxu0 %v2497
      %v2516 = vpop.f32.mrf.mxu0
      %v2517 = vadd.f32 0.0, %v2516
      %v2518 = vpop.f32.mrf.mxu0
      %v2519 = vadd.f32 0.0, %v2518
      %2520 = vdwg.mxu0
      %v2521 = vsel %vm579, %v2512, -inf
      %2522 = vmax.xlane.f32.xlu0 %v2521
      %v2523 = vpop.xlane.xlu0 %2522
      %v2524 = vsel %vm579, %v2514, -inf
      %2525 = vmax.xlane.f32.xlu0 %v2524
      %v2526 = vpop.xlane.xlu0 %2525
      %v2527 = vsel %vm579, %v2517, -inf
      %2528 = vmax.xlane.f32.xlu0 %v2527
      %v2529 = vpop.xlane.xlu0 %2528
      %v2530 = vsel %vm579, %v2519, -inf
      %2531 = vmax.xlane.f32.xlu0 %v2530
      %v2532 = vpop.xlane.xlu0 %2531
      %v2533 = vsub.f32 %v2512, %v2523
      %v2534 = vsub.f32 %v2514, %v2526
      %v2535 = vsub.f32 %v2517, %v2529
      %v2536 = vsub.f32 %v2519, %v2532
      %v2537 = vmul.f32 %v2533, 1.442695
      %v2538 = vpow.pop %v2537
      %v2539 = vmul.f32 %v2534, 1.442695
      %v2540 = vpow.pop %v2539
      %v2541 = vmul.f32 %v2535, 1.442695
      %v2542 = vpow.pop %v2541
      %v2543 = vmul.f32 %v2536, 1.442695
      %v2544 = vpow.pop %v2543
      %v2545 = vsel %vm579, %v2538, 0.0
      %2546 = vadd.xlane.f32.xlu0 %v2545
      %v2547 = vpop.xlane.xlu0 %2546
      %v2548 = vsel %vm579, %v2540, 0.0
      %2549 = vadd.xlane.f32.xlu0 %v2548
      %v2550 = vpop.xlane.xlu0 %2549
      %v2551 = vsel %vm579, %v2542, 0.0
      %2552 = vadd.xlane.f32.xlu0 %v2551
      %v2553 = vpop.xlane.xlu0 %2552
      %v2554 = vsel %vm579, %v2544, 0.0
      %2555 = vadd.xlane.f32.xlu0 %v2554
      %v2556 = vpop.xlane.xlu0 %2555
      %v2557 = vrcp.pop %v2547
      %v2558 = vrcp.pop %v2550
      %v2559 = vrcp.pop %v2553
      %v2560 = vrcp.pop %v2556
      %v2561 = vmul.f32 %v2538, %v2557
      %v2562 = vmul.f32 %v2540, %v2558
      %v2563 = vmul.f32 %v2542, %v2559
      %v2564 = vmul.f32 %v2544, %v2560
      %v2565 = vpack.c.bf16 %v2562, %v2561
      %v2566 = vpack.c.bf16 %v2564, %v2563
      %2567 = vrot.lane.b32.xlu0 %v2229, 116
      %v2568 = vpop.permute.xlu0 %2567
      %2569 = vrot.lane.b32.xlu0 %v2230, 116
      %v2570 = vpop.permute.xlu0 %2569
      %v2574 = vsel %vm579, %v2565, 0
      %v2577 = vsel %vm579, %v2566, 0
      %2579 = vmatpush.bf16.msra.mxu0 0
      %2580 = vmatpush.bf16.msra.mxu0 0
      %2581 = vmatpush.bf16.msra.mxu0 0
      %2582 = vmatpush.bf16.msra.mxu0 0
      %2583 = vmatpush.bf16.msra.mxu0 0
      %2584 = vmatpush.bf16.msra.mxu0 0
      %2585 = vmatpush.bf16.msra.mxu0 %v2570
      %2586 = vmatpush.bf16.msra.mxu0 %v2568
      %2587 = vmatmul.bf16.gmra.mxu0 %v2574
      %v2588 = vpop.f32.mrf.mxu0
      %v2589 = vadd.f32 0.0, %v2588
      %v2590 = vpop.f32.mrf.mxu0
      %v2591 = vadd.f32 0.0, %v2590
      %2592 = vmatmul.bf16.gmra.mxu0 %v2577
      %v2593 = vpop.f32.mrf.mxu0
      %v2594 = vadd.f32 0.0, %v2593
      %v2595 = vpop.f32.mrf.mxu0
      %v2596 = vadd.f32 0.0, %v2595
      %2597 = vdwg.mxu0
      %v2598 = vld [vmem:[%s7 + $0x8] sm:$0x3]
      %2599 = vrot.lane.b32.xlu0 %v2139, 112
      %v2600 = vpop.permute.xlu0 %2599
      %2601 = vrot.lane.b32.xlu0 %v2140, 112
      %v2602 = vpop.permute.xlu0 %2601
      %v2604 = vsel %vm616, %v2600, 0
      %v2607 = vsel %vm616, %v2602, 0
      %v2610 = vsel %vm2148, %v2598, 0
      %2612 = vmatpush.bf16.msra.mxu0 0
      %2613 = vmatpush.bf16.msra.mxu0 0
      %2614 = vmatpush.bf16.msra.mxu0 0
      %2615 = vmatpush.bf16.msra.mxu0 0
      %2616 = vmatpush.bf16.msra.mxu0 0
      %2617 = vmatpush.bf16.msra.mxu0 0
      %2618 = vmatpush.bf16.msra.mxu0 0
      %2619 = vmatpush.bf16.msra.mxu0 %v2610
      %2620 = vmatmul.bf16.gmra.mxu0 %v2604
      %v2621 = vpop.f32.mrf.mxu0
      %v2622 = vadd.f32 0.0, %v2621
      %v2623 = vpop.f32.mrf.mxu0
      %v2624 = vadd.f32 0.0, %v2623
      %2625 = vmatmul.bf16.gmra.mxu0 %v2607
      %v2626 = vpop.f32.mrf.mxu0
      %v2627 = vadd.f32 0.0, %v2626
      %v2628 = vpop.f32.mrf.mxu0
      %v2629 = vadd.f32 0.0, %v2628
      %2630 = vdwg.mxu0
      %v2631 = vsel %vm579, %v2622, -inf
      %2632 = vmax.xlane.f32.xlu0 %v2631
      %v2633 = vpop.xlane.xlu0 %2632
      %v2634 = vsel %vm579, %v2624, -inf
      %2635 = vmax.xlane.f32.xlu0 %v2634
      %v2636 = vpop.xlane.xlu0 %2635
      %v2637 = vsel %vm579, %v2627, -inf
      %2638 = vmax.xlane.f32.xlu0 %v2637
      %v2639 = vpop.xlane.xlu0 %2638
      %v2640 = vsel %vm579, %v2629, -inf
      %2641 = vmax.xlane.f32.xlu0 %v2640
      %v2642 = vpop.xlane.xlu0 %2641
      %v2643 = vsub.f32 %v2622, %v2633
      %v2644 = vsub.f32 %v2624, %v2636
      %v2645 = vsub.f32 %v2627, %v2639
      %v2646 = vsub.f32 %v2629, %v2642
      %v2647 = vmul.f32 %v2643, 1.442695
      %v2648 = vpow.pop %v2647
      %v2649 = vmul.f32 %v2644, 1.442695
      %v2650 = vpow.pop %v2649
      %v2651 = vmul.f32 %v2645, 1.442695
      %v2652 = vpow.pop %v2651
      %v2653 = vmul.f32 %v2646, 1.442695
      %v2654 = vpow.pop %v2653
      %v2655 = vsel %vm579, %v2648, 0.0
      %2656 = vadd.xlane.f32.xlu0 %v2655
      %v2657 = vpop.xlane.xlu0 %2656
      %v2658 = vsel %vm579, %v2650, 0.0
      %2659 = vadd.xlane.f32.xlu0 %v2658
      %v2660 = vpop.xlane.xlu0 %2659
      %v2661 = vsel %vm579, %v2652, 0.0
      %2662 = vadd.xlane.f32.xlu0 %v2661
      %v2663 = vpop.xlane.xlu0 %2662
      %v2664 = vsel %vm579, %v2654, 0.0
      %2665 = vadd.xlane.f32.xlu0 %v2664
      %v2666 = vpop.xlane.xlu0 %2665
      %v2667 = vrcp.pop %v2657
      %v2668 = vrcp.pop %v2660
      %v2669 = vrcp.pop %v2663
      %v2670 = vrcp.pop %v2666
      %v2671 = vmul.f32 %v2648, %v2667
      %v2672 = vmul.f32 %v2650, %v2668
      %v2673 = vmul.f32 %v2652, %v2669
      %v2674 = vmul.f32 %v2654, %v2670
      %v2675 = vpack.c.bf16 %v2672, %v2671
      %v2676 = vpack.c.bf16 %v2674, %v2673
      %2677 = vrot.lane.b32.xlu0 %v2229, 112
      %v2678 = vpop.permute.xlu0 %2677
      %2679 = vrot.lane.b32.xlu0 %v2230, 112
      %v2680 = vpop.permute.xlu0 %2679
      %v2684 = vsel %vm579, %v2675, 0
      %v2687 = vsel %vm579, %v2676, 0
      %2689 = vmatpush.bf16.msra.mxu0 0
      %2690 = vmatpush.bf16.msra.mxu0 0
      %2691 = vmatpush.bf16.msra.mxu0 0
      %2692 = vmatpush.bf16.msra.mxu0 0
      %2693 = vmatpush.bf16.msra.mxu0 0
      %2694 = vmatpush.bf16.msra.mxu0 0
      %2695 = vmatpush.bf16.msra.mxu0 %v2680
      %2696 = vmatpush.bf16.msra.mxu0 %v2678
      %2697 = vmatmul.bf16.gmra.mxu0 %v2684
      %v2698 = vpop.f32.mrf.mxu0
      %v2699 = vadd.f32 0.0, %v2698
      %v2700 = vpop.f32.mrf.mxu0
      %v2701 = vadd.f32 0.0, %v2700
      %2702 = vmatmul.bf16.gmra.mxu0 %v2687
      %v2703 = vpop.f32.mrf.mxu0
      %v2704 = vadd.f32 0.0, %v2703
      %v2705 = vpop.f32.mrf.mxu0
      %v2706 = vadd.f32 0.0, %v2705
      %2707 = vdwg.mxu0
      %v2708 = vld [vmem:[%s7 + $0x8] sm:$0xc]
      %2709 = vrot.lane.b32.xlu0 %v2139, 108
      %v2710 = vpop.permute.xlu0 %2709
      %2711 = vrot.lane.b32.xlu0 %v2140, 108
      %v2712 = vpop.permute.xlu0 %2711
      %v2714 = vunpack.c.l.b16 %v2708
      %v2715 = vpack.c.b16 %v2714, %v2714
      %v2716 = vrot.slane %v2715, 2
      %v2718 = vsel %vm616, %v2710, 0
      %v2721 = vsel %vm616, %v2712, 0
      %v2724 = vsel %vm2148, %v2716, 0
      %2726 = vmatpush.bf16.msra.mxu0 0
      %2727 = vmatpush.bf16.msra.mxu0 0
      %2728 = vmatpush.bf16.msra.mxu0 0
      %2729 = vmatpush.bf16.msra.mxu0 0
      %2730 = vmatpush.bf16.msra.mxu0 0
      %2731 = vmatpush.bf16.msra.mxu0 0
      %2732 = vmatpush.bf16.msra.mxu0 0
      %2733 = vmatpush.bf16.msra.mxu0 %v2724
      %2734 = vmatmul.bf16.gmra.mxu0 %v2718
      %v2735 = vpop.f32.mrf.mxu0
      %v2736 = vadd.f32 0.0, %v2735
      %v2737 = vpop.f32.mrf.mxu0
      %v2738 = vadd.f32 0.0, %v2737
      %2739 = vmatmul.bf16.gmra.mxu0 %v2721
      %v2740 = vpop.f32.mrf.mxu0
      %v2741 = vadd.f32 0.0, %v2740
      %v2742 = vpop.f32.mrf.mxu0
      %v2743 = vadd.f32 0.0, %v2742
      %2744 = vdwg.mxu0
      %v2745 = vsel %vm579, %v2736, -inf
      %2746 = vmax.xlane.f32.xlu0 %v2745
      %v2747 = vpop.xlane.xlu0 %2746
      %v2748 = vsel %vm579, %v2738, -inf
      %2749 = vmax.xlane.f32.xlu0 %v2748
      %v2750 = vpop.xlane.xlu0 %2749
      %v2751 = vsel %vm579, %v2741, -inf
      %2752 = vmax.xlane.f32.xlu0 %v2751
      %v2753 = vpop.xlane.xlu0 %2752
      %v2754 = vsel %vm579, %v2743, -inf
      %2755 = vmax.xlane.f32.xlu0 %v2754
      %v2756 = vpop.xlane.xlu0 %2755
      %v2757 = vsub.f32 %v2736, %v2747
      %v2758 = vsub.f32 %v2738, %v2750
      %v2759 = vsub.f32 %v2741, %v2753
      %v2760 = vsub.f32 %v2743, %v2756
      %v2761 = vmul.f32 %v2757, 1.442695
      %v2762 = vpow.pop %v2761
      %v2763 = vmul.f32 %v2758, 1.442695
      %v2764 = vpow.pop %v2763
      %v2765 = vmul.f32 %v2759, 1.442695
      %v2766 = vpow.pop %v2765
      %v2767 = vmul.f32 %v2760, 1.442695
      %v2768 = vpow.pop %v2767
      %v2769 = vsel %vm579, %v2762, 0.0
      %2770 = vadd.xlane.f32.xlu0 %v2769
      %v2771 = vpop.xlane.xlu0 %2770
      %v2772 = vsel %vm579, %v2764, 0.0
      %2773 = vadd.xlane.f32.xlu0 %v2772
      %v2774 = vpop.xlane.xlu0 %2773
      %v2775 = vsel %vm579, %v2766, 0.0
      %2776 = vadd.xlane.f32.xlu0 %v2775
      %v2777 = vpop.xlane.xlu0 %2776
      %v2778 = vsel %vm579, %v2768, 0.0
      %2779 = vadd.xlane.f32.xlu0 %v2778
      %v2780 = vpop.xlane.xlu0 %2779
      %v2781 = vrcp.pop %v2771
      %v2782 = vrcp.pop %v2774
      %v2783 = vrcp.pop %v2777
      %v2784 = vrcp.pop %v2780
      %v2785 = vmul.f32 %v2762, %v2781
      %v2786 = vmul.f32 %v2764, %v2782
      %v2787 = vmul.f32 %v2766, %v2783
      %v2788 = vmul.f32 %v2768, %v2784
      %v2789 = vpack.c.bf16 %v2786, %v2785
      %v2790 = vpack.c.bf16 %v2788, %v2787
      %2791 = vrot.lane.b32.xlu0 %v2229, 108
      %v2792 = vpop.permute.xlu0 %2791
      %2793 = vrot.lane.b32.xlu0 %v2230, 108
      %v2794 = vpop.permute.xlu0 %2793
      %v2798 = vsel %vm579, %v2789, 0
      %v2801 = vsel %vm579, %v2790, 0
      %2803 = vmatpush.bf16.msra.mxu0 0
      %2804 = vmatpush.bf16.msra.mxu0 0
      %2805 = vmatpush.bf16.msra.mxu0 0
      %2806 = vmatpush.bf16.msra.mxu0 0
      %2807 = vmatpush.bf16.msra.mxu0 0
      %2808 = vmatpush.bf16.msra.mxu0 0
      %2809 = vmatpush.bf16.msra.mxu0 %v2794
      %2810 = vmatpush.bf16.msra.mxu0 %v2792
      %2811 = vmatmul.bf16.gmra.mxu0 %v2798
      %v2812 = vpop.f32.mrf.mxu0
      %v2813 = vadd.f32 0.0, %v2812
      %v2814 = vpop.f32.mrf.mxu0
      %v2815 = vadd.f32 0.0, %v2814
      %2816 = vmatmul.bf16.gmra.mxu0 %v2801
      %v2817 = vpop.f32.mrf.mxu0
      %v2818 = vadd.f32 0.0, %v2817
      %v2819 = vpop.f32.mrf.mxu0
      %v2820 = vadd.f32 0.0, %v2819
      %2821 = vdwg.mxu0
      %v2822 = vld [vmem:[%s7 + $0xc] sm:$0x3]
      %2823 = vrot.lane.b32.xlu0 %v2139, 104
      %v2824 = vpop.permute.xlu0 %2823
      %2825 = vrot.lane.b32.xlu0 %v2140, 104
      %v2826 = vpop.permute.xlu0 %2825
      %v2828 = vsel %vm616, %v2824, 0
      %v2831 = vsel %vm616, %v2826, 0
      %v2834 = vsel %vm2148, %v2822, 0
      %2836 = vmatpush.bf16.msra.mxu0 0
      %2837 = vmatpush.bf16.msra.mxu0 0
      %2838 = vmatpush.bf16.msra.mxu0 0
      %2839 = vmatpush.bf16.msra.mxu0 0
      %2840 = vmatpush.bf16.msra.mxu0 0
      %2841 = vmatpush.bf16.msra.mxu0 0
      %2842 = vmatpush.bf16.msra.mxu0 0
      %2843 = vmatpush.bf16.msra.mxu0 %v2834
      %2844 = vmatmul.bf16.gmra.mxu0 %v2828
      %v2845 = vpop.f32.mrf.mxu0
      %v2846 = vadd.f32 0.0, %v2845
      %v2847 = vpop.f32.mrf.mxu0
      %v2848 = vadd.f32 0.0, %v2847
      %2849 = vmatmul.bf16.gmra.mxu0 %v2831
      %v2850 = vpop.f32.mrf.mxu0
      %v2851 = vadd.f32 0.0, %v2850
      %v2852 = vpop.f32.mrf.mxu0
      %v2853 = vadd.f32 0.0, %v2852
      %2854 = vdwg.mxu0
      %v2855 = vsel %vm579, %v2846, -inf
      %2856 = vmax.xlane.f32.xlu0 %v2855
      %v2857 = vpop.xlane.xlu0 %2856
      %v2858 = vsel %vm579, %v2848, -inf
      %2859 = vmax.xlane.f32.xlu0 %v2858
      %v2860 = vpop.xlane.xlu0 %2859
      %v2861 = vsel %vm579, %v2851, -inf
      %2862 = vmax.xlane.f32.xlu0 %v2861
      %v2863 = vpop.xlane.xlu0 %2862
      %v2864 = vsel %vm579, %v2853, -inf
      %2865 = vmax.xlane.f32.xlu0 %v2864
      %v2866 = vpop.xlane.xlu0 %2865
      %v2867 = vsub.f32 %v2846, %v2857
      %v2868 = vsub.f32 %v2848, %v2860
      %v2869 = vsub.f32 %v2851, %v2863
      %v2870 = vsub.f32 %v2853, %v2866
      %v2871 = vmul.f32 %v2867, 1.442695
      %v2872 = vpow.pop %v2871
      %v2873 = vmul.f32 %v2868, 1.442695
      %v2874 = vpow.pop %v2873
      %v2875 = vmul.f32 %v2869, 1.442695
      %v2876 = vpow.pop %v2875
      %v2877 = vmul.f32 %v2870, 1.442695
      %v2878 = vpow.pop %v2877
      %v2879 = vsel %vm579, %v2872, 0.0
      %2880 = vadd.xlane.f32.xlu0 %v2879
      %v2881 = vpop.xlane.xlu0 %2880
      %v2882 = vsel %vm579, %v2874, 0.0
      %2883 = vadd.xlane.f32.xlu0 %v2882
      %v2884 = vpop.xlane.xlu0 %2883
      %v2885 = vsel %vm579, %v2876, 0.0
      %2886 = vadd.xlane.f32.xlu0 %v2885
      %v2887 = vpop.xlane.xlu0 %2886
      %v2888 = vsel %vm579, %v2878, 0.0
      %2889 = vadd.xlane.f32.xlu0 %v2888
      %v2890 = vpop.xlane.xlu0 %2889
      %v2891 = vrcp.pop %v2881
      %v2892 = vrcp.pop %v2884
      %v2893 = vrcp.pop %v2887
      %v2894 = vrcp.pop %v2890
      %v2895 = vmul.f32 %v2872, %v2891
      %v2896 = vmul.f32 %v2874, %v2892
      %v2897 = vmul.f32 %v2876, %v2893
      %v2898 = vmul.f32 %v2878, %v2894
      %v2899 = vpack.c.bf16 %v2896, %v2895
      %v2900 = vpack.c.bf16 %v2898, %v2897
      %2901 = vrot.lane.b32.xlu0 %v2229, 104
      %v2902 = vpop.permute.xlu0 %2901
      %2903 = vrot.lane.b32.xlu0 %v2230, 104
      %v2904 = vpop.permute.xlu0 %2903
      %v2908 = vsel %vm579, %v2899, 0
      %v2911 = vsel %vm579, %v2900, 0
      %2913 = vmatpush.bf16.msra.mxu0 0
      %2914 = vmatpush.bf16.msra.mxu0 0
      %2915 = vmatpush.bf16.msra.mxu0 0
      %2916 = vmatpush.bf16.msra.mxu0 0
      %2917 = vmatpush.bf16.msra.mxu0 0
      %2918 = vmatpush.bf16.msra.mxu0 0
      %2919 = vmatpush.bf16.msra.mxu0 %v2904
      %2920 = vmatpush.bf16.msra.mxu0 %v2902
      %2921 = vmatmul.bf16.gmra.mxu0 %v2908
      %v2922 = vpop.f32.mrf.mxu0
      %v2923 = vadd.f32 0.0, %v2922
      %v2924 = vpop.f32.mrf.mxu0
      %v2925 = vadd.f32 0.0, %v2924
      %2926 = vmatmul.bf16.gmra.mxu0 %v2911
      %v2927 = vpop.f32.mrf.mxu0
      %v2928 = vadd.f32 0.0, %v2927
      %v2929 = vpop.f32.mrf.mxu0
      %v2930 = vadd.f32 0.0, %v2929
      %2931 = vdwg.mxu0
      %v2932 = vld [vmem:[%s7 + $0xc] sm:$0xc]
      %2933 = vrot.lane.b32.xlu0 %v2139, 100
      %v2934 = vpop.permute.xlu0 %2933
      %2935 = vrot.lane.b32.xlu0 %v2140, 100
      %v2936 = vpop.permute.xlu0 %2935
      %v2938 = vunpack.c.l.b16 %v2932
      %v2939 = vpack.c.b16 %v2938, %v2938
      %v2940 = vrot.slane %v2939, 2
      %v2942 = vsel %vm616, %v2934, 0
      %v2945 = vsel %vm616, %v2936, 0
      %v2948 = vsel %vm2148, %v2940, 0
      %2950 = vmatpush.bf16.msra.mxu0 0
      %2951 = vmatpush.bf16.msra.mxu0 0
      %2952 = vmatpush.bf16.msra.mxu0 0
      %2953 = vmatpush.bf16.msra.mxu0 0
      %2954 = vmatpush.bf16.msra.mxu0 0
      %2955 = vmatpush.bf16.msra.mxu0 0
      %2956 = vmatpush.bf16.msra.mxu0 0
      %2957 = vmatpush.bf16.msra.mxu0 %v2948
      %2958 = vmatmul.bf16.gmra.mxu0 %v2942
      %v2959 = vpop.f32.mrf.mxu0
      %v2960 = vadd.f32 0.0, %v2959
      %v2961 = vpop.f32.mrf.mxu0
      %v2962 = vadd.f32 0.0, %v2961
      %2963 = vmatmul.bf16.gmra.mxu0 %v2945
      %v2964 = vpop.f32.mrf.mxu0
      %v2965 = vadd.f32 0.0, %v2964
      %v2966 = vpop.f32.mrf.mxu0
      %v2967 = vadd.f32 0.0, %v2966
      %2968 = vdwg.mxu0
      %v2969 = vsel %vm579, %v2960, -inf
      %2970 = vmax.xlane.f32.xlu0 %v2969
      %v2971 = vpop.xlane.xlu0 %2970
      %v2972 = vsel %vm579, %v2962, -inf
      %2973 = vmax.xlane.f32.xlu0 %v2972
      %v2974 = vpop.xlane.xlu0 %2973
      %v2975 = vsel %vm579, %v2965, -inf
      %2976 = vmax.xlane.f32.xlu0 %v2975
      %v2977 = vpop.xlane.xlu0 %2976
      %v2978 = vsel %vm579, %v2967, -inf
      %2979 = vmax.xlane.f32.xlu0 %v2978
      %v2980 = vpop.xlane.xlu0 %2979
      %v2981 = vsub.f32 %v2960, %v2971
      %v2982 = vsub.f32 %v2962, %v2974
      %v2983 = vsub.f32 %v2965, %v2977
      %v2984 = vsub.f32 %v2967, %v2980
      %v2985 = vmul.f32 %v2981, 1.442695
      %v2986 = vpow.pop %v2985
      %v2987 = vmul.f32 %v2982, 1.442695
      %v2988 = vpow.pop %v2987
      %v2989 = vmul.f32 %v2983, 1.442695
      %v2990 = vpow.pop %v2989
      %v2991 = vmul.f32 %v2984, 1.442695
      %v2992 = vpow.pop %v2991
      %v2993 = vsel %vm579, %v2986, 0.0
      %2994 = vadd.xlane.f32.xlu0 %v2993
      %v2995 = vpop.xlane.xlu0 %2994
      %v2996 = vsel %vm579, %v2988, 0.0
      %2997 = vadd.xlane.f32.xlu0 %v2996
      %v2998 = vpop.xlane.xlu0 %2997
      %v2999 = vsel %vm579, %v2990, 0.0
      %3000 = vadd.xlane.f32.xlu0 %v2999
      %v3001 = vpop.xlane.xlu0 %3000
      %v3002 = vsel %vm579, %v2992, 0.0
      %3003 = vadd.xlane.f32.xlu0 %v3002
      %v3004 = vpop.xlane.xlu0 %3003
      %v3005 = vrcp.pop %v2995
      %v3006 = vrcp.pop %v2998
      %v3007 = vrcp.pop %v3001
      %v3008 = vrcp.pop %v3004
      %v3009 = vmul.f32 %v2986, %v3005
      %v3010 = vmul.f32 %v2988, %v3006
      %v3011 = vmul.f32 %v2990, %v3007
      %v3012 = vmul.f32 %v2992, %v3008
      %v3013 = vpack.c.bf16 %v3010, %v3009
      %v3014 = vpack.c.bf16 %v3012, %v3011
      %3015 = vrot.lane.b32.xlu0 %v2229, 100
      %v3016 = vpop.permute.xlu0 %3015
      %3017 = vrot.lane.b32.xlu0 %v2230, 100
      %v3018 = vpop.permute.xlu0 %3017
      %v3022 = vsel %vm579, %v3013, 0
      %v3025 = vsel %vm579, %v3014, 0
      %3027 = vmatpush.bf16.msra.mxu0 0
      %3028 = vmatpush.bf16.msra.mxu0 0
      %3029 = vmatpush.bf16.msra.mxu0 0
      %3030 = vmatpush.bf16.msra.mxu0 0
      %3031 = vmatpush.bf16.msra.mxu0 0
      %3032 = vmatpush.bf16.msra.mxu0 0
      %3033 = vmatpush.bf16.msra.mxu0 %v3018
      %3034 = vmatpush.bf16.msra.mxu0 %v3016
      %3035 = vmatmul.bf16.gmra.mxu0 %v3022
      %v3036 = vpop.f32.mrf.mxu0
      %v3037 = vadd.f32 0.0, %v3036
      %v3038 = vpop.f32.mrf.mxu0
      %v3039 = vadd.f32 0.0, %v3038
      %3040 = vmatmul.bf16.gmra.mxu0 %v3025
      %v3041 = vpop.f32.mrf.mxu0
      %v3042 = vadd.f32 0.0, %v3041
      %v3043 = vpop.f32.mrf.mxu0
      %v3044 = vadd.f32 0.0, %v3043
      %3045 = vdwg.mxu0
      %3050 = vrot.lane.b32.xlu0 %v2365, 4
      %v3051 = vpop.permute.xlu0 %3050
      %3052 = vrot.lane.b32.xlu0 %v2367, 4
      %v3053 = vpop.permute.xlu0 %3052
      %3054 = vrot.lane.b32.xlu0 %v2370, 4
      %v3055 = vpop.permute.xlu0 %3054
      %3056 = vrot.lane.b32.xlu0 %v2372, 4
      %v3057 = vpop.permute.xlu0 %3056
      %3066 = vrot.lane.b32.xlu0 %v2475, 8
      %v3067 = vpop.permute.xlu0 %3066
      %3068 = vrot.lane.b32.xlu0 %v2477, 8
      %v3069 = vpop.permute.xlu0 %3068
      %3070 = vrot.lane.b32.xlu0 %v2480, 8
      %v3071 = vpop.permute.xlu0 %3070
      %3072 = vrot.lane.b32.xlu0 %v2482, 8
      %v3073 = vpop.permute.xlu0 %3072
      %3082 = vrot.lane.b32.xlu0 %v2589, 12
      %v3083 = vpop.permute.xlu0 %3082
      %3084 = vrot.lane.b32.xlu0 %v2591, 12
      %v3085 = vpop.permute.xlu0 %3084
      %3086 = vrot.lane.b32.xlu0 %v2594, 12
      %v3087 = vpop.permute.xlu0 %3086
      %3088 = vrot.lane.b32.xlu0 %v2596, 12
      %v3089 = vpop.permute.xlu0 %3088
      %3098 = vrot.lane.b32.xlu0 %v2699, 16
      %v3099 = vpop.permute.xlu0 %3098
      %3100 = vrot.lane.b32.xlu0 %v2701, 16
      %v3101 = vpop.permute.xlu0 %3100
      %3102 = vrot.lane.b32.xlu0 %v2704, 16
      %v3103 = vpop.permute.xlu0 %3102
      %3104 = vrot.lane.b32.xlu0 %v2706, 16
      %v3105 = vpop.permute.xlu0 %3104
      %3114 = vrot.lane.b32.xlu0 %v2813, 20
      %v3115 = vpop.permute.xlu0 %3114
      %3116 = vrot.lane.b32.xlu0 %v2815, 20
      %v3117 = vpop.permute.xlu0 %3116
      %3118 = vrot.lane.b32.xlu0 %v2818, 20
      %v3119 = vpop.permute.xlu0 %3118
      %3120 = vrot.lane.b32.xlu0 %v2820, 20
      %v3121 = vpop.permute.xlu0 %3120
      %3130 = vrot.lane.b32.xlu0 %v2923, 24
      %v3131 = vpop.permute.xlu0 %3130
      %3132 = vrot.lane.b32.xlu0 %v2925, 24
      %v3133 = vpop.permute.xlu0 %3132
      %3134 = vrot.lane.b32.xlu0 %v2928, 24
      %v3135 = vpop.permute.xlu0 %3134
      %3136 = vrot.lane.b32.xlu0 %v2930, 24
      %v3137 = vpop.permute.xlu0 %3136
      %3146 = vrot.lane.b32.xlu0 %v3037, 28
      %v3147 = vpop.permute.xlu0 %3146
      %3148 = vrot.lane.b32.xlu0 %v3039, 28
      %v3149 = vpop.permute.xlu0 %3148
      %3150 = vrot.lane.b32.xlu0 %v3042, 28
      %v3151 = vpop.permute.xlu0 %3150
      %3152 = vrot.lane.b32.xlu0 %v3044, 28
      %v3153 = vpop.permute.xlu0 %3152
      %v3158 = vsel %vm616, %v2249, %v3051
      %v3159 = vsel %vm616, %v2251, %v3053
      %v3160 = vsel %vm616, %v2254, %v3055
      %v3161 = vsel %vm616, %v2256, %v3057
      %v3162 = vsel %vm1901, %v3158, %v3067
      %v3163 = vsel %vm1901, %v3159, %v3069
      %v3164 = vsel %vm1901, %v3160, %v3071
      %v3165 = vsel %vm1901, %v3161, %v3073
      %v3166 = vsel %vm1906, %v3162, %v3083
      %v3167 = vsel %vm1906, %v3163, %v3085
      %v3168 = vsel %vm1906, %v3164, %v3087
      %v3169 = vsel %vm1906, %v3165, %v3089
      %v3170 = vsel %vm664, %v3166, %v3099
      %v3171 = vsel %vm664, %v3167, %v3101
      %v3172 = vsel %vm664, %v3168, %v3103
      %v3173 = vsel %vm664, %v3169, %v3105
      %v3174 = vsel %vm1915, %v3170, %v3115
      %v3175 = vsel %vm1915, %v3171, %v3117
      %v3176 = vsel %vm1915, %v3172, %v3119
      %v3177 = vsel %vm1915, %v3173, %v3121
      %v3178 = vsel %vm1920, %v3174, %v3131
      %v3179 = vsel %vm1920, %v3175, %v3133
      %v3180 = vsel %vm1920, %v3176, %v3135
      %v3181 = vsel %vm1920, %v3177, %v3137
      %v3182 = vsel %vm1925, %v3178, %v3147
      %v3183 = vsel %vm1925, %v3179, %v3149
      %v3184 = vsel %vm1925, %v3180, %v3151
      %v3185 = vsel %vm1925, %v3181, %v3153
      %v3186 = vpack.c.bf16 %v3183, %v3182
      %v3187 = vpack.c.bf16 %v3185, %v3184
      %v3188 = vld [vmem:[%s9] sm:$0xf]
      %v3189 = vld [vmem:[%s9 + $0x4] sm:$0xf]
      %v3190 = vld [vmem:[%s9 + $0x8] sm:$0xf]
      %v3191 = vld [vmem:[%s9 + $0xc] sm:$0xf]
      %v3192 = vld [vmem:[%s10] sm:$0x1]
      %v3194 = vperm.slane %v3192, 0
      %v3200 = vunpack.c.l.b16 %v3188
      %v3201 = vunpack.c.l.b16 %v3189
      %v3202 = vunpack.c.l.b16 %v3190
      %v3203 = vunpack.c.l.b16 %v3191
      %v3204 = vpack.c.b16 %v3201, %v3200
      %v3205 = vpack.c.b16 %v3203, %v3202
      %v3209 = vsel %vm579, %v3186, 0
      %v3212 = vsel %vm579, %v3187, 0
      %3214 = vmatpush.bf16.msra.mxu0 0
      %3215 = vmatpush.bf16.msra.mxu0 0
      %3216 = vmatpush.bf16.msra.mxu0 0
      %3217 = vmatpush.bf16.msra.mxu0 0
      %3218 = vmatpush.bf16.msra.mxu0 0
      %3219 = vmatpush.bf16.msra.mxu0 0
      %3220 = vmatpush.bf16.msra.mxu0 %v3205
      %3221 = vmatpush.bf16.msra.mxu0 %v3204
      %3222 = vmatmul.bf16.gmra.mxu0 %v3209
      %v3223 = vpop.f32.mrf.mxu0
      %v3224 = vadd.f32 %v3194, %v3223
      %v3225 = vpop.f32.mrf.mxu0
      %v3226 = vadd.f32 %v3194, %v3225
      %3227 = vmatmul.bf16.gmra.mxu0 %v3212
      %v3228 = vpop.f32.mrf.mxu0
      %v3229 = vadd.f32 %v3194, %v3228
      %v3230 = vpop.f32.mrf.mxu0
      %v3231 = vadd.f32 %v3194, %v3230
      %3232 = vdwg.mxu0
      %v3233 = vadd.f32 %v2088, %v3224
      %v3234 = vadd.f32 %v2089, %v3226
      %v3235 = vadd.f32 %v2090, %v3229
      %v3236 = vadd.f32 %v2091, %v3231
      %v3237 = vld [vmem:[%s11 + $0x1] sm:$0x1]
      %v3238 = vld [vmem:[%s12 + $0x1] sm:$0x1]
      %v3239 = vsel %vm579, %v3233, 0.0
      %3240 = vadd.xlane.f32.xlu0 %v3239
      %v3241 = vpop.xlane.xlu0 %3240
      %v3242 = vsel %vm579, %v3234, 0.0
      %3243 = vadd.xlane.f32.xlu0 %v3242
      %v3244 = vpop.xlane.xlu0 %3243
      %v3245 = vsel %vm579, %v3235, 0.0
      %3246 = vadd.xlane.f32.xlu0 %v3245
      %v3247 = vpop.xlane.xlu0 %3246
      %v3248 = vsel %vm579, %v3236, 0.0
      %3249 = vadd.xlane.f32.xlu0 %v3248
      %v3250 = vpop.xlane.xlu0 %3249
      %v3251 = vmul.f32 %v3241, %v2005
      %v3252 = vmul.f32 %v3244, %v2005
      %v3253 = vmul.f32 %v3247, %v2005
      %v3254 = vmul.f32 %v3250, %v2005
      %v3255 = vsub.f32 %v3233, %v3251
      %v3256 = vsub.f32 %v3234, %v3252
      %v3257 = vsub.f32 %v3235, %v3253
      %v3258 = vsub.f32 %v3236, %v3254
      %v3259 = vmul.f32 %v3255, %v3255
      %v3260 = vmul.f32 %v3256, %v3256
      %v3261 = vmul.f32 %v3257, %v3257
      %v3262 = vmul.f32 %v3258, %v3258
      %v3263 = vsel %vm579, %v3259, 0.0
      %3264 = vadd.xlane.f32.xlu0 %v3263
      %v3265 = vpop.xlane.xlu0 %3264
      %v3266 = vsel %vm579, %v3260, 0.0
      %3267 = vadd.xlane.f32.xlu0 %v3266
      %v3268 = vpop.xlane.xlu0 %3267
      %v3269 = vsel %vm579, %v3261, 0.0
      %3270 = vadd.xlane.f32.xlu0 %v3269
      %v3271 = vpop.xlane.xlu0 %3270
      %v3272 = vsel %vm579, %v3262, 0.0
      %3273 = vadd.xlane.f32.xlu0 %v3272
      %v3274 = vpop.xlane.xlu0 %3273
      %v3275 = vmul.f32 %v3265, %v2005
      %v3276 = vmul.f32 %v3268, %v2005
      %v3277 = vmul.f32 %v3271, %v2005
      %v3278 = vmul.f32 %v3274, %v2005
      %v3279 = vadd.f32 %v3275, 1e-05
      %v3280 = vadd.f32 %v3276, 1e-05
      %v3281 = vadd.f32 %v3277, 1e-05
      %v3282 = vadd.f32 %v3278, 1e-05
      %v3283 = vrsqrt.pop %v3279
      %v3284 = vmul.f32 %v3283, %v3279
      %v3285 = vmul.f32 %v3284, %v3283
      %v3286 = vmul.f32 0.5, %v3285
      %v3287 = vsub.f32 1.5, %v3286
      %v3288 = vmul.f32 %v3283, %v3287
      %vm3289 = vweird.f32 %v3279
      %vm3290 = vweird.f32 %v3283
      %vm3291 = vmor %vm3289, %vm3290
      %v3292 = vsel %vm3291, %v3283, %v3288
      %v3293 = vrsqrt.pop %v3280
      %v3294 = vmul.f32 %v3293, %v3280
      %v3295 = vmul.f32 %v3294, %v3293
      %v3296 = vmul.f32 0.5, %v3295
      %v3297 = vsub.f32 1.5, %v3296
      %v3298 = vmul.f32 %v3293, %v3297
      %vm3299 = vweird.f32 %v3280
      %vm3300 = vweird.f32 %v3293
      %vm3301 = vmor %vm3299, %vm3300
      %v3302 = vsel %vm3301, %v3293, %v3298
      %v3303 = vrsqrt.pop %v3281
      %v3304 = vmul.f32 %v3303, %v3281
      %v3305 = vmul.f32 %v3304, %v3303
      %v3306 = vmul.f32 0.5, %v3305
      %v3307 = vsub.f32 1.5, %v3306
      %v3308 = vmul.f32 %v3303, %v3307
      %vm3309 = vweird.f32 %v3281
      %vm3310 = vweird.f32 %v3303
      %vm3311 = vmor %vm3309, %vm3310
      %v3312 = vsel %vm3311, %v3303, %v3308
      %v3313 = vrsqrt.pop %v3282
      %v3314 = vmul.f32 %v3313, %v3282
      %v3315 = vmul.f32 %v3314, %v3313
      %v3316 = vmul.f32 0.5, %v3315
      %v3317 = vsub.f32 1.5, %v3316
      %v3318 = vmul.f32 %v3313, %v3317
      %vm3319 = vweird.f32 %v3282
      %vm3320 = vweird.f32 %v3313
      %vm3321 = vmor %vm3319, %vm3320
      %v3322 = vsel %vm3321, %v3313, %v3318
      %v3323 = vmul.f32 %v3255, %v3292
      %v3324 = vmul.f32 %v3256, %v3302
      %v3325 = vmul.f32 %v3257, %v3312
      %v3326 = vmul.f32 %v3258, %v3322
      %v3327 = vperm.slane %v3237, 0
      %v3328 = vmul.f32 %v3323, %v3327
      %v3329 = vmul.f32 %v3324, %v3327
      %v3330 = vmul.f32 %v3325, %v3327
      %v3331 = vmul.f32 %v3326, %v3327
      %v3332 = vperm.slane %v3238, 0
      %v3333 = vadd.f32 %v3328, %v3332
      %v3334 = vadd.f32 %v3329, %v3332
      %v3335 = vadd.f32 %v3330, %v3332
      %v3336 = vadd.f32 %v3331, %v3332
      %v3337 = vpack.c.bf16 %v3334, %v3333
      %v3338 = vpack.c.bf16 %v3336, %v3335
      %v3339 = vld [vmem:[%s13] sm:$0xff]
      %v3340 = vld [vmem:[%s13 + $0x8] sm:$0xff]
      %v3341 = vld [vmem:[%s13 + $0x10] sm:$0xff]
      %v3342 = vld [vmem:[%s13 + $0x18] sm:$0xff]
      %v3343 = vld [vmem:[%s13 + $0x20] sm:$0xff]
      %v3344 = vld [vmem:[%s13 + $0x28] sm:$0xff]
      %v3345 = vld [vmem:[%s13 + $0x30] sm:$0xff]
      %v3346 = vld [vmem:[%s13 + $0x38] sm:$0xff]
      %v3347 = vld [vmem:[%s13 + $0x40] sm:$0xff]
      %v3348 = vld [vmem:[%s13 + $0x48] sm:$0xff]
      %v3349 = vld [vmem:[%s13 + $0x50] sm:$0xff]
      %v3350 = vld [vmem:[%s13 + $0x58] sm:$0xff]
      %v3351 = vld [vmem:[%s13 + $0x60] sm:$0xff]
      %v3352 = vld [vmem:[%s13 + $0x68] sm:$0xff]
      %v3353 = vld [vmem:[%s13 + $0x70] sm:$0xff]
      %v3354 = vld [vmem:[%s13 + $0x78] sm:$0xff]
      %v3355 = vld [vmem:[%s13 + $0x80] sm:$0xff]
      %v3356 = vld [vmem:[%s13 + $0x88] sm:$0xff]
      %v3357 = vld [vmem:[%s13 + $0x90] sm:$0xff]
      %v3358 = vld [vmem:[%s13 + $0x98] sm:$0xff]
      %v3359 = vld [vmem:[%s13 + $0xa0] sm:$0xff]
      %v3360 = vld [vmem:[%s13 + $0xa8] sm:$0xff]
      %v3361 = vld [vmem:[%s13 + $0xb0] sm:$0xff]
      %v3362 = vld [vmem:[%s13 + $0xb8] sm:$0xff]
      %v3363 = vld [vmem:[%s13 + $0xc0] sm:$0xff]
      %v3364 = vld [vmem:[%s13 + $0xc8] sm:$0xff]
      %v3365 = vld [vmem:[%s13 + $0xd0] sm:$0xff]
      %v3366 = vld [vmem:[%s13 + $0xd8] sm:$0xff]
      %v3367 = vld [vmem:[%s13 + $0xe0] sm:$0xff]
      %v3368 = vld [vmem:[%s13 + $0xe8] sm:$0xff]
      %v3369 = vld [vmem:[%s13 + $0xf0] sm:$0xff]
      %v3370 = vld [vmem:[%s13 + $0xf8] sm:$0xff]
      %v3371 = vld [vmem:[%s14] sm:$0xff]
      %v3372 = vld [vmem:[%s14 + $0x8] sm:$0xff]
      %v3375 = vperm.slane %v3371, 0
      %v3376 = vperm.slane %v3371, 1
      %v3377 = vperm.slane %v3371, 2
      %v3378 = vperm.slane %v3371, 3
      %v3379 = vperm.slane %v3371, 4
      %v3380 = vperm.slane %v3371, 5
      %v3381 = vperm.slane %v3371, 6
      %v3382 = vperm.slane %v3371, 7
      %v3383 = vperm.slane %v3372, 0
      %v3384 = vperm.slane %v3372, 1
      %v3385 = vperm.slane %v3372, 2
      %v3386 = vperm.slane %v3372, 3
      %v3387 = vperm.slane %v3372, 4
      %v3388 = vperm.slane %v3372, 5
      %v3389 = vperm.slane %v3372, 6
      %v3390 = vperm.slane %v3372, 7
      %v3439 = vunpack.c.l.b16 %v3339
      %v3440 = vunpack.c.h.b16 %v3339
      %v3441 = vunpack.c.l.b16 %v3340
      %v3442 = vunpack.c.h.b16 %v3340
      %v3443 = vunpack.c.l.b16 %v3341
      %v3444 = vunpack.c.h.b16 %v3341
      %v3445 = vunpack.c.l.b16 %v3342
      %v3446 = vunpack.c.h.b16 %v3342
      %v3447 = vunpack.c.l.b16 %v3343
      %v3448 = vunpack.c.h.b16 %v3343
      %v3449 = vunpack.c.l.b16 %v3344
      %v3450 = vunpack.c.h.b16 %v3344
      %v3451 = vunpack.c.l.b16 %v3345
      %v3452 = vunpack.c.h.b16 %v3345
      %v3453 = vunpack.c.l.b16 %v3346
      %v3454 = vunpack.c.h.b16 %v3346
      %v3455 = vunpack.c.l.b16 %v3347
      %v3456 = vunpack.c.h.b16 %v3347
      %v3457 = vunpack.c.l.b16 %v3348
      %v3458 = vunpack.c.h.b16 %v3348
      %v3459 = vunpack.c.l.b16 %v3349
      %v3460 = vunpack.c.h.b16 %v3349
      %v3461 = vunpack.c.l.b16 %v3350
      %v3462 = vunpack.c.h.b16 %v3350
      %v3463 = vunpack.c.l.b16 %v3351
      %v3464 = vunpack.c.h.b16 %v3351
      %v3465 = vunpack.c.l.b16 %v3352
      %v3466 = vunpack.c.h.b16 %v3352
      %v3467 = vunpack.c.l.b16 %v3353
      %v3468 = vunpack.c.h.b16 %v3353
      %v3469 = vunpack.c.l.b16 %v3354
      %v3470 = vunpack.c.h.b16 %v3354
      %v3471 = vunpack.c.l.b16 %v3355
      %v3472 = vunpack.c.h.b16 %v3355
      %v3473 = vunpack.c.l.b16 %v3356
      %v3474 = vunpack.c.h.b16 %v3356
      %v3475 = vunpack.c.l.b16 %v3357
      %v3476 = vunpack.c.h.b16 %v3357
      %v3477 = vunpack.c.l.b16 %v3358
      %v3478 = vunpack.c.h.b16 %v3358
      %v3479 = vunpack.c.l.b16 %v3359
      %v3480 = vunpack.c.h.b16 %v3359
      %v3481 = vunpack.c.l.b16 %v3360
      %v3482 = vunpack.c.h.b16 %v3360
      %v3483 = vunpack.c.l.b16 %v3361
      %v3484 = vunpack.c.h.b16 %v3361
      %v3485 = vunpack.c.l.b16 %v3362
      %v3486 = vunpack.c.h.b16 %v3362
      %v3487 = vunpack.c.l.b16 %v3363
      %v3488 = vunpack.c.h.b16 %v3363
      %v3489 = vunpack.c.l.b16 %v3364
      %v3490 = vunpack.c.h.b16 %v3364
      %v3491 = vunpack.c.l.b16 %v3365
      %v3492 = vunpack.c.h.b16 %v3365
      %v3493 = vunpack.c.l.b16 %v3366
      %v3494 = vunpack.c.h.b16 %v3366
      %v3495 = vunpack.c.l.b16 %v3367
      %v3496 = vunpack.c.h.b16 %v3367
      %v3497 = vunpack.c.l.b16 %v3368
      %v3498 = vunpack.c.h.b16 %v3368
      %v3499 = vunpack.c.l.b16 %v3369
      %v3500 = vunpack.c.h.b16 %v3369
      %v3501 = vunpack.c.l.b16 %v3370
      %v3502 = vunpack.c.h.b16 %v3370
      %v3503 = vpack.c.b16 %v3455, %v3439
      %v3504 = vpack.c.b16 %v3456, %v3440
      %v3505 = vpack.c.b16 %v3457, %v3441
      %v3506 = vpack.c.b16 %v3458, %v3442
      %v3507 = vpack.c.b16 %v3459, %v3443
      %v3508 = vpack.c.b16 %v3460, %v3444
      %v3509 = vpack.c.b16 %v3461, %v3445
      %v3510 = vpack.c.b16 %v3462, %v3446
      %v3511 = vpack.c.b16 %v3463, %v3447
      %v3512 = vpack.c.b16 %v3464, %v3448
      %v3513 = vpack.c.b16 %v3465, %v3449
      %v3514 = vpack.c.b16 %v3466, %v3450
      %v3515 = vpack.c.b16 %v3467, %v3451
      %v3516 = vpack.c.b16 %v3468, %v3452
      %v3517 = vpack.c.b16 %v3469, %v3453
      %v3518 = vpack.c.b16 %v3470, %v3454
      %v3519 = vpack.c.b16 %v3487, %v3471
      %v3520 = vpack.c.b16 %v3488, %v3472
      %v3521 = vpack.c.b16 %v3489, %v3473
      %v3522 = vpack.c.b16 %v3490, %v3474
      %v3523 = vpack.c.b16 %v3491, %v3475
      %v3524 = vpack.c.b16 %v3492, %v3476
      %v3525 = vpack.c.b16 %v3493, %v3477
      %v3526 = vpack.c.b16 %v3494, %v3478
      %v3527 = vpack.c.b16 %v3495, %v3479
      %v3528 = vpack.c.b16 %v3496, %v3480
      %v3529 = vpack.c.b16 %v3497, %v3481
      %v3530 = vpack.c.b16 %v3498, %v3482
      %v3531 = vpack.c.b16 %v3499, %v3483
      %v3532 = vpack.c.b16 %v3500, %v3484
      %v3533 = vpack.c.b16 %v3501, %v3485
      %v3534 = vpack.c.b16 %v3502, %v3486
      %v3568 = vsel %vm579, %v3337, 0
      %v3571 = vsel %vm579, %v3338, 0
      %3573 = vmatpush.bf16.msra.mxu0 0
      %3574 = vmatpush.bf16.msra.mxu0 0
      %3575 = vmatpush.bf16.msra.mxu0 0
      %3576 = vmatpush.bf16.msra.mxu0 0
      %3577 = vmatpush.bf16.msra.mxu0 0
      %3578 = vmatpush.bf16.msra.mxu0 0
      %3579 = vmatpush.bf16.msra.mxu0 %v3519
      %3580 = vmatpush.bf16.msra.mxu0 %v3503
      %3581 = vmatmul.bf16.gmra.mxu0 %v3568
      %v3582 = vpop.f32.mrf.mxu0
      %v3583 = vadd.f32 %v3375, %v3582
      %v3584 = vpop.f32.mrf.mxu0
      %v3585 = vadd.f32 %v3375, %v3584
      %3586 = vmatmul.bf16.gmra.mxu0 %v3571
      %v3587 = vpop.f32.mrf.mxu0
      %v3588 = vadd.f32 %v3375, %v3587
      %v3589 = vpop.f32.mrf.mxu0
      %v3590 = vadd.f32 %v3375, %v3589
      %3591 = vdwg.mxu0
      %3592 = vmatpush.bf16.msra.mxu0 0
      %3593 = vmatpush.bf16.msra.mxu0 0
      %3594 = vmatpush.bf16.msra.mxu0 0
      %3595 = vmatpush.bf16.msra.mxu0 0
      %3596 = vmatpush.bf16.msra.mxu0 0
      %3597 = vmatpush.bf16.msra.mxu0 0
      %3598 = vmatpush.bf16.msra.mxu0 %v3520
      %3599 = vmatpush.bf16.msra.mxu0 %v3504
      %3600 = vmatmul.bf16.gmra.mxu0 %v3568
      %v3601 = vpop.f32.mrf.mxu0
      %v3602 = vadd.f32 %v3376, %v3601
      %v3603 = vpop.f32.mrf.mxu0
      %v3604 = vadd.f32 %v3376, %v3603
      %3605 = vmatmul.bf16.gmra.mxu0 %v3571
      %v3606 = vpop.f32.mrf.mxu0
      %v3607 = vadd.f32 %v3376, %v3606
      %v3608 = vpop.f32.mrf.mxu0
      %v3609 = vadd.f32 %v3376, %v3608
      %3610 = vdwg.mxu0
      %3611 = vmatpush.bf16.msra.mxu0 0
      %3612 = vmatpush.bf16.msra.mxu0 0
      %3613 = vmatpush.bf16.msra.mxu0 0
      %3614 = vmatpush.bf16.msra.mxu0 0
      %3615 = vmatpush.bf16.msra.mxu0 0
      %3616 = vmatpush.bf16.msra.mxu0 0
      %3617 = vmatpush.bf16.msra.mxu0 %v3521
      %3618 = vmatpush.bf16.msra.mxu0 %v3505
      %3619 = vmatmul.bf16.gmra.mxu0 %v3568
      %v3620 = vpop.f32.mrf.mxu0
      %v3621 = vadd.f32 %v3377, %v3620
      %v3622 = vpop.f32.mrf.mxu0
      %v3623 = vadd.f32 %v3377, %v3622
      %3624 = vmatmul.bf16.gmra.mxu0 %v3571
      %v3625 = vpop.f32.mrf.mxu0
      %v3626 = vadd.f32 %v3377, %v3625
      %v3627 = vpop.f32.mrf.mxu0
      %v3628 = vadd.f32 %v3377, %v3627
      %3629 = vdwg.mxu0
      %3630 = vmatpush.bf16.msra.mxu0 0
      %3631 = vmatpush.bf16.msra.mxu0 0
      %3632 = vmatpush.bf16.msra.mxu0 0
      %3633 = vmatpush.bf16.msra.mxu0 0
      %3634 = vmatpush.bf16.msra.mxu0 0
      %3635 = vmatpush.bf16.msra.mxu0 0
      %3636 = vmatpush.bf16.msra.mxu0 %v3522
      %3637 = vmatpush.bf16.msra.mxu0 %v3506
      %3638 = vmatmul.bf16.gmra.mxu0 %v3568
      %v3639 = vpop.f32.mrf.mxu0
      %v3640 = vadd.f32 %v3378, %v3639
      %v3641 = vpop.f32.mrf.mxu0
      %v3642 = vadd.f32 %v3378, %v3641
      %3643 = vmatmul.bf16.gmra.mxu0 %v3571
      %v3644 = vpop.f32.mrf.mxu0
      %v3645 = vadd.f32 %v3378, %v3644
      %v3646 = vpop.f32.mrf.mxu0
      %v3647 = vadd.f32 %v3378, %v3646
      %3648 = vdwg.mxu0
      %3649 = vmatpush.bf16.msra.mxu0 0
      %3650 = vmatpush.bf16.msra.mxu0 0
      %3651 = vmatpush.bf16.msra.mxu0 0
      %3652 = vmatpush.bf16.msra.mxu0 0
      %3653 = vmatpush.bf16.msra.mxu0 0
      %3654 = vmatpush.bf16.msra.mxu0 0
      %3655 = vmatpush.bf16.msra.mxu0 %v3523
      %3656 = vmatpush.bf16.msra.mxu0 %v3507
      %3657 = vmatmul.bf16.gmra.mxu0 %v3568
      %v3658 = vpop.f32.mrf.mxu0
      %v3659 = vadd.f32 %v3379, %v3658
      %v3660 = vpop.f32.mrf.mxu0
      %v3661 = vadd.f32 %v3379, %v3660
      %3662 = vmatmul.bf16.gmra.mxu0 %v3571
      %v3663 = vpop.f32.mrf.mxu0
      %v3664 = vadd.f32 %v3379, %v3663
      %v3665 = vpop.f32.mrf.mxu0
      %v3666 = vadd.f32 %v3379, %v3665
      %3667 = vdwg.mxu0
      %3668 = vmatpush.bf16.msra.mxu0 0
      %3669 = vmatpush.bf16.msra.mxu0 0
      %3670 = vmatpush.bf16.msra.mxu0 0
      %3671 = vmatpush.bf16.msra.mxu0 0
      %3672 = vmatpush.bf16.msra.mxu0 0
      %3673 = vmatpush.bf16.msra.mxu0 0
      %3674 = vmatpush.bf16.msra.mxu0 %v3524
      %3675 = vmatpush.bf16.msra.mxu0 %v3508
      %3676 = vmatmul.bf16.gmra.mxu0 %v3568
      %v3677 = vpop.f32.mrf.mxu0
      %v3678 = vadd.f32 %v3380, %v3677
      %v3679 = vpop.f32.mrf.mxu0
      %v3680 = vadd.f32 %v3380, %v3679
      %3681 = vmatmul.bf16.gmra.mxu0 %v3571
      %v3682 = vpop.f32.mrf.mxu0
      %v3683 = vadd.f32 %v3380, %v3682
      %v3684 = vpop.f32.mrf.mxu0
      %v3685 = vadd.f32 %v3380, %v3684
      %3686 = vdwg.mxu0
      %3687 = vmatpush.bf16.msra.mxu0 0
      %3688 = vmatpush.bf16.msra.mxu0 0
      %3689 = vmatpush.bf16.msra.mxu0 0
      %3690 = vmatpush.bf16.msra.mxu0 0
      %3691 = vmatpush.bf16.msra.mxu0 0
      %3692 = vmatpush.bf16.msra.mxu0 0
      %3693 = vmatpush.bf16.msra.mxu0 %v3525
      %3694 = vmatpush.bf16.msra.mxu0 %v3509
      %3695 = vmatmul.bf16.gmra.mxu0 %v3568
      %v3696 = vpop.f32.mrf.mxu0
      %v3697 = vadd.f32 %v3381, %v3696
      %v3698 = vpop.f32.mrf.mxu0
      %v3699 = vadd.f32 %v3381, %v3698
      %3700 = vmatmul.bf16.gmra.mxu0 %v3571
      %v3701 = vpop.f32.mrf.mxu0
      %v3702 = vadd.f32 %v3381, %v3701
      %v3703 = vpop.f32.mrf.mxu0
      %v3704 = vadd.f32 %v3381, %v3703
      %3705 = vdwg.mxu0
      %3706 = vmatpush.bf16.msra.mxu0 0
      %3707 = vmatpush.bf16.msra.mxu0 0
      %3708 = vmatpush.bf16.msra.mxu0 0
      %3709 = vmatpush.bf16.msra.mxu0 0
      %3710 = vmatpush.bf16.msra.mxu0 0
      %3711 = vmatpush.bf16.msra.mxu0 0
      %3712 = vmatpush.bf16.msra.mxu0 %v3526
      %3713 = vmatpush.bf16.msra.mxu0 %v3510
      %3714 = vmatmul.bf16.gmra.mxu0 %v3568
      %v3715 = vpop.f32.mrf.mxu0
      %v3716 = vadd.f32 %v3382, %v3715
      %v3717 = vpop.f32.mrf.mxu0
      %v3718 = vadd.f32 %v3382, %v3717
      %3719 = vmatmul.bf16.gmra.mxu0 %v3571
      %v3720 = vpop.f32.mrf.mxu0
      %v3721 = vadd.f32 %v3382, %v3720
      %v3722 = vpop.f32.mrf.mxu0
      %v3723 = vadd.f32 %v3382, %v3722
      %3724 = vdwg.mxu0
      %3725 = vmatpush.bf16.msra.mxu0 0
      %3726 = vmatpush.bf16.msra.mxu0 0
      %3727 = vmatpush.bf16.msra.mxu0 0
      %3728 = vmatpush.bf16.msra.mxu0 0
      %3729 = vmatpush.bf16.msra.mxu0 0
      %3730 = vmatpush.bf16.msra.mxu0 0
      %3731 = vmatpush.bf16.msra.mxu0 %v3527
      %3732 = vmatpush.bf16.msra.mxu0 %v3511
      %3733 = vmatmul.bf16.gmra.mxu0 %v3568
      %v3734 = vpop.f32.mrf.mxu0
      %v3735 = vadd.f32 %v3383, %v3734
      %v3736 = vpop.f32.mrf.mxu0
      %v3737 = vadd.f32 %v3383, %v3736
      %3738 = vmatmul.bf16.gmra.mxu0 %v3571
      %v3739 = vpop.f32.mrf.mxu0
      %v3740 = vadd.f32 %v3383, %v3739
      %v3741 = vpop.f32.mrf.mxu0
      %v3742 = vadd.f32 %v3383, %v3741
      %3743 = vdwg.mxu0
      %3744 = vmatpush.bf16.msra.mxu0 0
      %3745 = vmatpush.bf16.msra.mxu0 0
      %3746 = vmatpush.bf16.msra.mxu0 0
      %3747 = vmatpush.bf16.msra.mxu0 0
      %3748 = vmatpush.bf16.msra.mxu0 0
      %3749 = vmatpush.bf16.msra.mxu0 0
      %3750 = vmatpush.bf16.msra.mxu0 %v3528
      %3751 = vmatpush.bf16.msra.mxu0 %v3512
      %3752 = vmatmul.bf16.gmra.mxu0 %v3568
      %v3753 = vpop.f32.mrf.mxu0
      %v3754 = vadd.f32 %v3384, %v3753
      %v3755 = vpop.f32.mrf.mxu0
      %v3756 = vadd.f32 %v3384, %v3755
      %3757 = vmatmul.bf16.gmra.mxu0 %v3571
      %v3758 = vpop.f32.mrf.mxu0
      %v3759 = vadd.f32 %v3384, %v3758
      %v3760 = vpop.f32.mrf.mxu0
      %v3761 = vadd.f32 %v3384, %v3760
      %3762 = vdwg.mxu0
      %3763 = vmatpush.bf16.msra.mxu0 0
      %3764 = vmatpush.bf16.msra.mxu0 0
      %3765 = vmatpush.bf16.msra.mxu0 0
      %3766 = vmatpush.bf16.msra.mxu0 0
      %3767 = vmatpush.bf16.msra.mxu0 0
      %3768 = vmatpush.bf16.msra.mxu0 0
      %3769 = vmatpush.bf16.msra.mxu0 %v3529
      %3770 = vmatpush.bf16.msra.mxu0 %v3513
      %3771 = vmatmul.bf16.gmra.mxu0 %v3568
      %v3772 = vpop.f32.mrf.mxu0
      %v3773 = vadd.f32 %v3385, %v3772
      %v3774 = vpop.f32.mrf.mxu0
      %v3775 = vadd.f32 %v3385, %v3774
      %3776 = vmatmul.bf16.gmra.mxu0 %v3571
      %v3777 = vpop.f32.mrf.mxu0
      %v3778 = vadd.f32 %v3385, %v3777
      %v3779 = vpop.f32.mrf.mxu0
      %v3780 = vadd.f32 %v3385, %v3779
      %3781 = vdwg.mxu0
      %3782 = vmatpush.bf16.msra.mxu0 0
      %3783 = vmatpush.bf16.msra.mxu0 0
      %3784 = vmatpush.bf16.msra.mxu0 0
      %3785 = vmatpush.bf16.msra.mxu0 0
      %3786 = vmatpush.bf16.msra.mxu0 0
      %3787 = vmatpush.bf16.msra.mxu0 0
      %3788 = vmatpush.bf16.msra.mxu0 %v3530
      %3789 = vmatpush.bf16.msra.mxu0 %v3514
      %3790 = vmatmul.bf16.gmra.mxu0 %v3568
      %v3791 = vpop.f32.mrf.mxu0
      %v3792 = vadd.f32 %v3386, %v3791
      %v3793 = vpop.f32.mrf.mxu0
      %v3794 = vadd.f32 %v3386, %v3793
      %3795 = vmatmul.bf16.gmra.mxu0 %v3571
      %v3796 = vpop.f32.mrf.mxu0
      %v3797 = vadd.f32 %v3386, %v3796
      %v3798 = vpop.f32.mrf.mxu0
      %v3799 = vadd.f32 %v3386, %v3798
      %3800 = vdwg.mxu0
      %3801 = vmatpush.bf16.msra.mxu0 0
      %3802 = vmatpush.bf16.msra.mxu0 0
      %3803 = vmatpush.bf16.msra.mxu0 0
      %3804 = vmatpush.bf16.msra.mxu0 0
      %3805 = vmatpush.bf16.msra.mxu0 0
      %3806 = vmatpush.bf16.msra.mxu0 0
      %3807 = vmatpush.bf16.msra.mxu0 %v3531
      %3808 = vmatpush.bf16.msra.mxu0 %v3515
      %3809 = vmatmul.bf16.gmra.mxu0 %v3568
      %v3810 = vpop.f32.mrf.mxu0
      %v3811 = vadd.f32 %v3387, %v3810
      %v3812 = vpop.f32.mrf.mxu0
      %v3813 = vadd.f32 %v3387, %v3812
      %3814 = vmatmul.bf16.gmra.mxu0 %v3571
      %v3815 = vpop.f32.mrf.mxu0
      %v3816 = vadd.f32 %v3387, %v3815
      %v3817 = vpop.f32.mrf.mxu0
      %v3818 = vadd.f32 %v3387, %v3817
      %3819 = vdwg.mxu0
      %3820 = vmatpush.bf16.msra.mxu0 0
      %3821 = vmatpush.bf16.msra.mxu0 0
      %3822 = vmatpush.bf16.msra.mxu0 0
      %3823 = vmatpush.bf16.msra.mxu0 0
      %3824 = vmatpush.bf16.msra.mxu0 0
      %3825 = vmatpush.bf16.msra.mxu0 0
      %3826 = vmatpush.bf16.msra.mxu0 %v3532
      %3827 = vmatpush.bf16.msra.mxu0 %v3516
      %3828 = vmatmul.bf16.gmra.mxu0 %v3568
      %v3829 = vpop.f32.mrf.mxu0
      %v3830 = vadd.f32 %v3388, %v3829
      %v3831 = vpop.f32.mrf.mxu0
      %v3832 = vadd.f32 %v3388, %v3831
      %3833 = vmatmul.bf16.gmra.mxu0 %v3571
      %v3834 = vpop.f32.mrf.mxu0
      %v3835 = vadd.f32 %v3388, %v3834
      %v3836 = vpop.f32.mrf.mxu0
      %v3837 = vadd.f32 %v3388, %v3836
      %3838 = vdwg.mxu0
      %3839 = vmatpush.bf16.msra.mxu0 0
      %3840 = vmatpush.bf16.msra.mxu0 0
      %3841 = vmatpush.bf16.msra.mxu0 0
      %3842 = vmatpush.bf16.msra.mxu0 0
      %3843 = vmatpush.bf16.msra.mxu0 0
      %3844 = vmatpush.bf16.msra.mxu0 0
      %3845 = vmatpush.bf16.msra.mxu0 %v3533
      %3846 = vmatpush.bf16.msra.mxu0 %v3517
      %3847 = vmatmul.bf16.gmra.mxu0 %v3568
      %v3848 = vpop.f32.mrf.mxu0
      %v3849 = vadd.f32 %v3389, %v3848
      %v3850 = vpop.f32.mrf.mxu0
      %v3851 = vadd.f32 %v3389, %v3850
      %3852 = vmatmul.bf16.gmra.mxu0 %v3571
      %v3853 = vpop.f32.mrf.mxu0
      %v3854 = vadd.f32 %v3389, %v3853
      %v3855 = vpop.f32.mrf.mxu0
      %v3856 = vadd.f32 %v3389, %v3855
      %3857 = vdwg.mxu0
      %3858 = vmatpush.bf16.msra.mxu0 0
      %3859 = vmatpush.bf16.msra.mxu0 0
      %3860 = vmatpush.bf16.msra.mxu0 0
      %3861 = vmatpush.bf16.msra.mxu0 0
      %3862 = vmatpush.bf16.msra.mxu0 0
      %3863 = vmatpush.bf16.msra.mxu0 0
      %3864 = vmatpush.bf16.msra.mxu0 %v3534
      %3865 = vmatpush.bf16.msra.mxu0 %v3518
      %3866 = vmatmul.bf16.gmra.mxu0 %v3568
      %v3867 = vpop.f32.mrf.mxu0
      %v3868 = vadd.f32 %v3390, %v3867
      %v3869 = vpop.f32.mrf.mxu0
      %v3870 = vadd.f32 %v3390, %v3869
      %3871 = vmatmul.bf16.gmra.mxu0 %v3571
      %v3872 = vpop.f32.mrf.mxu0
      %v3873 = vadd.f32 %v3390, %v3872
      %v3874 = vpop.f32.mrf.mxu0
      %v3875 = vadd.f32 %v3390, %v3874
      %3876 = vdwg.mxu0
      %v3877 = vmax.f32 %v3583, 0.0
      %v3878 = vmax.f32 %v3602, 0.0
      %v3879 = vmax.f32 %v3621, 0.0
      %v3880 = vmax.f32 %v3640, 0.0
      %v3881 = vmax.f32 %v3659, 0.0
      %v3882 = vmax.f32 %v3678, 0.0
      %v3883 = vmax.f32 %v3697, 0.0
      %v3884 = vmax.f32 %v3716, 0.0
      %v3885 = vmax.f32 %v3735, 0.0
      %v3886 = vmax.f32 %v3754, 0.0
      %v3887 = vmax.f32 %v3773, 0.0
      %v3888 = vmax.f32 %v3792, 0.0
      %v3889 = vmax.f32 %v3811, 0.0
      %v3890 = vmax.f32 %v3830, 0.0
      %v3891 = vmax.f32 %v3849, 0.0
      %v3892 = vmax.f32 %v3868, 0.0
      %v3893 = vmax.f32 %v3585, 0.0
      %v3894 = vmax.f32 %v3604, 0.0
      %v3895 = vmax.f32 %v3623, 0.0
      %v3896 = vmax.f32 %v3642, 0.0
      %v3897 = vmax.f32 %v3661, 0.0
      %v3898 = vmax.f32 %v3680, 0.0
      %v3899 = vmax.f32 %v3699, 0.0
      %v3900 = vmax.f32 %v3718, 0.0
      %v3901 = vmax.f32 %v3737, 0.0
      %v3902 = vmax.f32 %v3756, 0.0
      %v3903 = vmax.f32 %v3775, 0.0
      %v3904 = vmax.f32 %v3794, 0.0
      %v3905 = vmax.f32 %v3813, 0.0
      %v3906 = vmax.f32 %v3832, 0.0
      %v3907 = vmax.f32 %v3851, 0.0
      %v3908 = vmax.f32 %v3870, 0.0
      %v3909 = vmax.f32 %v3588, 0.0
      %v3910 = vmax.f32 %v3607, 0.0
      %v3911 = vmax.f32 %v3626, 0.0
      %v3912 = vmax.f32 %v3645, 0.0
      %v3913 = vmax.f32 %v3664, 0.0
      %v3914 = vmax.f32 %v3683, 0.0
      %v3915 = vmax.f32 %v3702, 0.0
      %v3916 = vmax.f32 %v3721, 0.0
      %v3917 = vmax.f32 %v3740, 0.0
      %v3918 = vmax.f32 %v3759, 0.0
      %v3919 = vmax.f32 %v3778, 0.0
      %v3920 = vmax.f32 %v3797, 0.0
      %v3921 = vmax.f32 %v3816, 0.0
      %v3922 = vmax.f32 %v3835, 0.0
      %v3923 = vmax.f32 %v3854, 0.0
      %v3924 = vmax.f32 %v3873, 0.0
      %v3925 = vmax.f32 %v3590, 0.0
      %v3926 = vmax.f32 %v3609, 0.0
      %v3927 = vmax.f32 %v3628, 0.0
      %v3928 = vmax.f32 %v3647, 0.0
      %v3929 = vmax.f32 %v3666, 0.0
      %v3930 = vmax.f32 %v3685, 0.0
      %v3931 = vmax.f32 %v3704, 0.0
      %v3932 = vmax.f32 %v3723, 0.0
      %v3933 = vmax.f32 %v3742, 0.0
      %v3934 = vmax.f32 %v3761, 0.0
      %v3935 = vmax.f32 %v3780, 0.0
      %v3936 = vmax.f32 %v3799, 0.0
      %v3937 = vmax.f32 %v3818, 0.0
      %v3938 = vmax.f32 %v3837, 0.0
      %v3939 = vmax.f32 %v3856, 0.0
      %v3940 = vmax.f32 %v3875, 0.0
      %v3941 = vpack.c.bf16 %v3893, %v3877
      %v3942 = vpack.c.bf16 %v3894, %v3878
      %v3943 = vpack.c.bf16 %v3895, %v3879
      %v3944 = vpack.c.bf16 %v3896, %v3880
      %v3945 = vpack.c.bf16 %v3897, %v3881
      %v3946 = vpack.c.bf16 %v3898, %v3882
      %v3947 = vpack.c.bf16 %v3899, %v3883
      %v3948 = vpack.c.bf16 %v3900, %v3884
      %v3949 = vpack.c.bf16 %v3901, %v3885
      %v3950 = vpack.c.bf16 %v3902, %v3886
      %v3951 = vpack.c.bf16 %v3903, %v3887
      %v3952 = vpack.c.bf16 %v3904, %v3888
      %v3953 = vpack.c.bf16 %v3905, %v3889
      %v3954 = vpack.c.bf16 %v3906, %v3890
      %v3955 = vpack.c.bf16 %v3907, %v3891
      %v3956 = vpack.c.bf16 %v3908, %v3892
      %v3957 = vpack.c.bf16 %v3925, %v3909
      %v3958 = vpack.c.bf16 %v3926, %v3910
      %v3959 = vpack.c.bf16 %v3927, %v3911
      %v3960 = vpack.c.bf16 %v3928, %v3912
      %v3961 = vpack.c.bf16 %v3929, %v3913
      %v3962 = vpack.c.bf16 %v3930, %v3914
      %v3963 = vpack.c.bf16 %v3931, %v3915
      %v3964 = vpack.c.bf16 %v3932, %v3916
      %v3965 = vpack.c.bf16 %v3933, %v3917
      %v3966 = vpack.c.bf16 %v3934, %v3918
      %v3967 = vpack.c.bf16 %v3935, %v3919
      %v3968 = vpack.c.bf16 %v3936, %v3920
      %v3969 = vpack.c.bf16 %v3937, %v3921
      %v3970 = vpack.c.bf16 %v3938, %v3922
      %v3971 = vpack.c.bf16 %v3939, %v3923
      %v3972 = vpack.c.bf16 %v3940, %v3924
      %v3973 = vld [vmem:[%s15] sm:$0xf]
      %v3974 = vld [vmem:[%s15 + $0x4] sm:$0xf]
      %v3975 = vld [vmem:[%s15 + $0x8] sm:$0xf]
      %v3976 = vld [vmem:[%s15 + $0xc] sm:$0xf]
      %v3977 = vld [vmem:[%s15 + $0x10] sm:$0xf]
      %v3978 = vld [vmem:[%s15 + $0x14] sm:$0xf]
      %v3979 = vld [vmem:[%s15 + $0x18] sm:$0xf]
      %v3980 = vld [vmem:[%s15 + $0x1c] sm:$0xf]
      %v3981 = vld [vmem:[%s15 + $0x20] sm:$0xf]
      %v3982 = vld [vmem:[%s15 + $0x24] sm:$0xf]
      %v3983 = vld [vmem:[%s15 + $0x28] sm:$0xf]
      %v3984 = vld [vmem:[%s15 + $0x2c] sm:$0xf]
      %v3985 = vld [vmem:[%s15 + $0x30] sm:$0xf]
      %v3986 = vld [vmem:[%s15 + $0x34] sm:$0xf]
      %v3987 = vld [vmem:[%s15 + $0x38] sm:$0xf]
      %v3988 = vld [vmem:[%s15 + $0x3c] sm:$0xf]
      %v3989 = vld [vmem:[%s15 + $0x40] sm:$0xf]
      %v3990 = vld [vmem:[%s15 + $0x44] sm:$0xf]
      %v3991 = vld [vmem:[%s15 + $0x48] sm:$0xf]
      %v3992 = vld [vmem:[%s15 + $0x4c] sm:$0xf]
      %v3993 = vld [vmem:[%s15 + $0x50] sm:$0xf]
      %v3994 = vld [vmem:[%s15 + $0x54] sm:$0xf]
      %v3995 = vld [vmem:[%s15 + $0x58] sm:$0xf]
      %v3996 = vld [vmem:[%s15 + $0x5c] sm:$0xf]
      %v3997 = vld [vmem:[%s15 + $0x60] sm:$0xf]
      %v3998 = vld [vmem:[%s15 + $0x64] sm:$0xf]
      %v3999 = vld [vmem:[%s15 + $0x68] sm:$0xf]
      %v4000 = vld [vmem:[%s15 + $0x6c] sm:$0xf]
      %v4001 = vld [vmem:[%s15 + $0x70] sm:$0xf]
      %v4002 = vld [vmem:[%s15 + $0x74] sm:$0xf]
      %v4003 = vld [vmem:[%s15 + $0x78] sm:$0xf]
      %v4004 = vld [vmem:[%s15 + $0x7c] sm:$0xf]
      %v4005 = vld [vmem:[%s15 + $0x80] sm:$0xf]
      %v4006 = vld [vmem:[%s15 + $0x84] sm:$0xf]
      %v4007 = vld [vmem:[%s15 + $0x88] sm:$0xf]
      %v4008 = vld [vmem:[%s15 + $0x8c] sm:$0xf]
      %v4009 = vld [vmem:[%s15 + $0x90] sm:$0xf]
      %v4010 = vld [vmem:[%s15 + $0x94] sm:$0xf]
      %v4011 = vld [vmem:[%s15 + $0x98] sm:$0xf]
      %v4012 = vld [vmem:[%s15 + $0x9c] sm:$0xf]
      %v4013 = vld [vmem:[%s15 + $0xa0] sm:$0xf]
      %v4014 = vld [vmem:[%s15 + $0xa4] sm:$0xf]
      %v4015 = vld [vmem:[%s15 + $0xa8] sm:$0xf]
      %v4016 = vld [vmem:[%s15 + $0xac] sm:$0xf]
      %v4017 = vld [vmem:[%s15 + $0xb0] sm:$0xf]
      %v4018 = vld [vmem:[%s15 + $0xb4] sm:$0xf]
      %v4019 = vld [vmem:[%s15 + $0xb8] sm:$0xf]
      %v4020 = vld [vmem:[%s15 + $0xbc] sm:$0xf]
      %v4021 = vld [vmem:[%s15 + $0xc0] sm:$0xf]
      %v4022 = vld [vmem:[%s15 + $0xc4] sm:$0xf]
      %v4023 = vld [vmem:[%s15 + $0xc8] sm:$0xf]
      %v4024 = vld [vmem:[%s15 + $0xcc] sm:$0xf]
      %v4025 = vld [vmem:[%s15 + $0xd0] sm:$0xf]
      %v4026 = vld [vmem:[%s15 + $0xd4] sm:$0xf]
      %v4027 = vld [vmem:[%s15 + $0xd8] sm:$0xf]
      %v4028 = vld [vmem:[%s15 + $0xdc] sm:$0xf]
      %v4029 = vld [vmem:[%s15 + $0xe0] sm:$0xf]
      %v4030 = vld [vmem:[%s15 + $0xe4] sm:$0xf]
      %v4031 = vld [vmem:[%s15 + $0xe8] sm:$0xf]
      %v4032 = vld [vmem:[%s15 + $0xec] sm:$0xf]
      %v4033 = vld [vmem:[%s15 + $0xf0] sm:$0xf]
      %v4034 = vld [vmem:[%s15 + $0xf4] sm:$0xf]
      %v4035 = vld [vmem:[%s15 + $0xf8] sm:$0xf]
      %v4036 = vld [vmem:[%s15 + $0xfc] sm:$0xf]
      %v4037 = vld [vmem:[%s15 + $0x100] sm:$0xf]
      %v4038 = vld [vmem:[%s15 + $0x104] sm:$0xf]
      %v4039 = vld [vmem:[%s15 + $0x108] sm:$0xf]
      %v4040 = vld [vmem:[%s15 + $0x10c] sm:$0xf]
      %v4041 = vld [vmem:[%s15 + $0x110] sm:$0xf]
      %v4042 = vld [vmem:[%s15 + $0x114] sm:$0xf]
      %v4043 = vld [vmem:[%s15 + $0x118] sm:$0xf]
      %v4044 = vld [vmem:[%s15 + $0x11c] sm:$0xf]
      %v4045 = vld [vmem:[%s15 + $0x120] sm:$0xf]
      %v4046 = vld [vmem:[%s15 + $0x124] sm:$0xf]
      %v4047 = vld [vmem:[%s15 + $0x128] sm:$0xf]
      %v4048 = vld [vmem:[%s15 + $0x12c] sm:$0xf]
      %v4049 = vld [vmem:[%s15 + $0x130] sm:$0xf]
      %v4050 = vld [vmem:[%s15 + $0x134] sm:$0xf]
      %v4051 = vld [vmem:[%s15 + $0x138] sm:$0xf]
      %v4052 = vld [vmem:[%s15 + $0x13c] sm:$0xf]
      %v4053 = vld [vmem:[%s15 + $0x140] sm:$0xf]
      %v4054 = vld [vmem:[%s15 + $0x144] sm:$0xf]
      %v4055 = vld [vmem:[%s15 + $0x148] sm:$0xf]
      %v4056 = vld [vmem:[%s15 + $0x14c] sm:$0xf]
      %v4057 = vld [vmem:[%s15 + $0x150] sm:$0xf]
      %v4058 = vld [vmem:[%s15 + $0x154] sm:$0xf]
      %v4059 = vld [vmem:[%s15 + $0x158] sm:$0xf]
      %v4060 = vld [vmem:[%s15 + $0x15c] sm:$0xf]
      %v4061 = vld [vmem:[%s15 + $0x160] sm:$0xf]
      %v4062 = vld [vmem:[%s15 + $0x164] sm:$0xf]
      %v4063 = vld [vmem:[%s15 + $0x168] sm:$0xf]
      %v4064 = vld [vmem:[%s15 + $0x16c] sm:$0xf]
      %v4065 = vld [vmem:[%s15 + $0x170] sm:$0xf]
      %v4066 = vld [vmem:[%s15 + $0x174] sm:$0xf]
      %v4067 = vld [vmem:[%s15 + $0x178] sm:$0xf]
      %v4068 = vld [vmem:[%s15 + $0x17c] sm:$0xf]
      %v4069 = vld [vmem:[%s15 + $0x180] sm:$0xf]
      %v4070 = vld [vmem:[%s15 + $0x184] sm:$0xf]
      %v4071 = vld [vmem:[%s15 + $0x188] sm:$0xf]
      %v4072 = vld [vmem:[%s15 + $0x18c] sm:$0xf]
      %v4073 = vld [vmem:[%s15 + $0x190] sm:$0xf]
      %v4074 = vld [vmem:[%s15 + $0x194] sm:$0xf]
      %v4075 = vld [vmem:[%s15 + $0x198] sm:$0xf]
      %v4076 = vld [vmem:[%s15 + $0x19c] sm:$0xf]
      %v4077 = vld [vmem:[%s15 + $0x1a0] sm:$0xf]
      %v4078 = vld [vmem:[%s15 + $0x1a4] sm:$0xf]
      %v4079 = vld [vmem:[%s15 + $0x1a8] sm:$0xf]
      %v4080 = vld [vmem:[%s15 + $0x1ac] sm:$0xf]
      %v4081 = vld [vmem:[%s15 + $0x1b0] sm:$0xf]
      %v4082 = vld [vmem:[%s15 + $0x1b4] sm:$0xf]
      %v4083 = vld [vmem:[%s15 + $0x1b8] sm:$0xf]
      %v4084 = vld [vmem:[%s15 + $0x1bc] sm:$0xf]
      %v4085 = vld [vmem:[%s15 + $0x1c0] sm:$0xf]
      %v4086 = vld [vmem:[%s15 + $0x1c4] sm:$0xf]
      %v4087 = vld [vmem:[%s15 + $0x1c8] sm:$0xf]
      %v4088 = vld [vmem:[%s15 + $0x1cc] sm:$0xf]
      %v4089 = vld [vmem:[%s15 + $0x1d0] sm:$0xf]
      %v4090 = vld [vmem:[%s15 + $0x1d4] sm:$0xf]
      %v4091 = vld [vmem:[%s15 + $0x1d8] sm:$0xf]
      %v4092 = vld [vmem:[%s15 + $0x1dc] sm:$0xf]
      %v4093 = vld [vmem:[%s15 + $0x1e0] sm:$0xf]
      %v4094 = vld [vmem:[%s15 + $0x1e4] sm:$0xf]
      %v4095 = vld [vmem:[%s15 + $0x1e8] sm:$0xf]
      %v4096 = vld [vmem:[%s15 + $0x1ec] sm:$0xf]
      %v4097 = vld [vmem:[%s15 + $0x1f0] sm:$0xf]
      %v4098 = vld [vmem:[%s15 + $0x1f4] sm:$0xf]
      %v4099 = vld [vmem:[%s15 + $0x1f8] sm:$0xf]
      %v4100 = vld [vmem:[%s15 + $0x1fc] sm:$0xf]
      %v4101 = vld [vmem:[%s15 + $0x200] sm:$0xf]
      %v4102 = vld [vmem:[%s15 + $0x204] sm:$0xf]
      %v4103 = vld [vmem:[%s15 + $0x208] sm:$0xf]
      %v4104 = vld [vmem:[%s15 + $0x20c] sm:$0xf]
      %v4105 = vld [vmem:[%s15 + $0x210] sm:$0xf]
      %v4106 = vld [vmem:[%s15 + $0x214] sm:$0xf]
      %v4107 = vld [vmem:[%s15 + $0x218] sm:$0xf]
      %v4108 = vld [vmem:[%s15 + $0x21c] sm:$0xf]
      %v4109 = vld [vmem:[%s15 + $0x220] sm:$0xf]
      %v4110 = vld [vmem:[%s15 + $0x224] sm:$0xf]
      %v4111 = vld [vmem:[%s15 + $0x228] sm:$0xf]
      %v4112 = vld [vmem:[%s15 + $0x22c] sm:$0xf]
      %v4113 = vld [vmem:[%s15 + $0x230] sm:$0xf]
      %v4114 = vld [vmem:[%s15 + $0x234] sm:$0xf]
      %v4115 = vld [vmem:[%s15 + $0x238] sm:$0xf]
      %v4116 = vld [vmem:[%s15 + $0x23c] sm:$0xf]
      %v4117 = vld [vmem:[%s15 + $0x240] sm:$0xf]
      %v4118 = vld [vmem:[%s15 + $0x244] sm:$0xf]
      %v4119 = vld [vmem:[%s15 + $0x248] sm:$0xf]
      %v4120 = vld [vmem:[%s15 + $0x24c] sm:$0xf]
      %v4121 = vld [vmem:[%s15 + $0x250] sm:$0xf]
      %v4122 = vld [vmem:[%s15 + $0x254] sm:$0xf]
      %v4123 = vld [vmem:[%s15 + $0x258] sm:$0xf]
      %v4124 = vld [vmem:[%s15 + $0x25c] sm:$0xf]
      %v4125 = vld [vmem:[%s15 + $0x260] sm:$0xf]
      %v4126 = vld [vmem:[%s15 + $0x264] sm:$0xf]
      %v4127 = vld [vmem:[%s15 + $0x268] sm:$0xf]
      %v4128 = vld [vmem:[%s15 + $0x26c] sm:$0xf]
      %v4129 = vld [vmem:[%s15 + $0x270] sm:$0xf]
      %v4130 = vld [vmem:[%s15 + $0x274] sm:$0xf]
      %v4131 = vld [vmem:[%s15 + $0x278] sm:$0xf]
      %v4132 = vld [vmem:[%s15 + $0x27c] sm:$0xf]
      %v4133 = vld [vmem:[%s15 + $0x280] sm:$0xf]
      %v4134 = vld [vmem:[%s15 + $0x284] sm:$0xf]
      %v4135 = vld [vmem:[%s15 + $0x288] sm:$0xf]
      %v4136 = vld [vmem:[%s15 + $0x28c] sm:$0xf]
      %v4137 = vld [vmem:[%s15 + $0x290] sm:$0xf]
      %v4138 = vld [vmem:[%s15 + $0x294] sm:$0xf]
      %v4139 = vld [vmem:[%s15 + $0x298] sm:$0xf]
      %v4140 = vld [vmem:[%s15 + $0x29c] sm:$0xf]
      %v4141 = vld [vmem:[%s15 + $0x2a0] sm:$0xf]
      %v4142 = vld [vmem:[%s15 + $0x2a4] sm:$0xf]
      %v4143 = vld [vmem:[%s15 + $0x2a8] sm:$0xf]
      %v4144 = vld [vmem:[%s15 + $0x2ac] sm:$0xf]
      %v4145 = vld [vmem:[%s15 + $0x2b0] sm:$0xf]
      %v4146 = vld [vmem:[%s15 + $0x2b4] sm:$0xf]
      %v4147 = vld [vmem:[%s15 + $0x2b8] sm:$0xf]
      %v4148 = vld [vmem:[%s15 + $0x2bc] sm:$0xf]
      %v4149 = vld [vmem:[%s15 + $0x2c0] sm:$0xf]
      %v4150 = vld [vmem:[%s15 + $0x2c4] sm:$0xf]
      %v4151 = vld [vmem:[%s15 + $0x2c8] sm:$0xf]
      %v4152 = vld [vmem:[%s15 + $0x2cc] sm:$0xf]
      %v4153 = vld [vmem:[%s15 + $0x2d0] sm:$0xf]
      %v4154 = vld [vmem:[%s15 + $0x2d4] sm:$0xf]
      %v4155 = vld [vmem:[%s15 + $0x2d8] sm:$0xf]
      %v4156 = vld [vmem:[%s15 + $0x2dc] sm:$0xf]
      %v4157 = vld [vmem:[%s15 + $0x2e0] sm:$0xf]
      %v4158 = vld [vmem:[%s15 + $0x2e4] sm:$0xf]
      %v4159 = vld [vmem:[%s15 + $0x2e8] sm:$0xf]
      %v4160 = vld [vmem:[%s15 + $0x2ec] sm:$0xf]
      %v4161 = vld [vmem:[%s15 + $0x2f0] sm:$0xf]
      %v4162 = vld [vmem:[%s15 + $0x2f4] sm:$0xf]
      %v4163 = vld [vmem:[%s15 + $0x2f8] sm:$0xf]
      %v4164 = vld [vmem:[%s15 + $0x2fc] sm:$0xf]
      %v4165 = vld [vmem:[%s15 + $0x300] sm:$0xf]
      %v4166 = vld [vmem:[%s15 + $0x304] sm:$0xf]
      %v4167 = vld [vmem:[%s15 + $0x308] sm:$0xf]
      %v4168 = vld [vmem:[%s15 + $0x30c] sm:$0xf]
      %v4169 = vld [vmem:[%s15 + $0x310] sm:$0xf]
      %v4170 = vld [vmem:[%s15 + $0x314] sm:$0xf]
      %v4171 = vld [vmem:[%s15 + $0x318] sm:$0xf]
      %v4172 = vld [vmem:[%s15 + $0x31c] sm:$0xf]
      %v4173 = vld [vmem:[%s15 + $0x320] sm:$0xf]
      %v4174 = vld [vmem:[%s15 + $0x324] sm:$0xf]
      %v4175 = vld [vmem:[%s15 + $0x328] sm:$0xf]
      %v4176 = vld [vmem:[%s15 + $0x32c] sm:$0xf]
      %v4177 = vld [vmem:[%s15 + $0x330] sm:$0xf]
      %v4178 = vld [vmem:[%s15 + $0x334] sm:$0xf]
      %v4179 = vld [vmem:[%s15 + $0x338] sm:$0xf]
      %v4180 = vld [vmem:[%s15 + $0x33c] sm:$0xf]
      %v4181 = vld [vmem:[%s15 + $0x340] sm:$0xf]
      %v4182 = vld [vmem:[%s15 + $0x344] sm:$0xf]
      %v4183 = vld [vmem:[%s15 + $0x348] sm:$0xf]
      %v4184 = vld [vmem:[%s15 + $0x34c] sm:$0xf]
      %v4185 = vld [vmem:[%s15 + $0x350] sm:$0xf]
      %v4186 = vld [vmem:[%s15 + $0x354] sm:$0xf]
      %v4187 = vld [vmem:[%s15 + $0x358] sm:$0xf]
      %v4188 = vld [vmem:[%s15 + $0x35c] sm:$0xf]
      %v4189 = vld [vmem:[%s15 + $0x360] sm:$0xf]
      %v4190 = vld [vmem:[%s15 + $0x364] sm:$0xf]
      %v4191 = vld [vmem:[%s15 + $0x368] sm:$0xf]
      %v4192 = vld [vmem:[%s15 + $0x36c] sm:$0xf]
      %v4193 = vld [vmem:[%s15 + $0x370] sm:$0xf]
      %v4194 = vld [vmem:[%s15 + $0x374] sm:$0xf]
      %v4195 = vld [vmem:[%s15 + $0x378] sm:$0xf]
      %v4196 = vld [vmem:[%s15 + $0x37c] sm:$0xf]
      %v4197 = vld [vmem:[%s15 + $0x380] sm:$0xf]
      %v4198 = vld [vmem:[%s15 + $0x384] sm:$0xf]
      %v4199 = vld [vmem:[%s15 + $0x388] sm:$0xf]
      %v4200 = vld [vmem:[%s15 + $0x38c] sm:$0xf]
      %v4201 = vld [vmem:[%s15 + $0x390] sm:$0xf]
      %v4202 = vld [vmem:[%s15 + $0x394] sm:$0xf]
      %v4203 = vld [vmem:[%s15 + $0x398] sm:$0xf]
      %v4204 = vld [vmem:[%s15 + $0x39c] sm:$0xf]
      %v4205 = vld [vmem:[%s15 + $0x3a0] sm:$0xf]
      %v4206 = vld [vmem:[%s15 + $0x3a4] sm:$0xf]
      %v4207 = vld [vmem:[%s15 + $0x3a8] sm:$0xf]
      %v4208 = vld [vmem:[%s15 + $0x3ac] sm:$0xf]
      %v4209 = vld [vmem:[%s15 + $0x3b0] sm:$0xf]
      %v4210 = vld [vmem:[%s15 + $0x3b4] sm:$0xf]
      %v4211 = vld [vmem:[%s15 + $0x3b8] sm:$0xf]
      %v4212 = vld [vmem:[%s15 + $0x3bc] sm:$0xf]
      %v4213 = vld [vmem:[%s15 + $0x3c0] sm:$0xf]
      %v4214 = vld [vmem:[%s15 + $0x3c4] sm:$0xf]
      %v4215 = vld [vmem:[%s15 + $0x3c8] sm:$0xf]
      %v4216 = vld [vmem:[%s15 + $0x3cc] sm:$0xf]
      %v4217 = vld [vmem:[%s15 + $0x3d0] sm:$0xf]
      %v4218 = vld [vmem:[%s15 + $0x3d4] sm:$0xf]
      %v4219 = vld [vmem:[%s15 + $0x3d8] sm:$0xf]
      %v4220 = vld [vmem:[%s15 + $0x3dc] sm:$0xf]
      %v4221 = vld [vmem:[%s15 + $0x3e0] sm:$0xf]
      %v4222 = vld [vmem:[%s15 + $0x3e4] sm:$0xf]
      %v4223 = vld [vmem:[%s15 + $0x3e8] sm:$0xf]
      %v4224 = vld [vmem:[%s15 + $0x3ec] sm:$0xf]
      %v4225 = vld [vmem:[%s15 + $0x3f0] sm:$0xf]
      %v4226 = vld [vmem:[%s15 + $0x3f4] sm:$0xf]
      %v4227 = vld [vmem:[%s15 + $0x3f8] sm:$0xf]
      %v4228 = vld [vmem:[%s15 + $0x3fc] sm:$0xf]
      %v4229 = vld [vmem:[%s16] sm:$0x1]
      %v4231 = vperm.slane %v4229, 0
      %v4489 = vunpack.c.l.b16 %v3973
      %v4490 = vunpack.c.l.b16 %v3974
      %v4491 = vunpack.c.l.b16 %v3975
      %v4492 = vunpack.c.l.b16 %v3976
      %v4493 = vunpack.c.l.b16 %v3977
      %v4494 = vunpack.c.l.b16 %v3978
      %v4495 = vunpack.c.l.b16 %v3979
      %v4496 = vunpack.c.l.b16 %v3980
      %v4497 = vunpack.c.l.b16 %v3981
      %v4498 = vunpack.c.l.b16 %v3982
      %v4499 = vunpack.c.l.b16 %v3983
      %v4500 = vunpack.c.l.b16 %v3984
      %v4501 = vunpack.c.l.b16 %v3985
      %v4502 = vunpack.c.l.b16 %v3986
      %v4503 = vunpack.c.l.b16 %v3987
      %v4504 = vunpack.c.l.b16 %v3988
      %v4505 = vunpack.c.l.b16 %v3989
      %v4506 = vunpack.c.l.b16 %v3990
      %v4507 = vunpack.c.l.b16 %v3991
      %v4508 = vunpack.c.l.b16 %v3992
      %v4509 = vunpack.c.l.b16 %v3993
      %v4510 = vunpack.c.l.b16 %v3994
      %v4511 = vunpack.c.l.b16 %v3995
      %v4512 = vunpack.c.l.b16 %v3996
      %v4513 = vunpack.c.l.b16 %v3997
      %v4514 = vunpack.c.l.b16 %v3998
      %v4515 = vunpack.c.l.b16 %v3999
      %v4516 = vunpack.c.l.b16 %v4000
      %v4517 = vunpack.c.l.b16 %v4001
      %v4518 = vunpack.c.l.b16 %v4002
      %v4519 = vunpack.c.l.b16 %v4003
      %v4520 = vunpack.c.l.b16 %v4004
      %v4521 = vunpack.c.l.b16 %v4005
      %v4522 = vunpack.c.l.b16 %v4006
      %v4523 = vunpack.c.l.b16 %v4007
      %v4524 = vunpack.c.l.b16 %v4008
      %v4525 = vunpack.c.l.b16 %v4009
      %v4526 = vunpack.c.l.b16 %v4010
      %v4527 = vunpack.c.l.b16 %v4011
      %v4528 = vunpack.c.l.b16 %v4012
      %v4529 = vunpack.c.l.b16 %v4013
      %v4530 = vunpack.c.l.b16 %v4014
      %v4531 = vunpack.c.l.b16 %v4015
      %v4532 = vunpack.c.l.b16 %v4016
      %v4533 = vunpack.c.l.b16 %v4017
      %v4534 = vunpack.c.l.b16 %v4018
      %v4535 = vunpack.c.l.b16 %v4019
      %v4536 = vunpack.c.l.b16 %v4020
      %v4537 = vunpack.c.l.b16 %v4021
      %v4538 = vunpack.c.l.b16 %v4022
      %v4539 = vunpack.c.l.b16 %v4023
      %v4540 = vunpack.c.l.b16 %v4024
      %v4541 = vunpack.c.l.b16 %v4025
      %v4542 = vunpack.c.l.b16 %v4026
      %v4543 = vunpack.c.l.b16 %v4027
      %v4544 = vunpack.c.l.b16 %v4028
      %v4545 = vunpack.c.l.b16 %v4029
      %v4546 = vunpack.c.l.b16 %v4030
      %v4547 = vunpack.c.l.b16 %v4031
      %v4548 = vunpack.c.l.b16 %v4032
      %v4549 = vunpack.c.l.b16 %v4033
      %v4550 = vunpack.c.l.b16 %v4034
      %v4551 = vunpack.c.l.b16 %v4035
      %v4552 = vunpack.c.l.b16 %v4036
      %v4553 = vunpack.c.l.b16 %v4037
      %v4554 = vunpack.c.l.b16 %v4038
      %v4555 = vunpack.c.l.b16 %v4039
      %v4556 = vunpack.c.l.b16 %v4040
      %v4557 = vunpack.c.l.b16 %v4041
      %v4558 = vunpack.c.l.b16 %v4042
      %v4559 = vunpack.c.l.b16 %v4043
      %v4560 = vunpack.c.l.b16 %v4044
      %v4561 = vunpack.c.l.b16 %v4045
      %v4562 = vunpack.c.l.b16 %v4046
      %v4563 = vunpack.c.l.b16 %v4047
      %v4564 = vunpack.c.l.b16 %v4048
      %v4565 = vunpack.c.l.b16 %v4049
      %v4566 = vunpack.c.l.b16 %v4050
      %v4567 = vunpack.c.l.b16 %v4051
      %v4568 = vunpack.c.l.b16 %v4052
      %v4569 = vunpack.c.l.b16 %v4053
      %v4570 = vunpack.c.l.b16 %v4054
      %v4571 = vunpack.c.l.b16 %v4055
      %v4572 = vunpack.c.l.b16 %v4056
      %v4573 = vunpack.c.l.b16 %v4057
      %v4574 = vunpack.c.l.b16 %v4058
      %v4575 = vunpack.c.l.b16 %v4059
      %v4576 = vunpack.c.l.b16 %v4060
      %v4577 = vunpack.c.l.b16 %v4061
      %v4578 = vunpack.c.l.b16 %v4062
      %v4579 = vunpack.c.l.b16 %v4063
      %v4580 = vunpack.c.l.b16 %v4064
      %v4581 = vunpack.c.l.b16 %v4065
      %v4582 = vunpack.c.l.b16 %v4066
      %v4583 = vunpack.c.l.b16 %v4067
      %v4584 = vunpack.c.l.b16 %v4068
      %v4585 = vunpack.c.l.b16 %v4069
      %v4586 = vunpack.c.l.b16 %v4070
      %v4587 = vunpack.c.l.b16 %v4071
      %v4588 = vunpack.c.l.b16 %v4072
      %v4589 = vunpack.c.l.b16 %v4073
      %v4590 = vunpack.c.l.b16 %v4074
      %v4591 = vunpack.c.l.b16 %v4075
      %v4592 = vunpack.c.l.b16 %v4076
      %v4593 = vunpack.c.l.b16 %v4077
      %v4594 = vunpack.c.l.b16 %v4078
      %v4595 = vunpack.c.l.b16 %v4079
      %v4596 = vunpack.c.l.b16 %v4080
      %v4597 = vunpack.c.l.b16 %v4081
      %v4598 = vunpack.c.l.b16 %v4082
      %v4599 = vunpack.c.l.b16 %v4083
      %v4600 = vunpack.c.l.b16 %v4084
      %v4601 = vunpack.c.l.b16 %v4085
      %v4602 = vunpack.c.l.b16 %v4086
      %v4603 = vunpack.c.l.b16 %v4087
      %v4604 = vunpack.c.l.b16 %v4088
      %v4605 = vunpack.c.l.b16 %v4089
      %v4606 = vunpack.c.l.b16 %v4090
      %v4607 = vunpack.c.l.b16 %v4091
      %v4608 = vunpack.c.l.b16 %v4092
      %v4609 = vunpack.c.l.b16 %v4093
      %v4610 = vunpack.c.l.b16 %v4094
      %v4611 = vunpack.c.l.b16 %v4095
      %v4612 = vunpack.c.l.b16 %v4096
      %v4613 = vunpack.c.l.b16 %v4097
      %v4614 = vunpack.c.l.b16 %v4098
      %v4615 = vunpack.c.l.b16 %v4099
      %v4616 = vunpack.c.l.b16 %v4100
      %v4617 = vunpack.c.l.b16 %v4101
      %v4618 = vunpack.c.l.b16 %v4102
      %v4619 = vunpack.c.l.b16 %v4103
      %v4620 = vunpack.c.l.b16 %v4104
      %v4621 = vunpack.c.l.b16 %v4105
      %v4622 = vunpack.c.l.b16 %v4106
      %v4623 = vunpack.c.l.b16 %v4107
      %v4624 = vunpack.c.l.b16 %v4108
      %v4625 = vunpack.c.l.b16 %v4109
      %v4626 = vunpack.c.l.b16 %v4110
      %v4627 = vunpack.c.l.b16 %v4111
      %v4628 = vunpack.c.l.b16 %v4112
      %v4629 = vunpack.c.l.b16 %v4113
      %v4630 = vunpack.c.l.b16 %v4114
      %v4631 = vunpack.c.l.b16 %v4115
      %v4632 = vunpack.c.l.b16 %v4116
      %v4633 = vunpack.c.l.b16 %v4117
      %v4634 = vunpack.c.l.b16 %v4118
      %v4635 = vunpack.c.l.b16 %v4119
      %v4636 = vunpack.c.l.b16 %v4120
      %v4637 = vunpack.c.l.b16 %v4121
      %v4638 = vunpack.c.l.b16 %v4122
      %v4639 = vunpack.c.l.b16 %v4123
      %v4640 = vunpack.c.l.b16 %v4124
      %v4641 = vunpack.c.l.b16 %v4125
      %v4642 = vunpack.c.l.b16 %v4126
      %v4643 = vunpack.c.l.b16 %v4127
      %v4644 = vunpack.c.l.b16 %v4128
      %v4645 = vunpack.c.l.b16 %v4129
      %v4646 = vunpack.c.l.b16 %v4130
      %v4647 = vunpack.c.l.b16 %v4131
      %v4648 = vunpack.c.l.b16 %v4132
      %v4649 = vunpack.c.l.b16 %v4133
      %v4650 = vunpack.c.l.b16 %v4134
      %v4651 = vunpack.c.l.b16 %v4135
      %v4652 = vunpack.c.l.b16 %v4136
      %v4653 = vunpack.c.l.b16 %v4137
      %v4654 = vunpack.c.l.b16 %v4138
      %v4655 = vunpack.c.l.b16 %v4139
      %v4656 = vunpack.c.l.b16 %v4140
      %v4657 = vunpack.c.l.b16 %v4141
      %v4658 = vunpack.c.l.b16 %v4142
      %v4659 = vunpack.c.l.b16 %v4143
      %v4660 = vunpack.c.l.b16 %v4144
      %v4661 = vunpack.c.l.b16 %v4145
      %v4662 = vunpack.c.l.b16 %v4146
      %v4663 = vunpack.c.l.b16 %v4147
      %v4664 = vunpack.c.l.b16 %v4148
      %v4665 = vunpack.c.l.b16 %v4149
      %v4666 = vunpack.c.l.b16 %v4150
      %v4667 = vunpack.c.l.b16 %v4151
      %v4668 = vunpack.c.l.b16 %v4152
      %v4669 = vunpack.c.l.b16 %v4153
      %v4670 = vunpack.c.l.b16 %v4154
      %v4671 = vunpack.c.l.b16 %v4155
      %v4672 = vunpack.c.l.b16 %v4156
      %v4673 = vunpack.c.l.b16 %v4157
      %v4674 = vunpack.c.l.b16 %v4158
      %v4675 = vunpack.c.l.b16 %v4159
      %v4676 = vunpack.c.l.b16 %v4160
      %v4677 = vunpack.c.l.b16 %v4161
      %v4678 = vunpack.c.l.b16 %v4162
      %v4679 = vunpack.c.l.b16 %v4163
      %v4680 = vunpack.c.l.b16 %v4164
      %v4681 = vunpack.c.l.b16 %v4165
      %v4682 = vunpack.c.l.b16 %v4166
      %v4683 = vunpack.c.l.b16 %v4167
      %v4684 = vunpack.c.l.b16 %v4168
      %v4685 = vunpack.c.l.b16 %v4169
      %v4686 = vunpack.c.l.b16 %v4170
      %v4687 = vunpack.c.l.b16 %v4171
      %v4688 = vunpack.c.l.b16 %v4172
      %v4689 = vunpack.c.l.b16 %v4173
      %v4690 = vunpack.c.l.b16 %v4174
      %v4691 = vunpack.c.l.b16 %v4175
      %v4692 = vunpack.c.l.b16 %v4176
      %v4693 = vunpack.c.l.b16 %v4177
      %v4694 = vunpack.c.l.b16 %v4178
      %v4695 = vunpack.c.l.b16 %v4179
      %v4696 = vunpack.c.l.b16 %v4180
      %v4697 = vunpack.c.l.b16 %v4181
      %v4698 = vunpack.c.l.b16 %v4182
      %v4699 = vunpack.c.l.b16 %v4183
      %v4700 = vunpack.c.l.b16 %v4184
      %v4701 = vunpack.c.l.b16 %v4185
      %v4702 = vunpack.c.l.b16 %v4186
      %v4703 = vunpack.c.l.b16 %v4187
      %v4704 = vunpack.c.l.b16 %v4188
      %v4705 = vunpack.c.l.b16 %v4189
      %v4706 = vunpack.c.l.b16 %v4190
      %v4707 = vunpack.c.l.b16 %v4191
      %v4708 = vunpack.c.l.b16 %v4192
      %v4709 = vunpack.c.l.b16 %v4193
      %v4710 = vunpack.c.l.b16 %v4194
      %v4711 = vunpack.c.l.b16 %v4195
      %v4712 = vunpack.c.l.b16 %v4196
      %v4713 = vunpack.c.l.b16 %v4197
      %v4714 = vunpack.c.l.b16 %v4198
      %v4715 = vunpack.c.l.b16 %v4199
      %v4716 = vunpack.c.l.b16 %v4200
      %v4717 = vunpack.c.l.b16 %v4201
      %v4718 = vunpack.c.l.b16 %v4202
      %v4719 = vunpack.c.l.b16 %v4203
      %v4720 = vunpack.c.l.b16 %v4204
      %v4721 = vunpack.c.l.b16 %v4205
      %v4722 = vunpack.c.l.b16 %v4206
      %v4723 = vunpack.c.l.b16 %v4207
      %v4724 = vunpack.c.l.b16 %v4208
      %v4725 = vunpack.c.l.b16 %v4209
      %v4726 = vunpack.c.l.b16 %v4210
      %v4727 = vunpack.c.l.b16 %v4211
      %v4728 = vunpack.c.l.b16 %v4212
      %v4729 = vunpack.c.l.b16 %v4213
      %v4730 = vunpack.c.l.b16 %v4214
      %v4731 = vunpack.c.l.b16 %v4215
      %v4732 = vunpack.c.l.b16 %v4216
      %v4733 = vunpack.c.l.b16 %v4217
      %v4734 = vunpack.c.l.b16 %v4218
      %v4735 = vunpack.c.l.b16 %v4219
      %v4736 = vunpack.c.l.b16 %v4220
      %v4737 = vunpack.c.l.b16 %v4221
      %v4738 = vunpack.c.l.b16 %v4222
      %v4739 = vunpack.c.l.b16 %v4223
      %v4740 = vunpack.c.l.b16 %v4224
      %v4741 = vunpack.c.l.b16 %v4225
      %v4742 = vunpack.c.l.b16 %v4226
      %v4743 = vunpack.c.l.b16 %v4227
      %v4744 = vunpack.c.l.b16 %v4228
      %v4745 = vpack.c.b16 %v4490, %v4489
      %v4746 = vpack.c.b16 %v4492, %v4491
      %v4747 = vpack.c.b16 %v4494, %v4493
      %v4748 = vpack.c.b16 %v4496, %v4495
      %v4749 = vpack.c.b16 %v4498, %v4497
      %v4750 = vpack.c.b16 %v4500, %v4499
      %v4751 = vpack.c.b16 %v4502, %v4501
      %v4752 = vpack.c.b16 %v4504, %v4503
      %v4753 = vpack.c.b16 %v4506, %v4505
      %v4754 = vpack.c.b16 %v4508, %v4507
      %v4755 = vpack.c.b16 %v4510, %v4509
      %v4756 = vpack.c.b16 %v4512, %v4511
      %v4757 = vpack.c.b16 %v4514, %v4513
      %v4758 = vpack.c.b16 %v4516, %v4515
      %v4759 = vpack.c.b16 %v4518, %v4517
      %v4760 = vpack.c.b16 %v4520, %v4519
      %v4761 = vpack.c.b16 %v4522, %v4521
      %v4762 = vpack.c.b16 %v4524, %v4523
      %v4763 = vpack.c.b16 %v4526, %v4525
      %v4764 = vpack.c.b16 %v4528, %v4527
      %v4765 = vpack.c.b16 %v4530, %v4529
      %v4766 = vpack.c.b16 %v4532, %v4531
      %v4767 = vpack.c.b16 %v4534, %v4533
      %v4768 = vpack.c.b16 %v4536, %v4535
      %v4769 = vpack.c.b16 %v4538, %v4537
      %v4770 = vpack.c.b16 %v4540, %v4539
      %v4771 = vpack.c.b16 %v4542, %v4541
      %v4772 = vpack.c.b16 %v4544, %v4543
      %v4773 = vpack.c.b16 %v4546, %v4545
      %v4774 = vpack.c.b16 %v4548, %v4547
      %v4775 = vpack.c.b16 %v4550, %v4549
      %v4776 = vpack.c.b16 %v4552, %v4551
      %v4777 = vpack.c.b16 %v4554, %v4553
      %v4778 = vpack.c.b16 %v4556, %v4555
      %v4779 = vpack.c.b16 %v4558, %v4557
      %v4780 = vpack.c.b16 %v4560, %v4559
      %v4781 = vpack.c.b16 %v4562, %v4561
      %v4782 = vpack.c.b16 %v4564, %v4563
      %v4783 = vpack.c.b16 %v4566, %v4565
      %v4784 = vpack.c.b16 %v4568, %v4567
      %v4785 = vpack.c.b16 %v4570, %v4569
      %v4786 = vpack.c.b16 %v4572, %v4571
      %v4787 = vpack.c.b16 %v4574, %v4573
      %v4788 = vpack.c.b16 %v4576, %v4575
      %v4789 = vpack.c.b16 %v4578, %v4577
      %v4790 = vpack.c.b16 %v4580, %v4579
      %v4791 = vpack.c.b16 %v4582, %v4581
      %v4792 = vpack.c.b16 %v4584, %v4583
      %v4793 = vpack.c.b16 %v4586, %v4585
      %v4794 = vpack.c.b16 %v4588, %v4587
      %v4795 = vpack.c.b16 %v4590, %v4589
      %v4796 = vpack.c.b16 %v4592, %v4591
      %v4797 = vpack.c.b16 %v4594, %v4593
      %v4798 = vpack.c.b16 %v4596, %v4595
      %v4799 = vpack.c.b16 %v4598, %v4597
      %v4800 = vpack.c.b16 %v4600, %v4599
      %v4801 = vpack.c.b16 %v4602, %v4601
      %v4802 = vpack.c.b16 %v4604, %v4603
      %v4803 = vpack.c.b16 %v4606, %v4605
      %v4804 = vpack.c.b16 %v4608, %v4607
      %v4805 = vpack.c.b16 %v4610, %v4609
      %v4806 = vpack.c.b16 %v4612, %v4611
      %v4807 = vpack.c.b16 %v4614, %v4613
      %v4808 = vpack.c.b16 %v4616, %v4615
      %v4809 = vpack.c.b16 %v4618, %v4617
      %v4810 = vpack.c.b16 %v4620, %v4619
      %v4811 = vpack.c.b16 %v4622, %v4621
      %v4812 = vpack.c.b16 %v4624, %v4623
      %v4813 = vpack.c.b16 %v4626, %v4625
      %v4814 = vpack.c.b16 %v4628, %v4627
      %v4815 = vpack.c.b16 %v4630, %v4629
      %v4816 = vpack.c.b16 %v4632, %v4631
      %v4817 = vpack.c.b16 %v4634, %v4633
      %v4818 = vpack.c.b16 %v4636, %v4635
      %v4819 = vpack.c.b16 %v4638, %v4637
      %v4820 = vpack.c.b16 %v4640, %v4639
      %v4821 = vpack.c.b16 %v4642, %v4641
      %v4822 = vpack.c.b16 %v4644, %v4643
      %v4823 = vpack.c.b16 %v4646, %v4645
      %v4824 = vpack.c.b16 %v4648, %v4647
      %v4825 = vpack.c.b16 %v4650, %v4649
      %v4826 = vpack.c.b16 %v4652, %v4651
      %v4827 = vpack.c.b16 %v4654, %v4653
      %v4828 = vpack.c.b16 %v4656, %v4655
      %v4829 = vpack.c.b16 %v4658, %v4657
      %v4830 = vpack.c.b16 %v4660, %v4659
      %v4831 = vpack.c.b16 %v4662, %v4661
      %v4832 = vpack.c.b16 %v4664, %v4663
      %v4833 = vpack.c.b16 %v4666, %v4665
      %v4834 = vpack.c.b16 %v4668, %v4667
      %v4835 = vpack.c.b16 %v4670, %v4669
      %v4836 = vpack.c.b16 %v4672, %v4671
      %v4837 = vpack.c.b16 %v4674, %v4673
      %v4838 = vpack.c.b16 %v4676, %v4675
      %v4839 = vpack.c.b16 %v4678, %v4677
      %v4840 = vpack.c.b16 %v4680, %v4679
      %v4841 = vpack.c.b16 %v4682, %v4681
      %v4842 = vpack.c.b16 %v4684, %v4683
      %v4843 = vpack.c.b16 %v4686, %v4685
      %v4844 = vpack.c.b16 %v4688, %v4687
      %v4845 = vpack.c.b16 %v4690, %v4689
      %v4846 = vpack.c.b16 %v4692, %v4691
      %v4847 = vpack.c.b16 %v4694, %v4693
      %v4848 = vpack.c.b16 %v4696, %v4695
      %v4849 = vpack.c.b16 %v4698, %v4697
      %v4850 = vpack.c.b16 %v4700, %v4699
      %v4851 = vpack.c.b16 %v4702, %v4701
      %v4852 = vpack.c.b16 %v4704, %v4703
      %v4853 = vpack.c.b16 %v4706, %v4705
      %v4854 = vpack.c.b16 %v4708, %v4707
      %v4855 = vpack.c.b16 %v4710, %v4709
      %v4856 = vpack.c.b16 %v4712, %v4711
      %v4857 = vpack.c.b16 %v4714, %v4713
      %v4858 = vpack.c.b16 %v4716, %v4715
      %v4859 = vpack.c.b16 %v4718, %v4717
      %v4860 = vpack.c.b16 %v4720, %v4719
      %v4861 = vpack.c.b16 %v4722, %v4721
      %v4862 = vpack.c.b16 %v4724, %v4723
      %v4863 = vpack.c.b16 %v4726, %v4725
      %v4864 = vpack.c.b16 %v4728, %v4727
      %v4865 = vpack.c.b16 %v4730, %v4729
      %v4866 = vpack.c.b16 %v4732, %v4731
      %v4867 = vpack.c.b16 %v4734, %v4733
      %v4868 = vpack.c.b16 %v4736, %v4735
      %v4869 = vpack.c.b16 %v4738, %v4737
      %v4870 = vpack.c.b16 %v4740, %v4739
      %v4871 = vpack.c.b16 %v4742, %v4741
      %v4872 = vpack.c.b16 %v4744, %v4743
      %5001 = vmatpush.bf16.msra.mxu0 %v4752
      %5002 = vmatpush.bf16.msra.mxu0 %v4751
      %5003 = vmatpush.bf16.msra.mxu0 %v4750
      %5004 = vmatpush.bf16.msra.mxu0 %v4749
      %5005 = vmatpush.bf16.msra.mxu0 %v4748
      %5006 = vmatpush.bf16.msra.mxu0 %v4747
      %5007 = vmatpush.bf16.msra.mxu0 %v4746
      %5008 = vmatpush.bf16.msra.mxu0 %v4745
      %5009 = vmatmul.bf16.gmra.mxu0 %v3941
      %v5010 = vpop.f32.mrf.mxu0
      %v5011 = vadd.f32 %v4231, %v5010
      %v5012 = vpop.f32.mrf.mxu0
      %v5013 = vadd.f32 %v4231, %v5012
      %5014 = vmatmul.bf16.gmra.mxu0 %v3957
      %v5015 = vpop.f32.mrf.mxu0
      %v5016 = vadd.f32 %v4231, %v5015
      %v5017 = vpop.f32.mrf.mxu0
      %v5018 = vadd.f32 %v4231, %v5017
      %5019 = vdwg.mxu0
      %5020 = vmatpush.bf16.msra.mxu0 %v4760
      %5021 = vmatpush.bf16.msra.mxu0 %v4759
      %5022 = vmatpush.bf16.msra.mxu0 %v4758
      %5023 = vmatpush.bf16.msra.mxu0 %v4757
      %5024 = vmatpush.bf16.msra.mxu0 %v4756
      %5025 = vmatpush.bf16.msra.mxu0 %v4755
      %5026 = vmatpush.bf16.msra.mxu0 %v4754
      %5027 = vmatpush.bf16.msra.mxu0 %v4753
      %5028 = vmatmul.bf16.gmra.mxu0 %v3942
      %v5029 = vpop.f32.mrf.mxu0
      %v5030 = vadd.f32 %v5011, %v5029
      %v5031 = vpop.f32.mrf.mxu0
      %v5032 = vadd.f32 %v5013, %v5031
      %5033 = vmatmul.bf16.gmra.mxu0 %v3958
      %v5034 = vpop.f32.mrf.mxu0
      %v5035 = vadd.f32 %v5016, %v5034
      %v5036 = vpop.f32.mrf.mxu0
      %v5037 = vadd.f32 %v5018, %v5036
      %5038 = vdwg.mxu0
      %5039 = vmatpush.bf16.msra.mxu0 %v4768
      %5040 = vmatpush.bf16.msra.mxu0 %v4767
      %5041 = vmatpush.bf16.msra.mxu0 %v4766
      %5042 = vmatpush.bf16.msra.mxu0 %v4765
      %5043 = vmatpush.bf16.msra.mxu0 %v4764
      %5044 = vmatpush.bf16.msra.mxu0 %v4763
      %5045 = vmatpush.bf16.msra.mxu0 %v4762
      %5046 = vmatpush.bf16.msra.mxu0 %v4761
      %5047 = vmatmul.bf16.gmra.mxu0 %v3943
      %v5048 = vpop.f32.mrf.mxu0
      %v5049 = vadd.f32 %v5030, %v5048
      %v5050 = vpop.f32.mrf.mxu0
      %v5051 = vadd.f32 %v5032, %v5050
      %5052 = vmatmul.bf16.gmra.mxu0 %v3959
      %v5053 = vpop.f32.mrf.mxu0
      %v5054 = vadd.f32 %v5035, %v5053
      %v5055 = vpop.f32.mrf.mxu0
      %v5056 = vadd.f32 %v5037, %v5055
      %5057 = vdwg.mxu0
      %5058 = vmatpush.bf16.msra.mxu0 %v4776
      %5059 = vmatpush.bf16.msra.mxu0 %v4775
      %5060 = vmatpush.bf16.msra.mxu0 %v4774
      %5061 = vmatpush.bf16.msra.mxu0 %v4773
      %5062 = vmatpush.bf16.msra.mxu0 %v4772
      %5063 = vmatpush.bf16.msra.mxu0 %v4771
      %5064 = vmatpush.bf16.msra.mxu0 %v4770
      %5065 = vmatpush.bf16.msra.mxu0 %v4769
      %5066 = vmatmul.bf16.gmra.mxu0 %v3944
      %v5067 = vpop.f32.mrf.mxu0
      %v5068 = vadd.f32 %v5049, %v5067
      %v5069 = vpop.f32.mrf.mxu0
      %v5070 = vadd.f32 %v5051, %v5069
      %5071 = vmatmul.bf16.gmra.mxu0 %v3960
      %v5072 = vpop.f32.mrf.mxu0
      %v5073 = vadd.f32 %v5054, %v5072
      %v5074 = vpop.f32.mrf.mxu0
      %v5075 = vadd.f32 %v5056, %v5074
      %5076 = vdwg.mxu0
      %5077 = vmatpush.bf16.msra.mxu0 %v4784
      %5078 = vmatpush.bf16.msra.mxu0 %v4783
      %5079 = vmatpush.bf16.msra.mxu0 %v4782
      %5080 = vmatpush.bf16.msra.mxu0 %v4781
      %5081 = vmatpush.bf16.msra.mxu0 %v4780
      %5082 = vmatpush.bf16.msra.mxu0 %v4779
      %5083 = vmatpush.bf16.msra.mxu0 %v4778
      %5084 = vmatpush.bf16.msra.mxu0 %v4777
      %5085 = vmatmul.bf16.gmra.mxu0 %v3945
      %v5086 = vpop.f32.mrf.mxu0
      %v5087 = vadd.f32 %v5068, %v5086
      %v5088 = vpop.f32.mrf.mxu0
      %v5089 = vadd.f32 %v5070, %v5088
      %5090 = vmatmul.bf16.gmra.mxu0 %v3961
      %v5091 = vpop.f32.mrf.mxu0
      %v5092 = vadd.f32 %v5073, %v5091
      %v5093 = vpop.f32.mrf.mxu0
      %v5094 = vadd.f32 %v5075, %v5093
      %5095 = vdwg.mxu0
      %5096 = vmatpush.bf16.msra.mxu0 %v4792
      %5097 = vmatpush.bf16.msra.mxu0 %v4791
      %5098 = vmatpush.bf16.msra.mxu0 %v4790
      %5099 = vmatpush.bf16.msra.mxu0 %v4789
      %5100 = vmatpush.bf16.msra.mxu0 %v4788
      %5101 = vmatpush.bf16.msra.mxu0 %v4787
      %5102 = vmatpush.bf16.msra.mxu0 %v4786
      %5103 = vmatpush.bf16.msra.mxu0 %v4785
      %5104 = vmatmul.bf16.gmra.mxu0 %v3946
      %v5105 = vpop.f32.mrf.mxu0
      %v5106 = vadd.f32 %v5087, %v5105
      %v5107 = vpop.f32.mrf.mxu0
      %v5108 = vadd.f32 %v5089, %v5107
      %5109 = vmatmul.bf16.gmra.mxu0 %v3962
      %v5110 = vpop.f32.mrf.mxu0
      %v5111 = vadd.f32 %v5092, %v5110
      %v5112 = vpop.f32.mrf.mxu0
      %v5113 = vadd.f32 %v5094, %v5112
      %5114 = vdwg.mxu0
      %5115 = vmatpush.bf16.msra.mxu0 %v4800
      %5116 = vmatpush.bf16.msra.mxu0 %v4799
      %5117 = vmatpush.bf16.msra.mxu0 %v4798
      %5118 = vmatpush.bf16.msra.mxu0 %v4797
      %5119 = vmatpush.bf16.msra.mxu0 %v4796
      %5120 = vmatpush.bf16.msra.mxu0 %v4795
      %5121 = vmatpush.bf16.msra.mxu0 %v4794
      %5122 = vmatpush.bf16.msra.mxu0 %v4793
      %5123 = vmatmul.bf16.gmra.mxu0 %v3947
      %v5124 = vpop.f32.mrf.mxu0
      %v5125 = vadd.f32 %v5106, %v5124
      %v5126 = vpop.f32.mrf.mxu0
      %v5127 = vadd.f32 %v5108, %v5126
      %5128 = vmatmul.bf16.gmra.mxu0 %v3963
      %v5129 = vpop.f32.mrf.mxu0
      %v5130 = vadd.f32 %v5111, %v5129
      %v5131 = vpop.f32.mrf.mxu0
      %v5132 = vadd.f32 %v5113, %v5131
      %5133 = vdwg.mxu0
      %5134 = vmatpush.bf16.msra.mxu0 %v4808
      %5135 = vmatpush.bf16.msra.mxu0 %v4807
      %5136 = vmatpush.bf16.msra.mxu0 %v4806
      %5137 = vmatpush.bf16.msra.mxu0 %v4805
      %5138 = vmatpush.bf16.msra.mxu0 %v4804
      %5139 = vmatpush.bf16.msra.mxu0 %v4803
      %5140 = vmatpush.bf16.msra.mxu0 %v4802
      %5141 = vmatpush.bf16.msra.mxu0 %v4801
      %5142 = vmatmul.bf16.gmra.mxu0 %v3948
      %v5143 = vpop.f32.mrf.mxu0
      %v5144 = vadd.f32 %v5125, %v5143
      %v5145 = vpop.f32.mrf.mxu0
      %v5146 = vadd.f32 %v5127, %v5145
      %5147 = vmatmul.bf16.gmra.mxu0 %v3964
      %v5148 = vpop.f32.mrf.mxu0
      %v5149 = vadd.f32 %v5130, %v5148
      %v5150 = vpop.f32.mrf.mxu0
      %v5151 = vadd.f32 %v5132, %v5150
      %5152 = vdwg.mxu0
      %5153 = vmatpush.bf16.msra.mxu0 %v4816
      %5154 = vmatpush.bf16.msra.mxu0 %v4815
      %5155 = vmatpush.bf16.msra.mxu0 %v4814
      %5156 = vmatpush.bf16.msra.mxu0 %v4813
      %5157 = vmatpush.bf16.msra.mxu0 %v4812
      %5158 = vmatpush.bf16.msra.mxu0 %v4811
      %5159 = vmatpush.bf16.msra.mxu0 %v4810
      %5160 = vmatpush.bf16.msra.mxu0 %v4809
      %5161 = vmatmul.bf16.gmra.mxu0 %v3949
      %v5162 = vpop.f32.mrf.mxu0
      %v5163 = vadd.f32 %v5144, %v5162
      %v5164 = vpop.f32.mrf.mxu0
      %v5165 = vadd.f32 %v5146, %v5164
      %5166 = vmatmul.bf16.gmra.mxu0 %v3965
      %v5167 = vpop.f32.mrf.mxu0
      %v5168 = vadd.f32 %v5149, %v5167
      %v5169 = vpop.f32.mrf.mxu0
      %v5170 = vadd.f32 %v5151, %v5169
      %5171 = vdwg.mxu0
      %5172 = vmatpush.bf16.msra.mxu0 %v4824
      %5173 = vmatpush.bf16.msra.mxu0 %v4823
      %5174 = vmatpush.bf16.msra.mxu0 %v4822
      %5175 = vmatpush.bf16.msra.mxu0 %v4821
      %5176 = vmatpush.bf16.msra.mxu0 %v4820
      %5177 = vmatpush.bf16.msra.mxu0 %v4819
      %5178 = vmatpush.bf16.msra.mxu0 %v4818
      %5179 = vmatpush.bf16.msra.mxu0 %v4817
      %5180 = vmatmul.bf16.gmra.mxu0 %v3950
      %v5181 = vpop.f32.mrf.mxu0
      %v5182 = vadd.f32 %v5163, %v5181
      %v5183 = vpop.f32.mrf.mxu0
      %v5184 = vadd.f32 %v5165, %v5183
      %5185 = vmatmul.bf16.gmra.mxu0 %v3966
      %v5186 = vpop.f32.mrf.mxu0
      %v5187 = vadd.f32 %v5168, %v5186
      %v5188 = vpop.f32.mrf.mxu0
      %v5189 = vadd.f32 %v5170, %v5188
      %5190 = vdwg.mxu0
      %5191 = vmatpush.bf16.msra.mxu0 %v4832
      %5192 = vmatpush.bf16.msra.mxu0 %v4831
      %5193 = vmatpush.bf16.msra.mxu0 %v4830
      %5194 = vmatpush.bf16.msra.mxu0 %v4829
      %5195 = vmatpush.bf16.msra.mxu0 %v4828
      %5196 = vmatpush.bf16.msra.mxu0 %v4827
      %5197 = vmatpush.bf16.msra.mxu0 %v4826
      %5198 = vmatpush.bf16.msra.mxu0 %v4825
      %5199 = vmatmul.bf16.gmra.mxu0 %v3951
      %v5200 = vpop.f32.mrf.mxu0
      %v5201 = vadd.f32 %v5182, %v5200
      %v5202 = vpop.f32.mrf.mxu0
      %v5203 = vadd.f32 %v5184, %v5202
      %5204 = vmatmul.bf16.gmra.mxu0 %v3967
      %v5205 = vpop.f32.mrf.mxu0
      %v5206 = vadd.f32 %v5187, %v5205
      %v5207 = vpop.f32.mrf.mxu0
      %v5208 = vadd.f32 %v5189, %v5207
      %5209 = vdwg.mxu0
      %5210 = vmatpush.bf16.msra.mxu0 %v4840
      %5211 = vmatpush.bf16.msra.mxu0 %v4839
      %5212 = vmatpush.bf16.msra.mxu0 %v4838
      %5213 = vmatpush.bf16.msra.mxu0 %v4837
      %5214 = vmatpush.bf16.msra.mxu0 %v4836
      %5215 = vmatpush.bf16.msra.mxu0 %v4835
      %5216 = vmatpush.bf16.msra.mxu0 %v4834
      %5217 = vmatpush.bf16.msra.mxu0 %v4833
      %5218 = vmatmul.bf16.gmra.mxu0 %v3952
      %v5219 = vpop.f32.mrf.mxu0
      %v5220 = vadd.f32 %v5201, %v5219
      %v5221 = vpop.f32.mrf.mxu0
      %v5222 = vadd.f32 %v5203, %v5221
      %5223 = vmatmul.bf16.gmra.mxu0 %v3968
      %v5224 = vpop.f32.mrf.mxu0
      %v5225 = vadd.f32 %v5206, %v5224
      %v5226 = vpop.f32.mrf.mxu0
      %v5227 = vadd.f32 %v5208, %v5226
      %5228 = vdwg.mxu0
      %5229 = vmatpush.bf16.msra.mxu0 %v4848
      %5230 = vmatpush.bf16.msra.mxu0 %v4847
      %5231 = vmatpush.bf16.msra.mxu0 %v4846
      %5232 = vmatpush.bf16.msra.mxu0 %v4845
      %5233 = vmatpush.bf16.msra.mxu0 %v4844
      %5234 = vmatpush.bf16.msra.mxu0 %v4843
      %5235 = vmatpush.bf16.msra.mxu0 %v4842
      %5236 = vmatpush.bf16.msra.mxu0 %v4841
      %5237 = vmatmul.bf16.gmra.mxu0 %v3953
      %v5238 = vpop.f32.mrf.mxu0
      %v5239 = vadd.f32 %v5220, %v5238
      %v5240 = vpop.f32.mrf.mxu0
      %v5241 = vadd.f32 %v5222, %v5240
      %5242 = vmatmul.bf16.gmra.mxu0 %v3969
      %v5243 = vpop.f32.mrf.mxu0
      %v5244 = vadd.f32 %v5225, %v5243
      %v5245 = vpop.f32.mrf.mxu0
      %v5246 = vadd.f32 %v5227, %v5245
      %5247 = vdwg.mxu0
      %5248 = vmatpush.bf16.msra.mxu0 %v4856
      %5249 = vmatpush.bf16.msra.mxu0 %v4855
      %5250 = vmatpush.bf16.msra.mxu0 %v4854
      %5251 = vmatpush.bf16.msra.mxu0 %v4853
      %5252 = vmatpush.bf16.msra.mxu0 %v4852
      %5253 = vmatpush.bf16.msra.mxu0 %v4851
      %5254 = vmatpush.bf16.msra.mxu0 %v4850
      %5255 = vmatpush.bf16.msra.mxu0 %v4849
      %5256 = vmatmul.bf16.gmra.mxu0 %v3954
      %v5257 = vpop.f32.mrf.mxu0
      %v5258 = vadd.f32 %v5239, %v5257
      %v5259 = vpop.f32.mrf.mxu0
      %v5260 = vadd.f32 %v5241, %v5259
      %5261 = vmatmul.bf16.gmra.mxu0 %v3970
      %v5262 = vpop.f32.mrf.mxu0
      %v5263 = vadd.f32 %v5244, %v5262
      %v5264 = vpop.f32.mrf.mxu0
      %v5265 = vadd.f32 %v5246, %v5264
      %5266 = vdwg.mxu0
      %5267 = vmatpush.bf16.msra.mxu0 %v4864
      %5268 = vmatpush.bf16.msra.mxu0 %v4863
      %5269 = vmatpush.bf16.msra.mxu0 %v4862
      %5270 = vmatpush.bf16.msra.mxu0 %v4861
      %5271 = vmatpush.bf16.msra.mxu0 %v4860
      %5272 = vmatpush.bf16.msra.mxu0 %v4859
      %5273 = vmatpush.bf16.msra.mxu0 %v4858
      %5274 = vmatpush.bf16.msra.mxu0 %v4857
      %5275 = vmatmul.bf16.gmra.mxu0 %v3955
      %v5276 = vpop.f32.mrf.mxu0
      %v5277 = vadd.f32 %v5258, %v5276
      %v5278 = vpop.f32.mrf.mxu0
      %v5279 = vadd.f32 %v5260, %v5278
      %5280 = vmatmul.bf16.gmra.mxu0 %v3971
      %v5281 = vpop.f32.mrf.mxu0
      %v5282 = vadd.f32 %v5263, %v5281
      %v5283 = vpop.f32.mrf.mxu0
      %v5284 = vadd.f32 %v5265, %v5283
      %5285 = vdwg.mxu0
      %5286 = vmatpush.bf16.msra.mxu0 %v4872
      %5287 = vmatpush.bf16.msra.mxu0 %v4871
      %5288 = vmatpush.bf16.msra.mxu0 %v4870
      %5289 = vmatpush.bf16.msra.mxu0 %v4869
      %5290 = vmatpush.bf16.msra.mxu0 %v4868
      %5291 = vmatpush.bf16.msra.mxu0 %v4867
      %5292 = vmatpush.bf16.msra.mxu0 %v4866
      %5293 = vmatpush.bf16.msra.mxu0 %v4865
      %5294 = vmatmul.bf16.gmra.mxu0 %v3956
      %v5295 = vpop.f32.mrf.mxu0
      %v5296 = vadd.f32 %v5277, %v5295
      %v5297 = vpop.f32.mrf.mxu0
      %v5298 = vadd.f32 %v5279, %v5297
      %5299 = vmatmul.bf16.gmra.mxu0 %v3972
      %v5300 = vpop.f32.mrf.mxu0
      %v5301 = vadd.f32 %v5282, %v5300
      %v5302 = vpop.f32.mrf.mxu0
      %v5303 = vadd.f32 %v5284, %v5302
      %5304 = vdwg.mxu0
      %v5305 = vadd.f32 %v3333, %v5296
      %v5306 = vadd.f32 %v3334, %v5298
      %v5307 = vadd.f32 %v3335, %v5301
      %v5308 = vadd.f32 %v3336, %v5303
      %v5309 = vld [vmem:[%s11 + $0x2] sm:$0x1]
      %v5310 = vld [vmem:[%s12 + $0x2] sm:$0x1]
      %v5311 = vsel %vm579, %v5305, 0.0
      %5312 = vadd.xlane.f32.xlu0 %v5311
      %v5313 = vpop.xlane.xlu0 %5312
      %v5314 = vsel %vm579, %v5306, 0.0
      %5315 = vadd.xlane.f32.xlu0 %v5314
      %v5316 = vpop.xlane.xlu0 %5315
      %v5317 = vsel %vm579, %v5307, 0.0
      %5318 = vadd.xlane.f32.xlu0 %v5317
      %v5319 = vpop.xlane.xlu0 %5318
      %v5320 = vsel %vm579, %v5308, 0.0
      %5321 = vadd.xlane.f32.xlu0 %v5320
      %v5322 = vpop.xlane.xlu0 %5321
      %v5323 = vmul.f32 %v5313, %v2005
      %v5324 = vmul.f32 %v5316, %v2005
      %v5325 = vmul.f32 %v5319, %v2005
      %v5326 = vmul.f32 %v5322, %v2005
      %v5327 = vsub.f32 %v5305, %v5323
      %v5328 = vsub.f32 %v5306, %v5324
      %v5329 = vsub.f32 %v5307, %v5325
      %v5330 = vsub.f32 %v5308, %v5326
      %v5331 = vmul.f32 %v5327, %v5327
      %v5332 = vmul.f32 %v5328, %v5328
      %v5333 = vmul.f32 %v5329, %v5329
      %v5334 = vmul.f32 %v5330, %v5330
      %v5335 = vsel %vm579, %v5331, 0.0
      %5336 = vadd.xlane.f32.xlu0 %v5335
      %v5337 = vpop.xlane.xlu0 %5336
      %v5338 = vsel %vm579, %v5332, 0.0
      %5339 = vadd.xlane.f32.xlu0 %v5338
      %v5340 = vpop.xlane.xlu0 %5339
      %v5341 = vsel %vm579, %v5333, 0.0
      %5342 = vadd.xlane.f32.xlu0 %v5341
      %v5343 = vpop.xlane.xlu0 %5342
      %v5344 = vsel %vm579, %v5334, 0.0
      %5345 = vadd.xlane.f32.xlu0 %v5344
      %v5346 = vpop.xlane.xlu0 %5345
      %v5347 = vmul.f32 %v5337, %v2005
      %v5348 = vmul.f32 %v5340, %v2005
      %v5349 = vmul.f32 %v5343, %v2005
      %v5350 = vmul.f32 %v5346, %v2005
      %v5351 = vadd.f32 %v5347, 1e-05
      %v5352 = vadd.f32 %v5348, 1e-05
      %v5353 = vadd.f32 %v5349, 1e-05
      %v5354 = vadd.f32 %v5350, 1e-05
      %v5355 = vrsqrt.pop %v5351
      %v5356 = vmul.f32 %v5355, %v5351
      %v5357 = vmul.f32 %v5356, %v5355
      %v5358 = vmul.f32 0.5, %v5357
      %v5359 = vsub.f32 1.5, %v5358
      %v5360 = vmul.f32 %v5355, %v5359
      %vm5361 = vweird.f32 %v5351
      %vm5362 = vweird.f32 %v5355
      %vm5363 = vmor %vm5361, %vm5362
      %v5364 = vsel %vm5363, %v5355, %v5360
      %v5365 = vrsqrt.pop %v5352
      %v5366 = vmul.f32 %v5365, %v5352
      %v5367 = vmul.f32 %v5366, %v5365
      %v5368 = vmul.f32 0.5, %v5367
      %v5369 = vsub.f32 1.5, %v5368
      %v5370 = vmul.f32 %v5365, %v5369
      %vm5371 = vweird.f32 %v5352
      %vm5372 = vweird.f32 %v5365
      %vm5373 = vmor %vm5371, %vm5372
      %v5374 = vsel %vm5373, %v5365, %v5370
      %v5375 = vrsqrt.pop %v5353
      %v5376 = vmul.f32 %v5375, %v5353
      %v5377 = vmul.f32 %v5376, %v5375
      %v5378 = vmul.f32 0.5, %v5377
      %v5379 = vsub.f32 1.5, %v5378
      %v5380 = vmul.f32 %v5375, %v5379
      %vm5381 = vweird.f32 %v5353
      %vm5382 = vweird.f32 %v5375
      %vm5383 = vmor %vm5381, %vm5382
      %v5384 = vsel %vm5383, %v5375, %v5380
      %v5385 = vrsqrt.pop %v5354
      %v5386 = vmul.f32 %v5385, %v5354
      %v5387 = vmul.f32 %v5386, %v5385
      %v5388 = vmul.f32 0.5, %v5387
      %v5389 = vsub.f32 1.5, %v5388
      %v5390 = vmul.f32 %v5385, %v5389
      %vm5391 = vweird.f32 %v5354
      %vm5392 = vweird.f32 %v5385
      %vm5393 = vmor %vm5391, %vm5392
      %v5394 = vsel %vm5393, %v5385, %v5390
      %v5395 = vmul.f32 %v5327, %v5364
      %v5396 = vmul.f32 %v5328, %v5374
      %v5397 = vmul.f32 %v5329, %v5384
      %v5398 = vmul.f32 %v5330, %v5394
      %v5399 = vperm.slane %v5309, 0
      %v5400 = vmul.f32 %v5395, %v5399
      %v5401 = vmul.f32 %v5396, %v5399
      %v5402 = vmul.f32 %v5397, %v5399
      %v5403 = vmul.f32 %v5398, %v5399
      %v5404 = vperm.slane %v5310, 0
      %v5405 = vadd.f32 %v5400, %v5404
      %v5406 = vadd.f32 %v5401, %v5404
      %v5407 = vadd.f32 %v5402, %v5404
      %v5408 = vadd.f32 %v5403, %v5404
      %v5409 = vadd.f32 %v1977, %v5405
      %v5410 = vadd.f32 %v1978, %v5406
      %v5411 = vadd.f32 %v1979, %v5407
      %v5412 = vadd.f32 %v1980, %v5408
      %5413 = vst.msk [vmem:[%s550] sm:$0xff] %vm579, %v5409
      %5414 = vst.msk [vmem:[%s550 + $0x8] sm:$0xff] %vm579, %v5410
      %5415 = vst.msk [vmem:[%s550 + $0x10] sm:$0xff] %vm579, %v5411
      %5416 = vst.msk [vmem:[%s550 + $0x18] sm:$0xff] %vm579, %v5412
      %s5417 = smul.u32 4, %s28
      %p5418 = scmp.lt.s32.totalorder %s5417, 15
      %s5419 = scalar_select %p5418, %s5417, 15
      %s5420 = smul.addr %s5419, 8
      %s5421 = scalar_lea.vmem %s17, %s5420
      // Predicated region
      $region89: #{tpu_custom_call.1} parent=87 // pred_check
        %p5422 = pneg %p408
      $region90: #{tpu_custom_call.1} parent=87 // pred_check_branch
        %5424 = sbr.rel (%p5422) target = $region92
      $region91: #{tpu_custom_call.1} parent=87 // pred_region
        %s5425 = smul.u32 4, %s28
      $region92: #{tpu_custom_call.1} parent=87 // pred_fallthru
        _
    $region88: #{tpu_custom_call.1} parent=5 // pred_fallthru
      _
    %p5426 = scmp.le.s32.totalorder 2, %s23
    // Predicated region
    $region93: #{tpu_custom_call.1} parent=5 // pred_check
      %p5427 = pneg %p5426
    $region94: #{tpu_custom_call.1} parent=5 // pred_check_branch
      %5429 = sbr.rel (%p5427) target = $region96
    $region95: #{tpu_custom_call.1} parent=5 // pred_region
      %s5430 = ssub.s32 %s23, 2
      // Predicated region
      $region97: #{tpu_custom_call.1} parent=95 // pred_check
        %p5431 = pneg %p414
      $region98: #{tpu_custom_call.1} parent=95 // pred_check_branch
        %5433 = sbr.rel (%p5431) target = $region100
      $region99: #{tpu_custom_call.1} parent=95 // pred_region
        %s5434 = smul.u32 4, %s29
        %p5435 = scmp.lt.s32.totalorder %s5434, 15
        %s5436 = scalar_select %p5435, %s5434, 15
        %s5437 = smul.addr %s5436, 8
        %s5438 = scalar_lea.vmem %s17, %s5437
      $region100: #{tpu_custom_call.1} parent=95 // pred_fallthru
        _
    $region96: #{tpu_custom_call.1} parent=5 // pred_fallthru
      _
  $region6: #{tpu_custom_call.1} parent=0 // loop_footer
    %s27 = sadd.s32 1, %s23
  $region7: #{tpu_custom_call.1} parent=0 // loop_footer_branch
    %22 = sbr.rel target = $region3
  $region8: #{tpu_custom_call.1} parent=0 // loop_exit
    _

</llo_original>
